<compile_context>
chip_gen: v7x
topology: tpu7x:2x2x1
jax: 0.10.0
libtpu: 0.0.40
codegen_flags: <defaults>
</compile_context>

<pallas_src>
import functools

import jax
import jax.numpy as jnp
from jax.experimental import pallas as pl
from jax.experimental.pallas import tpu as pltpu

CONFIG = dict(d_model=32, n_head=4, n_layer=2, d_inner=64,
              activation="relu", dropout=0.0)
LN_EPS = 1e-5      # torch.nn.LayerNorm default eps
ATTN_EPS = 1e-6    # fast_transformers CausalLinearAttention default eps


# ----------------------------- fused Pallas kernel ---------------------------

def _fused_encoder_kernel(h_ref, wqkv_ref, wo_ref, w1_ref, w2_ref,
                          vec_ref, fin_ref, o_ref,
                          *, n_layer, n_head, activation, matmul_dtype):
    """Whole LinearTransformer forward for a (Bt, L, D) slab, VMEM-resident."""
    Bt, L, D = h_ref.shape
    F = w1_ref.shape[-1]
    Dh = D // n_head

    x = h_ref[...].astype(jnp.float32).reshape(Bt * L, D)     # (Bt*L, D)

    def cast(a):
        return a if matmul_dtype is None else a.astype(matmul_dtype)

    def mm(a, b):                                   # 2-D MXU matmul, f32 acc
        return jnp.dot(cast(a), cast(b), preferred_element_type=jnp.float32)

    def bmm(eq, a, b):                              # batched (per-seq) matmul
        return jnp.einsum(eq, cast(a), cast(b),
                          preferred_element_type=jnp.float32)

    def layer_norm(v, g, b):
        mu = jnp.mean(v, axis=-1, keepdims=True)
        vc = v - mu
        var = jnp.mean(vc * vc, axis=-1, keepdims=True)
        return vc * jax.lax.rsqrt(var + LN_EPS) * g + b

    def elu1(v):                                    # elu(v) + 1
        return jnp.where(v > 0, v + 1.0, jnp.exp(v))

    def act_fn(v):
        if activation == "relu":
            return jnp.maximum(v, 0.0)
        if activation == "gelu":
            return jax.nn.gelu(v)
        return v

    # causal mask built once at full (Bt, L, L) shape (broadcast hoisted out of
    # the layer/head loops -- JAX does not CSE broadcast_in_dim).
    row = jax.lax.broadcasted_iota(jnp.int32, (Bt, L, L), 1)
    col = jax.lax.broadcasted_iota(jnp.int32, (Bt, L, L), 2)
    causal = col <= row

    for l in range(n_layer):                        # static unroll (n_layer small)
        wqkv = wqkv_ref[l]                          # (D, 3D)  pre-transposed
        wo = wo_ref[l]                              # (D, D)
        w1 = w1_ref[l]                              # (D, F)
        w2 = w2_ref[l]                              # (F, D)
        vec = vec_ref[l]                            # (8, W) packed small params
        bqkv = vec[0:1, :3 * D]
        b1 = vec[1:2, :F]
        bo = vec[2:3, :D]
        ln1_g = vec[3:4, :D]
        ln1_b = vec[4:5, :D]
        b2 = vec[5:6, :D]
        ln2_g = vec[6:7, :D]
        ln2_b = vec[7:8, :D]

        # ---- fused QKV projection: one (Bt*L, D) x (D, 3D) MXU matmul ----
        qkv = mm(x, wqkv) + bqkv                               # (Bt*L, 3D)

        # elu(.)+1 applied once on the full Q / K blocks (2 wide passes).
        pq = elu1(qkv[:, :D]).reshape(Bt, L, D)
        pk = elu1(qkv[:, D:2 * D]).reshape(Bt, L, D)
        v3 = qkv[:, 2 * D:3 * D].reshape(Bt, L, D)

        # ---- causal linear attention: per-head L x L scores (per sequence) ----
        heads = []
        for hh in range(n_head):
            lo = hh * Dh
            s = bmm('bld,bmd->blm',
                    pq[:, :, lo:lo + Dh], pk[:, :, lo:lo + Dh])     # (Bt, L, L)
            s = jnp.where(causal, s, 0.0)
            z = jnp.sum(s, axis=-1, keepdims=True) + ATTN_EPS       # f32
            num = bmm('blm,bmd->bld', s, v3[:, :, lo:lo + Dh])      # (Bt, L, Dh)
            heads.append(num / z)
        # lane-concat heads (XLU), then ONE output-projection matmul on the MXU.
        o_heads = jnp.concatenate(heads, axis=-1).reshape(Bt * L, D)

        # ---- residual + norm1 (dropout = 0) ----
        x = x + mm(o_heads, wo) + bo
        x = layer_norm(x, ln1_g, ln1_b)

        # ---- feed-forward + residual + norm2 ----
        y = act_fn(mm(x, w1) + b1)
        y = mm(y, w2) + b2
        x = layer_norm(x + y, ln2_g, ln2_b)

    # ---- encoder-level final LayerNorm (builder default) ----
    x = layer_norm(x, fin_ref[0:1, :], fin_ref[1:2, :])
    o_ref[...] = x.reshape(Bt, L, D).astype(o_ref.dtype)


# ------------------------------ wrapper ---------------------------------------

def _pack_params(layers, final_norm):
    """Pack torch-layout params into MXU-friendly (in,out) weight slabs plus a
    single (nL, 8, W) row slab holding all biases / LayerNorm gains."""
    D = layers[0]["wq"].shape[0]
    F = layers[0]["w1"].shape[0]
    W = max(3 * D, F)

    def t(w):                                   # torch (out,in) -> (in,out)
        return jnp.asarray(w).T

    def padrow(v):
        v = jnp.asarray(v, jnp.float32)
        return jnp.pad(v, (0, W - v.shape[0]))[None, :]

    wqkv = jnp.stack([jnp.concatenate([p["wq"], p["wk"], p["wv"]], axis=0).T
                      for p in layers])                               # (nL, D, 3D)
    wo = jnp.stack([t(p["wo"]) for p in layers])                      # (nL, D, D)
    w1 = jnp.stack([t(p["w1"]) for p in layers])                      # (nL, D, F)
    w2 = jnp.stack([t(p["w2"]) for p in layers])                      # (nL, F, D)
    # row order: 0=bqkv 1=b1 2=bo 3=ln1_g 4=ln1_b 5=b2 6=ln2_g 7=ln2_b
    vecs = jnp.stack([jnp.concatenate([
        padrow(jnp.concatenate([p["bq"], p["bk"], p["bv"]])),
        padrow(p["b1"]), padrow(p["bo"]),
        padrow(p["ln1_g"]), padrow(p["ln1_b"]),
        padrow(p["b2"]), padrow(p["ln2_g"]), padrow(p["ln2_b"])], axis=0)
        for p in layers])                                             # (nL, 8, W)
    fin = jnp.stack([jnp.asarray(final_norm["g"], jnp.float32),
                     jnp.asarray(final_norm["b"], jnp.float32)])      # (2, D)
    return wqkv, wo, w1, w2, vecs, fin


def _full_spec(a):
    nd = a.ndim
    return pl.BlockSpec(a.shape, lambda b: (0,) * nd)


def _pick_block_batch(B, L, target_rows=512):
    """Largest divisor of B whose block gives ~target_rows MXU rows per step."""
    bt = max(1, min(B, target_rows // max(L, 1)))
    while B % bt:
        bt -= 1
    return bt


def linear_transformer_forward(h, layers, final_norm, cfg, lengths=None,
                               matmul_dtype=None, block_batch=None):
    # TODO(synk): `lengths` (LengthMask) and dropout>0 are unsupported.
    B, L, D = h.shape
    params = _pack_params(layers, final_norm)

    Bt = block_batch if block_batch is not None else _pick_block_batch(B, L)
    assert B % Bt == 0
    grid = (B // Bt,)

    seq_spec = pl.BlockSpec((Bt, L, D), lambda b: (b, 0, 0))
    out = pl.pallas_call(
        functools.partial(_fused_encoder_kernel,
                          n_layer=cfg["n_layer"],
                          n_head=cfg["n_head"],
                          activation=cfg["activation"],
                          matmul_dtype=matmul_dtype),
        out_shape=jax.ShapeDtypeStruct((B, L, D), h.dtype),
        grid=grid,
        in_specs=[seq_spec] + [_full_spec(p) for p in params],
        out_specs=seq_spec,
        compiler_params=pltpu.CompilerParams(
            dimension_semantics=("parallel",),      # shards grid over 2 TCs (v7x)
            vmem_limit_bytes=32 * 1024 * 1024),
    )(h, *params)
    return out, None


# ------------------------- deterministic init & ref ---------------------------

def _init_linear(key, out_dim, in_dim):
    kw, kb = jax.random.split(key)
    bound = 1.0 / (in_dim ** 0.5)
    w = jax.random.uniform(kw, (out_dim, in_dim), jnp.float32, -bound, bound)
    b = jax.random.uniform(kb, (out_dim,), jnp.float32, -bound, bound)
    return w, b


def init_params(key, cfg):
    D, F = cfg["d_model"], cfg["d_inner"]
    layers = []
    for _ in range(cfg["n_layer"]):
        keys = jax.random.split(key, 7)
        key = keys[0]
        p = {}
        p["wq"], p["bq"] = _init_linear(keys[1], D, D)
        p["wk"], p["bk"] = _init_linear(keys[2], D, D)
        p["wv"], p["bv"] = _init_linear(keys[3], D, D)
        p["wo"], p["bo"] = _init_linear(keys[4], D, D)
        p["w1"], p["b1"] = _init_linear(keys[5], F, D)
        p["w2"], p["b2"] = _init_linear(keys[6], D, F)
        p["ln1_g"] = jnp.ones((D,), jnp.float32)
        p["ln1_b"] = jnp.zeros((D,), jnp.float32)
        p["ln2_g"] = jnp.ones((D,), jnp.float32)
        p["ln2_b"] = jnp.zeros((D,), jnp.float32)
        layers.append(p)
    final = dict(g=jnp.ones((D,), jnp.float32), b=jnp.zeros((D,), jnp.float32))
    return layers, final


def ref_forward(h, layers, final_norm, cfg):
    """Pure-JAX reference for sanity checking the Pallas path."""
    B, L, D = h.shape
    H = cfg["n_head"]
    Dh = D // H
    hp = jax.lax.Precision.HIGHEST

    def lin(x, w, b):
        return jnp.dot(x, w.T, precision=hp) + b

    def ln(x, g, b):
        mu = x.mean(-1, keepdims=True)
        var = ((x - mu) ** 2).mean(-1, keepdims=True)
        return (x - mu) * jax.lax.rsqrt(var + LN_EPS) * g + b

    def elu1(x):
        return jnp.where(x > 0, x + 1.0, jnp.exp(x))

    for p in layers:
        x2 = h.reshape(B * L, D)
        q = lin(x2, p["wq"], p["bq"]).reshape(B, L, H, Dh)
        k = lin(x2, p["wk"], p["bk"]).reshape(B, L, H, Dh)
        v = lin(x2, p["wv"], p["bv"]).reshape(B, L, H, Dh)
        s = jnp.einsum("blhd,bmhd->bhlm", elu1(q), elu1(k), precision=hp)
        s = jnp.where(jnp.tril(jnp.ones((L, L), bool)), s, 0.0)
        z = s.sum(-1) + ATTN_EPS                                  # (B,H,L)
        o = jnp.einsum("bhlm,bmhd->blhd", s, v, precision=hp)
        o = o / z.transpose(0, 2, 1)[..., None]
        o = lin(o.reshape(B * L, D), p["wo"], p["bo"])
        x = x2 + o
        x = ln(x, p["ln1_g"], p["ln1_b"])
        y = jnp.maximum(lin(x, p["w1"], p["b1"]), 0.0)
        y = lin(y, p["w2"], p["b2"])
        x = ln(x + y, p["ln2_g"], p["ln2_b"])
        h = x.reshape(B, L, D)
    return ln(h.reshape(B * L, D), final_norm["g"], final_norm["b"]).reshape(B, L, D)


# ----------------------------------- main -------------------------------------

if __name__ == "__main__":
    key = jax.random.PRNGKey(0)
    k_params, k_input = jax.random.split(key)

    B, L, D = 2, 8, CONFIG["d_model"]
    h = jax.random.normal(k_input, (B, L, D), jnp.float32)
    layers, final_norm = init_params(k_params, CONFIG)

    ref = jax.block_until_ready(ref_forward(h, layers, final_norm, CONFIG))

    # --- f32 MXU path ---
    out, state = linear_transformer_forward(h, layers, final_norm, CONFIG)
    out = jax.block_until_ready(out)
    assert state is None
    assert out.shape == (B, L, D) and out.dtype == jnp.float32
    assert jnp.allclose(out, ref, atol=5e-3, rtol=5e-3), \
        float(jnp.max(jnp.abs(out - ref)))

    # --- bf16-operand / f32-accumulate MXU path (recommended on v6e/v7x) ---
    out_bf, _ = linear_transformer_forward(h, layers, final_norm, CONFIG,
                                           matmul_dtype=jnp.bfloat16)
    out_bf = jax.block_until_ready(out_bf)
    assert out_bf.shape == (B, L, D)
    assert jnp.allclose(out_bf, ref, atol=5e-2, rtol=5e-2), \
        float(jnp.max(jnp.abs(out_bf - ref)))

    print("KERNEL_OK")
</pallas_src>

<mosaic_0001>
module attributes {stable_mosaic.version = 11 : i64} {
  func.func @_fused_encoder_kernel(%arg0: i32, %arg1: memref<2x8x32xf32, #tpu.memory_space<vmem>>, %arg2: memref<2x32x96xf32, #tpu.memory_space<vmem>>, %arg3: memref<2x32x32xf32, #tpu.memory_space<vmem>>, %arg4: memref<2x32x64xf32, #tpu.memory_space<vmem>>, %arg5: memref<2x64x32xf32, #tpu.memory_space<vmem>>, %arg6: memref<2x8x96xf32, #tpu.memory_space<vmem>>, %arg7: memref<2x32xf32, #tpu.memory_space<vmem>>, %arg8: memref<2x8x32xf32, #tpu.memory_space<vmem>>) attributes {dimension_semantics = [#tpu.dimension_semantics<parallel>], iteration_bounds = array<i64: 1>, scalar_prefetch = 0 : i64, scratch_operands = 0 : i64, tpu.core_type = #tpu.core_type<tc>, window_params = [{transform_indices = @transform_0, window_bounds = array<i64: 2, 8, 32>}, {pipeline_mode = #tpu.pipeline_mode<synchronous>, transform_indices = @transform_1, window_bounds = array<i64: 2, 32, 96>}, {pipeline_mode = #tpu.pipeline_mode<synchronous>, transform_indices = @transform_2, window_bounds = array<i64: 2, 32, 32>}, {pipeline_mode = #tpu.pipeline_mode<synchronous>, transform_indices = @transform_3, window_bounds = array<i64: 2, 32, 64>}, {pipeline_mode = #tpu.pipeline_mode<synchronous>, transform_indices = @transform_4, window_bounds = array<i64: 2, 64, 32>}, {pipeline_mode = #tpu.pipeline_mode<synchronous>, transform_indices = @transform_5, window_bounds = array<i64: 2, 8, 96>}, {pipeline_mode = #tpu.pipeline_mode<synchronous>, transform_indices = @transform_6, window_bounds = array<i64: 2, 32>}, {transform_indices = @transform_7, window_bounds = array<i64: 2, 8, 32>}]} {
    %c0 = arith.constant 0 : index
    %c0_0 = arith.constant 0 : index
    %c0_1 = arith.constant 0 : index
    %0 = vector.load %arg1[%c0, %c0_0, %c0_1] : memref<2x8x32xf32, #tpu.memory_space<vmem>>, vector<2x8x32xf32>
    %1 = vector.shape_cast %0 : vector<2x8x32xf32> to vector<16x32xf32>
    %2 = tpu.iota {dimensions = array<i32: 1>} : vector<2x8x8xi32>
    %3 = tpu.iota {dimensions = array<i32: 2>} : vector<2x8x8xi32>
    %4 = arith.cmpi sle, %3, %2 : vector<2x8x8xi32>
    %c0_2 = arith.constant 0 : index
    %c0_3 = arith.constant 0 : index
    %c0_4 = arith.constant 0 : index
    %5 = vector.load %arg2[%c0_2, %c0_3, %c0_4] : memref<2x32x96xf32, #tpu.memory_space<vmem>>, vector<1x32x96xf32>
    %6 = vector.shape_cast %5 : vector<1x32x96xf32> to vector<32x96xf32>
    %c0_5 = arith.constant 0 : index
    %c0_6 = arith.constant 0 : index
    %c0_7 = arith.constant 0 : index
    %7 = vector.load %arg3[%c0_5, %c0_6, %c0_7] : memref<2x32x32xf32, #tpu.memory_space<vmem>>, vector<1x32x32xf32>
    %8 = vector.shape_cast %7 : vector<1x32x32xf32> to vector<32x32xf32>
    %c0_8 = arith.constant 0 : index
    %c0_9 = arith.constant 0 : index
    %c0_10 = arith.constant 0 : index
    %9 = vector.load %arg4[%c0_8, %c0_9, %c0_10] : memref<2x32x64xf32, #tpu.memory_space<vmem>>, vector<1x32x64xf32>
    %10 = vector.shape_cast %9 : vector<1x32x64xf32> to vector<32x64xf32>
    %c0_11 = arith.constant 0 : index
    %c0_12 = arith.constant 0 : index
    %c0_13 = arith.constant 0 : index
    %11 = vector.load %arg5[%c0_11, %c0_12, %c0_13] : memref<2x64x32xf32, #tpu.memory_space<vmem>>, vector<1x64x32xf32>
    %12 = vector.shape_cast %11 : vector<1x64x32xf32> to vector<64x32xf32>
    %c0_14 = arith.constant 0 : index
    %c0_15 = arith.constant 0 : index
    %c0_16 = arith.constant 0 : index
    %13 = vector.load %arg6[%c0_14, %c0_15, %c0_16] : memref<2x8x96xf32, #tpu.memory_space<vmem>>, vector<1x8x96xf32>
    %14 = vector.shape_cast %13 : vector<1x8x96xf32> to vector<8x96xf32>
    %15 = vector.extract_strided_slice %14 {offsets = [0, 0], sizes = [1, 96], strides = [1, 1]} : vector<8x96xf32> to vector<1x96xf32>
    %16 = vector.extract_strided_slice %14 {offsets = [1, 0], sizes = [1, 64], strides = [1, 1]} : vector<8x96xf32> to vector<1x64xf32>
    %17 = vector.extract_strided_slice %14 {offsets = [2, 0], sizes = [1, 32], strides = [1, 1]} : vector<8x96xf32> to vector<1x32xf32>
    %18 = vector.extract_strided_slice %14 {offsets = [3, 0], sizes = [1, 32], strides = [1, 1]} : vector<8x96xf32> to vector<1x32xf32>
    %19 = vector.extract_strided_slice %14 {offsets = [4, 0], sizes = [1, 32], strides = [1, 1]} : vector<8x96xf32> to vector<1x32xf32>
    %20 = vector.extract_strided_slice %14 {offsets = [5, 0], sizes = [1, 32], strides = [1, 1]} : vector<8x96xf32> to vector<1x32xf32>
    %21 = vector.extract_strided_slice %14 {offsets = [6, 0], sizes = [1, 32], strides = [1, 1]} : vector<8x96xf32> to vector<1x32xf32>
    %22 = vector.extract_strided_slice %14 {offsets = [7, 0], sizes = [1, 32], strides = [1, 1]} : vector<8x96xf32> to vector<1x32xf32>
    %cst = arith.constant dense<0.000000e+00> : vector<16x96xf32>
    %23 = tpu.matmul %1, %6, %cst {dimension_numbers = #tpu.dot_dimension_numbers<[1], [0], [0], [1], [0, 0, 1, 1], [], []>} : vector<16x32xf32>, vector<32x96xf32>, vector<16x96xf32> -> vector<16x96xf32>
    %24 = vector.broadcast %15 : vector<1x96xf32> to vector<16x96xf32>
    %25 = arith.addf %23, %24 : vector<16x96xf32>
    %26 = vector.extract_strided_slice %25 {offsets = [0, 0], sizes = [16, 32], strides = [1, 1]} : vector<16x96xf32> to vector<16x32xf32>
    %cst_17 = arith.constant 0.000000e+00 : f32
    %27 = vector.broadcast %cst_17 : f32 to vector<16x32xf32>
    %28 = arith.cmpf ogt, %26, %27 : vector<16x32xf32>
    %cst_18 = arith.constant 1.000000e+00 : f32
    %29 = vector.broadcast %cst_18 : f32 to vector<16x32xf32>
    %30 = arith.addf %26, %29 : vector<16x32xf32>
    %31 = math.exp %26 : vector<16x32xf32>
    %32 = arith.select %28, %30, %31 : vector<16x32xi1>, vector<16x32xf32>
    %33 = vector.shape_cast %32 : vector<16x32xf32> to vector<2x8x32xf32>
    %34 = vector.extract_strided_slice %25 {offsets = [0, 32], sizes = [16, 32], strides = [1, 1]} : vector<16x96xf32> to vector<16x32xf32>
    %cst_19 = arith.constant 0.000000e+00 : f32
    %35 = vector.broadcast %cst_19 : f32 to vector<16x32xf32>
    %36 = arith.cmpf ogt, %34, %35 : vector<16x32xf32>
    %cst_20 = arith.constant 1.000000e+00 : f32
    %37 = vector.broadcast %cst_20 : f32 to vector<16x32xf32>
    %38 = arith.addf %34, %37 : vector<16x32xf32>
    %39 = math.exp %34 : vector<16x32xf32>
    %40 = arith.select %36, %38, %39 : vector<16x32xi1>, vector<16x32xf32>
    %41 = vector.shape_cast %40 : vector<16x32xf32> to vector<2x8x32xf32>
    %42 = vector.extract_strided_slice %25 {offsets = [0, 64], sizes = [16, 32], strides = [1, 1]} : vector<16x96xf32> to vector<16x32xf32>
    %43 = vector.shape_cast %42 : vector<16x32xf32> to vector<2x8x32xf32>
    %44 = vector.extract_strided_slice %33 {offsets = [0, 0, 0], sizes = [2, 8, 8], strides = [1, 1, 1]} : vector<2x8x32xf32> to vector<2x8x8xf32>
    %45 = vector.extract_strided_slice %41 {offsets = [0, 0, 0], sizes = [2, 8, 8], strides = [1, 1, 1]} : vector<2x8x32xf32> to vector<2x8x8xf32>
    "tpu.trace_start"() <{level = 10 : i32, message = "bld,bmd->blm"}> : () -> ()
    %cst_21 = arith.constant dense<0.000000e+00> : vector<2x8x8xf32>
    %46 = tpu.matmul %44, %45, %cst_21 {dimension_numbers = #tpu.dot_dimension_numbers<[2], [2], [1], [1], [0, 0, 0, 1, 1, 1], [0], [0]>} : vector<2x8x8xf32>, vector<2x8x8xf32>, vector<2x8x8xf32> -> vector<2x8x8xf32>
    %cst_22 = arith.constant 0.000000e+00 : f32
    "tpu.trace_stop"() : () -> ()
    %47 = vector.broadcast %cst_22 : f32 to vector<2x8x8xf32>
    %48 = arith.select %4, %46, %47 : vector<2x8x8xi1>, vector<2x8x8xf32>
    %cst_23 = arith.constant dense<0.000000e+00> : vector<2x8xf32>
    %49 = vector.multi_reduction <add>, %48, %cst_23 [2] : vector<2x8x8xf32> to vector<2x8xf32>
    %50 = vector.shape_cast %49 : vector<2x8xf32> to vector<2x8x1xf32>
    %cst_24 = arith.constant 9.99999997E-7 : f32
    %51 = vector.broadcast %cst_24 : f32 to vector<2x8x1xf32>
    %52 = arith.addf %50, %51 : vector<2x8x1xf32>
    %53 = vector.extract_strided_slice %43 {offsets = [0, 0, 0], sizes = [2, 8, 8], strides = [1, 1, 1]} : vector<2x8x32xf32> to vector<2x8x8xf32>
    "tpu.trace_start"() <{level = 10 : i32, message = "blm,bmd->bld"}> : () -> ()
    %cst_25 = arith.constant dense<0.000000e+00> : vector<2x8x8xf32>
    %54 = tpu.matmul %48, %53, %cst_25 {dimension_numbers = #tpu.dot_dimension_numbers<[2], [1], [1], [2], [0, 0, 0, 1, 1, 2], [0], [0]>} : vector<2x8x8xf32>, vector<2x8x8xf32>, vector<2x8x8xf32> -> vector<2x8x8xf32>
    "tpu.trace_stop"() : () -> ()
    %55 = vector.broadcast %52 : vector<2x8x1xf32> to vector<2x8x8xf32>
    %56 = arith.divf %54, %55 : vector<2x8x8xf32>
    %57 = vector.extract_strided_slice %33 {offsets = [0, 0, 8], sizes = [2, 8, 8], strides = [1, 1, 1]} : vector<2x8x32xf32> to vector<2x8x8xf32>
    %58 = vector.extract_strided_slice %41 {offsets = [0, 0, 8], sizes = [2, 8, 8], strides = [1, 1, 1]} : vector<2x8x32xf32> to vector<2x8x8xf32>
    "tpu.trace_start"() <{level = 10 : i32, message = "bld,bmd->blm"}> : () -> ()
    %cst_26 = arith.constant dense<0.000000e+00> : vector<2x8x8xf32>
    %59 = tpu.matmul %57, %58, %cst_26 {dimension_numbers = #tpu.dot_dimension_numbers<[2], [2], [1], [1], [0, 0, 0, 1, 1, 1], [0], [0]>} : vector<2x8x8xf32>, vector<2x8x8xf32>, vector<2x8x8xf32> -> vector<2x8x8xf32>
    %cst_27 = arith.constant 0.000000e+00 : f32
    "tpu.trace_stop"() : () -> ()
    %60 = vector.broadcast %cst_27 : f32 to vector<2x8x8xf32>
    %61 = arith.select %4, %59, %60 : vector<2x8x8xi1>, vector<2x8x8xf32>
    %cst_28 = arith.constant dense<0.000000e+00> : vector<2x8xf32>
    %62 = vector.multi_reduction <add>, %61, %cst_28 [2] : vector<2x8x8xf32> to vector<2x8xf32>
    %63 = vector.shape_cast %62 : vector<2x8xf32> to vector<2x8x1xf32>
    %cst_29 = arith.constant 9.99999997E-7 : f32
    %64 = vector.broadcast %cst_29 : f32 to vector<2x8x1xf32>
    %65 = arith.addf %63, %64 : vector<2x8x1xf32>
    %66 = vector.extract_strided_slice %43 {offsets = [0, 0, 8], sizes = [2, 8, 8], strides = [1, 1, 1]} : vector<2x8x32xf32> to vector<2x8x8xf32>
    "tpu.trace_start"() <{level = 10 : i32, message = "blm,bmd->bld"}> : () -> ()
    %cst_30 = arith.constant dense<0.000000e+00> : vector<2x8x8xf32>
    %67 = tpu.matmul %61, %66, %cst_30 {dimension_numbers = #tpu.dot_dimension_numbers<[2], [1], [1], [2], [0, 0, 0, 1, 1, 2], [0], [0]>} : vector<2x8x8xf32>, vector<2x8x8xf32>, vector<2x8x8xf32> -> vector<2x8x8xf32>
    "tpu.trace_stop"() : () -> ()
    %68 = vector.broadcast %65 : vector<2x8x1xf32> to vector<2x8x8xf32>
    %69 = arith.divf %67, %68 : vector<2x8x8xf32>
    %70 = vector.extract_strided_slice %33 {offsets = [0, 0, 16], sizes = [2, 8, 8], strides = [1, 1, 1]} : vector<2x8x32xf32> to vector<2x8x8xf32>
    %71 = vector.extract_strided_slice %41 {offsets = [0, 0, 16], sizes = [2, 8, 8], strides = [1, 1, 1]} : vector<2x8x32xf32> to vector<2x8x8xf32>
    "tpu.trace_start"() <{level = 10 : i32, message = "bld,bmd->blm"}> : () -> ()
    %cst_31 = arith.constant dense<0.000000e+00> : vector<2x8x8xf32>
    %72 = tpu.matmul %70, %71, %cst_31 {dimension_numbers = #tpu.dot_dimension_numbers<[2], [2], [1], [1], [0, 0, 0, 1, 1, 1], [0], [0]>} : vector<2x8x8xf32>, vector<2x8x8xf32>, vector<2x8x8xf32> -> vector<2x8x8xf32>
    %cst_32 = arith.constant 0.000000e+00 : f32
    "tpu.trace_stop"() : () -> ()
    %73 = vector.broadcast %cst_32 : f32 to vector<2x8x8xf32>
    %74 = arith.select %4, %72, %73 : vector<2x8x8xi1>, vector<2x8x8xf32>
    %cst_33 = arith.constant dense<0.000000e+00> : vector<2x8xf32>
    %75 = vector.multi_reduction <add>, %74, %cst_33 [2] : vector<2x8x8xf32> to vector<2x8xf32>
    %76 = vector.shape_cast %75 : vector<2x8xf32> to vector<2x8x1xf32>
    %cst_34 = arith.constant 9.99999997E-7 : f32
    %77 = vector.broadcast %cst_34 : f32 to vector<2x8x1xf32>
    %78 = arith.addf %76, %77 : vector<2x8x1xf32>
    %79 = vector.extract_strided_slice %43 {offsets = [0, 0, 16], sizes = [2, 8, 8], strides = [1, 1, 1]} : vector<2x8x32xf32> to vector<2x8x8xf32>
    "tpu.trace_start"() <{level = 10 : i32, message = "blm,bmd->bld"}> : () -> ()
    %cst_35 = arith.constant dense<0.000000e+00> : vector<2x8x8xf32>
    %80 = tpu.matmul %74, %79, %cst_35 {dimension_numbers = #tpu.dot_dimension_numbers<[2], [1], [1], [2], [0, 0, 0, 1, 1, 2], [0], [0]>} : vector<2x8x8xf32>, vector<2x8x8xf32>, vector<2x8x8xf32> -> vector<2x8x8xf32>
    "tpu.trace_stop"() : () -> ()
    %81 = vector.broadcast %78 : vector<2x8x1xf32> to vector<2x8x8xf32>
    %82 = arith.divf %80, %81 : vector<2x8x8xf32>
    %83 = vector.extract_strided_slice %33 {offsets = [0, 0, 24], sizes = [2, 8, 8], strides = [1, 1, 1]} : vector<2x8x32xf32> to vector<2x8x8xf32>
    %84 = vector.extract_strided_slice %41 {offsets = [0, 0, 24], sizes = [2, 8, 8], strides = [1, 1, 1]} : vector<2x8x32xf32> to vector<2x8x8xf32>
    "tpu.trace_start"() <{level = 10 : i32, message = "bld,bmd->blm"}> : () -> ()
    %cst_36 = arith.constant dense<0.000000e+00> : vector<2x8x8xf32>
    %85 = tpu.matmul %83, %84, %cst_36 {dimension_numbers = #tpu.dot_dimension_numbers<[2], [2], [1], [1], [0, 0, 0, 1, 1, 1], [0], [0]>} : vector<2x8x8xf32>, vector<2x8x8xf32>, vector<2x8x8xf32> -> vector<2x8x8xf32>
    %cst_37 = arith.constant 0.000000e+00 : f32
    "tpu.trace_stop"() : () -> ()
    %86 = vector.broadcast %cst_37 : f32 to vector<2x8x8xf32>
    %87 = arith.select %4, %85, %86 : vector<2x8x8xi1>, vector<2x8x8xf32>
    %cst_38 = arith.constant dense<0.000000e+00> : vector<2x8xf32>
    %88 = vector.multi_reduction <add>, %87, %cst_38 [2] : vector<2x8x8xf32> to vector<2x8xf32>
    %89 = vector.shape_cast %88 : vector<2x8xf32> to vector<2x8x1xf32>
    %cst_39 = arith.constant 9.99999997E-7 : f32
    %90 = vector.broadcast %cst_39 : f32 to vector<2x8x1xf32>
    %91 = arith.addf %89, %90 : vector<2x8x1xf32>
    %92 = vector.extract_strided_slice %43 {offsets = [0, 0, 24], sizes = [2, 8, 8], strides = [1, 1, 1]} : vector<2x8x32xf32> to vector<2x8x8xf32>
    "tpu.trace_start"() <{level = 10 : i32, message = "blm,bmd->bld"}> : () -> ()
    %cst_40 = arith.constant dense<0.000000e+00> : vector<2x8x8xf32>
    %93 = tpu.matmul %87, %92, %cst_40 {dimension_numbers = #tpu.dot_dimension_numbers<[2], [1], [1], [2], [0, 0, 0, 1, 1, 2], [0], [0]>} : vector<2x8x8xf32>, vector<2x8x8xf32>, vector<2x8x8xf32> -> vector<2x8x8xf32>
    "tpu.trace_stop"() : () -> ()
    %94 = vector.broadcast %91 : vector<2x8x1xf32> to vector<2x8x8xf32>
    %95 = arith.divf %93, %94 : vector<2x8x8xf32>
    %96 = tpu.concatenate %56, %69, %82, %95 in 2 : vector<2x8x8xf32>, vector<2x8x8xf32>, vector<2x8x8xf32>, vector<2x8x8xf32> -> vector<2x8x32xf32>
    %97 = vector.shape_cast %96 : vector<2x8x32xf32> to vector<16x32xf32>
    %cst_41 = arith.constant dense<0.000000e+00> : vector<16x32xf32>
    %98 = tpu.matmul %97, %8, %cst_41 {dimension_numbers = #tpu.dot_dimension_numbers<[1], [0], [0], [1], [0, 0, 1, 1], [], []>} : vector<16x32xf32>, vector<32x32xf32>, vector<16x32xf32> -> vector<16x32xf32>
    %99 = arith.addf %1, %98 : vector<16x32xf32>
    %100 = vector.broadcast %17 : vector<1x32xf32> to vector<16x32xf32>
    %101 = arith.addf %99, %100 : vector<16x32xf32>
    %cst_42 = arith.constant dense<0.000000e+00> : vector<16xf32>
    %102 = vector.multi_reduction <add>, %101, %cst_42 [1] : vector<16x32xf32> to vector<16xf32>
    %103 = vector.shape_cast %102 : vector<16xf32> to vector<16x1xf32>
    %cst_43 = arith.constant 3.200000e+01 : f32
    %104 = vector.broadcast %cst_43 : f32 to vector<16x1xf32>
    %105 = arith.divf %103, %104 : vector<16x1xf32>
    %106 = vector.broadcast %105 : vector<16x1xf32> to vector<16x32xf32>
    %107 = arith.subf %101, %106 : vector<16x32xf32>
    %108 = arith.mulf %107, %107 : vector<16x32xf32>
    %cst_44 = arith.constant dense<0.000000e+00> : vector<16xf32>
    %109 = vector.multi_reduction <add>, %108, %cst_44 [1] : vector<16x32xf32> to vector<16xf32>
    %110 = vector.shape_cast %109 : vector<16xf32> to vector<16x1xf32>
    %cst_45 = arith.constant 3.200000e+01 : f32
    %111 = vector.broadcast %cst_45 : f32 to vector<16x1xf32>
    %112 = arith.divf %110, %111 : vector<16x1xf32>
    %cst_46 = arith.constant 9.99999974E-6 : f32
    %113 = vector.broadcast %cst_46 : f32 to vector<16x1xf32>
    %114 = arith.addf %112, %113 : vector<16x1xf32>
    %115 = math.rsqrt %114 : vector<16x1xf32>
    %116 = vector.broadcast %115 : vector<16x1xf32> to vector<16x32xf32>
    %117 = arith.mulf %107, %116 : vector<16x32xf32>
    %118 = vector.broadcast %18 : vector<1x32xf32> to vector<16x32xf32>
    %119 = arith.mulf %117, %118 : vector<16x32xf32>
    %120 = vector.broadcast %19 : vector<1x32xf32> to vector<16x32xf32>
    %121 = arith.addf %119, %120 : vector<16x32xf32>
    %cst_47 = arith.constant dense<0.000000e+00> : vector<16x64xf32>
    %122 = tpu.matmul %121, %10, %cst_47 {dimension_numbers = #tpu.dot_dimension_numbers<[1], [0], [0], [1], [0, 0, 1, 1], [], []>} : vector<16x32xf32>, vector<32x64xf32>, vector<16x64xf32> -> vector<16x64xf32>
    %123 = vector.broadcast %16 : vector<1x64xf32> to vector<16x64xf32>
    %124 = arith.addf %122, %123 : vector<16x64xf32>
    %cst_48 = arith.constant 0.000000e+00 : f32
    %125 = vector.broadcast %cst_48 : f32 to vector<16x64xf32>
    %126 = arith.maximumf %124, %125 : vector<16x64xf32>
    %cst_49 = arith.constant dense<0.000000e+00> : vector<16x32xf32>
    %127 = tpu.matmul %126, %12, %cst_49 {dimension_numbers = #tpu.dot_dimension_numbers<[1], [0], [0], [1], [0, 0, 1, 1], [], []>} : vector<16x64xf32>, vector<64x32xf32>, vector<16x32xf32> -> vector<16x32xf32>
    %128 = vector.broadcast %20 : vector<1x32xf32> to vector<16x32xf32>
    %129 = arith.addf %127, %128 : vector<16x32xf32>
    %130 = arith.addf %121, %129 : vector<16x32xf32>
    %cst_50 = arith.constant dense<0.000000e+00> : vector<16xf32>
    %131 = vector.multi_reduction <add>, %130, %cst_50 [1] : vector<16x32xf32> to vector<16xf32>
    %132 = vector.shape_cast %131 : vector<16xf32> to vector<16x1xf32>
    %cst_51 = arith.constant 3.200000e+01 : f32
    %133 = vector.broadcast %cst_51 : f32 to vector<16x1xf32>
    %134 = arith.divf %132, %133 : vector<16x1xf32>
    %135 = vector.broadcast %134 : vector<16x1xf32> to vector<16x32xf32>
    %136 = arith.subf %130, %135 : vector<16x32xf32>
    %137 = arith.mulf %136, %136 : vector<16x32xf32>
    %cst_52 = arith.constant dense<0.000000e+00> : vector<16xf32>
    %138 = vector.multi_reduction <add>, %137, %cst_52 [1] : vector<16x32xf32> to vector<16xf32>
    %139 = vector.shape_cast %138 : vector<16xf32> to vector<16x1xf32>
    %cst_53 = arith.constant 3.200000e+01 : f32
    %140 = vector.broadcast %cst_53 : f32 to vector<16x1xf32>
    %141 = arith.divf %139, %140 : vector<16x1xf32>
    %cst_54 = arith.constant 9.99999974E-6 : f32
    %142 = vector.broadcast %cst_54 : f32 to vector<16x1xf32>
    %143 = arith.addf %141, %142 : vector<16x1xf32>
    %144 = math.rsqrt %143 : vector<16x1xf32>
    %145 = vector.broadcast %144 : vector<16x1xf32> to vector<16x32xf32>
    %146 = arith.mulf %136, %145 : vector<16x32xf32>
    %147 = vector.broadcast %21 : vector<1x32xf32> to vector<16x32xf32>
    %148 = arith.mulf %146, %147 : vector<16x32xf32>
    %149 = vector.broadcast %22 : vector<1x32xf32> to vector<16x32xf32>
    %150 = arith.addf %148, %149 : vector<16x32xf32>
    %c1 = arith.constant 1 : index
    %c0_55 = arith.constant 0 : index
    %c0_56 = arith.constant 0 : index
    %151 = vector.load %arg2[%c1, %c0_55, %c0_56] : memref<2x32x96xf32, #tpu.memory_space<vmem>>, vector<1x32x96xf32>
    %152 = vector.shape_cast %151 : vector<1x32x96xf32> to vector<32x96xf32>
    %c1_57 = arith.constant 1 : index
    %c0_58 = arith.constant 0 : index
    %c0_59 = arith.constant 0 : index
    %153 = vector.load %arg3[%c1_57, %c0_58, %c0_59] : memref<2x32x32xf32, #tpu.memory_space<vmem>>, vector<1x32x32xf32>
    %154 = vector.shape_cast %153 : vector<1x32x32xf32> to vector<32x32xf32>
    %c1_60 = arith.constant 1 : index
    %c0_61 = arith.constant 0 : index
    %c0_62 = arith.constant 0 : index
    %155 = vector.load %arg4[%c1_60, %c0_61, %c0_62] : memref<2x32x64xf32, #tpu.memory_space<vmem>>, vector<1x32x64xf32>
    %156 = vector.shape_cast %155 : vector<1x32x64xf32> to vector<32x64xf32>
    %c1_63 = arith.constant 1 : index
    %c0_64 = arith.constant 0 : index
    %c0_65 = arith.constant 0 : index
    %157 = vector.load %arg5[%c1_63, %c0_64, %c0_65] : memref<2x64x32xf32, #tpu.memory_space<vmem>>, vector<1x64x32xf32>
    %158 = vector.shape_cast %157 : vector<1x64x32xf32> to vector<64x32xf32>
    %c1_66 = arith.constant 1 : index
    %c0_67 = arith.constant 0 : index
    %c0_68 = arith.constant 0 : index
    %159 = vector.load %arg6[%c1_66, %c0_67, %c0_68] : memref<2x8x96xf32, #tpu.memory_space<vmem>>, vector<1x8x96xf32>
    %160 = vector.shape_cast %159 : vector<1x8x96xf32> to vector<8x96xf32>
    %161 = vector.extract_strided_slice %160 {offsets = [0, 0], sizes = [1, 96], strides = [1, 1]} : vector<8x96xf32> to vector<1x96xf32>
    %162 = vector.extract_strided_slice %160 {offsets = [1, 0], sizes = [1, 64], strides = [1, 1]} : vector<8x96xf32> to vector<1x64xf32>
    %163 = vector.extract_strided_slice %160 {offsets = [2, 0], sizes = [1, 32], strides = [1, 1]} : vector<8x96xf32> to vector<1x32xf32>
    %164 = vector.extract_strided_slice %160 {offsets = [3, 0], sizes = [1, 32], strides = [1, 1]} : vector<8x96xf32> to vector<1x32xf32>
    %165 = vector.extract_strided_slice %160 {offsets = [4, 0], sizes = [1, 32], strides = [1, 1]} : vector<8x96xf32> to vector<1x32xf32>
    %166 = vector.extract_strided_slice %160 {offsets = [5, 0], sizes = [1, 32], strides = [1, 1]} : vector<8x96xf32> to vector<1x32xf32>
    %167 = vector.extract_strided_slice %160 {offsets = [6, 0], sizes = [1, 32], strides = [1, 1]} : vector<8x96xf32> to vector<1x32xf32>
    %168 = vector.extract_strided_slice %160 {offsets = [7, 0], sizes = [1, 32], strides = [1, 1]} : vector<8x96xf32> to vector<1x32xf32>
    %cst_69 = arith.constant dense<0.000000e+00> : vector<16x96xf32>
    %169 = tpu.matmul %150, %152, %cst_69 {dimension_numbers = #tpu.dot_dimension_numbers<[1], [0], [0], [1], [0, 0, 1, 1], [], []>} : vector<16x32xf32>, vector<32x96xf32>, vector<16x96xf32> -> vector<16x96xf32>
    %170 = vector.broadcast %161 : vector<1x96xf32> to vector<16x96xf32>
    %171 = arith.addf %169, %170 : vector<16x96xf32>
    %172 = vector.extract_strided_slice %171 {offsets = [0, 0], sizes = [16, 32], strides = [1, 1]} : vector<16x96xf32> to vector<16x32xf32>
    %cst_70 = arith.constant 0.000000e+00 : f32
    %173 = vector.broadcast %cst_70 : f32 to vector<16x32xf32>
    %174 = arith.cmpf ogt, %172, %173 : vector<16x32xf32>
    %cst_71 = arith.constant 1.000000e+00 : f32
    %175 = vector.broadcast %cst_71 : f32 to vector<16x32xf32>
    %176 = arith.addf %172, %175 : vector<16x32xf32>
    %177 = math.exp %172 : vector<16x32xf32>
    %178 = arith.select %174, %176, %177 : vector<16x32xi1>, vector<16x32xf32>
    %179 = vector.shape_cast %178 : vector<16x32xf32> to vector<2x8x32xf32>
    %180 = vector.extract_strided_slice %171 {offsets = [0, 32], sizes = [16, 32], strides = [1, 1]} : vector<16x96xf32> to vector<16x32xf32>
    %cst_72 = arith.constant 0.000000e+00 : f32
    %181 = vector.broadcast %cst_72 : f32 to vector<16x32xf32>
    %182 = arith.cmpf ogt, %180, %181 : vector<16x32xf32>
    %cst_73 = arith.constant 1.000000e+00 : f32
    %183 = vector.broadcast %cst_73 : f32 to vector<16x32xf32>
    %184 = arith.addf %180, %183 : vector<16x32xf32>
    %185 = math.exp %180 : vector<16x32xf32>
    %186 = arith.select %182, %184, %185 : vector<16x32xi1>, vector<16x32xf32>
    %187 = vector.shape_cast %186 : vector<16x32xf32> to vector<2x8x32xf32>
    %188 = vector.extract_strided_slice %171 {offsets = [0, 64], sizes = [16, 32], strides = [1, 1]} : vector<16x96xf32> to vector<16x32xf32>
    %189 = vector.shape_cast %188 : vector<16x32xf32> to vector<2x8x32xf32>
    %190 = vector.extract_strided_slice %179 {offsets = [0, 0, 0], sizes = [2, 8, 8], strides = [1, 1, 1]} : vector<2x8x32xf32> to vector<2x8x8xf32>
    %191 = vector.extract_strided_slice %187 {offsets = [0, 0, 0], sizes = [2, 8, 8], strides = [1, 1, 1]} : vector<2x8x32xf32> to vector<2x8x8xf32>
    "tpu.trace_start"() <{level = 10 : i32, message = "bld,bmd->blm"}> : () -> ()
    %cst_74 = arith.constant dense<0.000000e+00> : vector<2x8x8xf32>
    %192 = tpu.matmul %190, %191, %cst_74 {dimension_numbers = #tpu.dot_dimension_numbers<[2], [2], [1], [1], [0, 0, 0, 1, 1, 1], [0], [0]>} : vector<2x8x8xf32>, vector<2x8x8xf32>, vector<2x8x8xf32> -> vector<2x8x8xf32>
    %cst_75 = arith.constant 0.000000e+00 : f32
    "tpu.trace_stop"() : () -> ()
    %193 = vector.broadcast %cst_75 : f32 to vector<2x8x8xf32>
    %194 = arith.select %4, %192, %193 : vector<2x8x8xi1>, vector<2x8x8xf32>
    %cst_76 = arith.constant dense<0.000000e+00> : vector<2x8xf32>
    %195 = vector.multi_reduction <add>, %194, %cst_76 [2] : vector<2x8x8xf32> to vector<2x8xf32>
    %196 = vector.shape_cast %195 : vector<2x8xf32> to vector<2x8x1xf32>
    %cst_77 = arith.constant 9.99999997E-7 : f32
    %197 = vector.broadcast %cst_77 : f32 to vector<2x8x1xf32>
    %198 = arith.addf %196, %197 : vector<2x8x1xf32>
    %199 = vector.extract_strided_slice %189 {offsets = [0, 0, 0], sizes = [2, 8, 8], strides = [1, 1, 1]} : vector<2x8x32xf32> to vector<2x8x8xf32>
    "tpu.trace_start"() <{level = 10 : i32, message = "blm,bmd->bld"}> : () -> ()
    %cst_78 = arith.constant dense<0.000000e+00> : vector<2x8x8xf32>
    %200 = tpu.matmul %194, %199, %cst_78 {dimension_numbers = #tpu.dot_dimension_numbers<[2], [1], [1], [2], [0, 0, 0, 1, 1, 2], [0], [0]>} : vector<2x8x8xf32>, vector<2x8x8xf32>, vector<2x8x8xf32> -> vector<2x8x8xf32>
    "tpu.trace_stop"() : () -> ()
    %201 = vector.broadcast %198 : vector<2x8x1xf32> to vector<2x8x8xf32>
    %202 = arith.divf %200, %201 : vector<2x8x8xf32>
    %203 = vector.extract_strided_slice %179 {offsets = [0, 0, 8], sizes = [2, 8, 8], strides = [1, 1, 1]} : vector<2x8x32xf32> to vector<2x8x8xf32>
    %204 = vector.extract_strided_slice %187 {offsets = [0, 0, 8], sizes = [2, 8, 8], strides = [1, 1, 1]} : vector<2x8x32xf32> to vector<2x8x8xf32>
    "tpu.trace_start"() <{level = 10 : i32, message = "bld,bmd->blm"}> : () -> ()
    %cst_79 = arith.constant dense<0.000000e+00> : vector<2x8x8xf32>
    %205 = tpu.matmul %203, %204, %cst_79 {dimension_numbers = #tpu.dot_dimension_numbers<[2], [2], [1], [1], [0, 0, 0, 1, 1, 1], [0], [0]>} : vector<2x8x8xf32>, vector<2x8x8xf32>, vector<2x8x8xf32> -> vector<2x8x8xf32>
    %cst_80 = arith.constant 0.000000e+00 : f32
    "tpu.trace_stop"() : () -> ()
    %206 = vector.broadcast %cst_80 : f32 to vector<2x8x8xf32>
    %207 = arith.select %4, %205, %206 : vector<2x8x8xi1>, vector<2x8x8xf32>
    %cst_81 = arith.constant dense<0.000000e+00> : vector<2x8xf32>
    %208 = vector.multi_reduction <add>, %207, %cst_81 [2] : vector<2x8x8xf32> to vector<2x8xf32>
    %209 = vector.shape_cast %208 : vector<2x8xf32> to vector<2x8x1xf32>
    %cst_82 = arith.constant 9.99999997E-7 : f32
    %210 = vector.broadcast %cst_82 : f32 to vector<2x8x1xf32>
    %211 = arith.addf %209, %210 : vector<2x8x1xf32>
    %212 = vector.extract_strided_slice %189 {offsets = [0, 0, 8], sizes = [2, 8, 8], strides = [1, 1, 1]} : vector<2x8x32xf32> to vector<2x8x8xf32>
    "tpu.trace_start"() <{level = 10 : i32, message = "blm,bmd->bld"}> : () -> ()
    %cst_83 = arith.constant dense<0.000000e+00> : vector<2x8x8xf32>
    %213 = tpu.matmul %207, %212, %cst_83 {dimension_numbers = #tpu.dot_dimension_numbers<[2], [1], [1], [2], [0, 0, 0, 1, 1, 2], [0], [0]>} : vector<2x8x8xf32>, vector<2x8x8xf32>, vector<2x8x8xf32> -> vector<2x8x8xf32>
    "tpu.trace_stop"() : () -> ()
    %214 = vector.broadcast %211 : vector<2x8x1xf32> to vector<2x8x8xf32>
    %215 = arith.divf %213, %214 : vector<2x8x8xf32>
    %216 = vector.extract_strided_slice %179 {offsets = [0, 0, 16], sizes = [2, 8, 8], strides = [1, 1, 1]} : vector<2x8x32xf32> to vector<2x8x8xf32>
    %217 = vector.extract_strided_slice %187 {offsets = [0, 0, 16], sizes = [2, 8, 8], strides = [1, 1, 1]} : vector<2x8x32xf32> to vector<2x8x8xf32>
    "tpu.trace_start"() <{level = 10 : i32, message = "bld,bmd->blm"}> : () -> ()
    %cst_84 = arith.constant dense<0.000000e+00> : vector<2x8x8xf32>
    %218 = tpu.matmul %216, %217, %cst_84 {dimension_numbers = #tpu.dot_dimension_numbers<[2], [2], [1], [1], [0, 0, 0, 1, 1, 1], [0], [0]>} : vector<2x8x8xf32>, vector<2x8x8xf32>, vector<2x8x8xf32> -> vector<2x8x8xf32>
    %cst_85 = arith.constant 0.000000e+00 : f32
    "tpu.trace_stop"() : () -> ()
    %219 = vector.broadcast %cst_85 : f32 to vector<2x8x8xf32>
    %220 = arith.select %4, %218, %219 : vector<2x8x8xi1>, vector<2x8x8xf32>
    %cst_86 = arith.constant dense<0.000000e+00> : vector<2x8xf32>
    %221 = vector.multi_reduction <add>, %220, %cst_86 [2] : vector<2x8x8xf32> to vector<2x8xf32>
    %222 = vector.shape_cast %221 : vector<2x8xf32> to vector<2x8x1xf32>
    %cst_87 = arith.constant 9.99999997E-7 : f32
    %223 = vector.broadcast %cst_87 : f32 to vector<2x8x1xf32>
    %224 = arith.addf %222, %223 : vector<2x8x1xf32>
    %225 = vector.extract_strided_slice %189 {offsets = [0, 0, 16], sizes = [2, 8, 8], strides = [1, 1, 1]} : vector<2x8x32xf32> to vector<2x8x8xf32>
    "tpu.trace_start"() <{level = 10 : i32, message = "blm,bmd->bld"}> : () -> ()
    %cst_88 = arith.constant dense<0.000000e+00> : vector<2x8x8xf32>
    %226 = tpu.matmul %220, %225, %cst_88 {dimension_numbers = #tpu.dot_dimension_numbers<[2], [1], [1], [2], [0, 0, 0, 1, 1, 2], [0], [0]>} : vector<2x8x8xf32>, vector<2x8x8xf32>, vector<2x8x8xf32> -> vector<2x8x8xf32>
    "tpu.trace_stop"() : () -> ()
    %227 = vector.broadcast %224 : vector<2x8x1xf32> to vector<2x8x8xf32>
    %228 = arith.divf %226, %227 : vector<2x8x8xf32>
    %229 = vector.extract_strided_slice %179 {offsets = [0, 0, 24], sizes = [2, 8, 8], strides = [1, 1, 1]} : vector<2x8x32xf32> to vector<2x8x8xf32>
    %230 = vector.extract_strided_slice %187 {offsets = [0, 0, 24], sizes = [2, 8, 8], strides = [1, 1, 1]} : vector<2x8x32xf32> to vector<2x8x8xf32>
    "tpu.trace_start"() <{level = 10 : i32, message = "bld,bmd->blm"}> : () -> ()
    %cst_89 = arith.constant dense<0.000000e+00> : vector<2x8x8xf32>
    %231 = tpu.matmul %229, %230, %cst_89 {dimension_numbers = #tpu.dot_dimension_numbers<[2], [2], [1], [1], [0, 0, 0, 1, 1, 1], [0], [0]>} : vector<2x8x8xf32>, vector<2x8x8xf32>, vector<2x8x8xf32> -> vector<2x8x8xf32>
    %cst_90 = arith.constant 0.000000e+00 : f32
    "tpu.trace_stop"() : () -> ()
    %232 = vector.broadcast %cst_90 : f32 to vector<2x8x8xf32>
    %233 = arith.select %4, %231, %232 : vector<2x8x8xi1>, vector<2x8x8xf32>
    %cst_91 = arith.constant dense<0.000000e+00> : vector<2x8xf32>
    %234 = vector.multi_reduction <add>, %233, %cst_91 [2] : vector<2x8x8xf32> to vector<2x8xf32>
    %235 = vector.shape_cast %234 : vector<2x8xf32> to vector<2x8x1xf32>
    %cst_92 = arith.constant 9.99999997E-7 : f32
    %236 = vector.broadcast %cst_92 : f32 to vector<2x8x1xf32>
    %237 = arith.addf %235, %236 : vector<2x8x1xf32>
    %238 = vector.extract_strided_slice %189 {offsets = [0, 0, 24], sizes = [2, 8, 8], strides = [1, 1, 1]} : vector<2x8x32xf32> to vector<2x8x8xf32>
    "tpu.trace_start"() <{level = 10 : i32, message = "blm,bmd->bld"}> : () -> ()
    %cst_93 = arith.constant dense<0.000000e+00> : vector<2x8x8xf32>
    %239 = tpu.matmul %233, %238, %cst_93 {dimension_numbers = #tpu.dot_dimension_numbers<[2], [1], [1], [2], [0, 0, 0, 1, 1, 2], [0], [0]>} : vector<2x8x8xf32>, vector<2x8x8xf32>, vector<2x8x8xf32> -> vector<2x8x8xf32>
    "tpu.trace_stop"() : () -> ()
    %240 = vector.broadcast %237 : vector<2x8x1xf32> to vector<2x8x8xf32>
    %241 = arith.divf %239, %240 : vector<2x8x8xf32>
    %242 = tpu.concatenate %202, %215, %228, %241 in 2 : vector<2x8x8xf32>, vector<2x8x8xf32>, vector<2x8x8xf32>, vector<2x8x8xf32> -> vector<2x8x32xf32>
    %243 = vector.shape_cast %242 : vector<2x8x32xf32> to vector<16x32xf32>
    %cst_94 = arith.constant dense<0.000000e+00> : vector<16x32xf32>
    %244 = tpu.matmul %243, %154, %cst_94 {dimension_numbers = #tpu.dot_dimension_numbers<[1], [0], [0], [1], [0, 0, 1, 1], [], []>} : vector<16x32xf32>, vector<32x32xf32>, vector<16x32xf32> -> vector<16x32xf32>
    %245 = arith.addf %150, %244 : vector<16x32xf32>
    %246 = vector.broadcast %163 : vector<1x32xf32> to vector<16x32xf32>
    %247 = arith.addf %245, %246 : vector<16x32xf32>
    %cst_95 = arith.constant dense<0.000000e+00> : vector<16xf32>
    %248 = vector.multi_reduction <add>, %247, %cst_95 [1] : vector<16x32xf32> to vector<16xf32>
    %249 = vector.shape_cast %248 : vector<16xf32> to vector<16x1xf32>
    %cst_96 = arith.constant 3.200000e+01 : f32
    %250 = vector.broadcast %cst_96 : f32 to vector<16x1xf32>
    %251 = arith.divf %249, %250 : vector<16x1xf32>
    %252 = vector.broadcast %251 : vector<16x1xf32> to vector<16x32xf32>
    %253 = arith.subf %247, %252 : vector<16x32xf32>
    %254 = arith.mulf %253, %253 : vector<16x32xf32>
    %cst_97 = arith.constant dense<0.000000e+00> : vector<16xf32>
    %255 = vector.multi_reduction <add>, %254, %cst_97 [1] : vector<16x32xf32> to vector<16xf32>
    %256 = vector.shape_cast %255 : vector<16xf32> to vector<16x1xf32>
    %cst_98 = arith.constant 3.200000e+01 : f32
    %257 = vector.broadcast %cst_98 : f32 to vector<16x1xf32>
    %258 = arith.divf %256, %257 : vector<16x1xf32>
    %cst_99 = arith.constant 9.99999974E-6 : f32
    %259 = vector.broadcast %cst_99 : f32 to vector<16x1xf32>
    %260 = arith.addf %258, %259 : vector<16x1xf32>
    %261 = math.rsqrt %260 : vector<16x1xf32>
    %262 = vector.broadcast %261 : vector<16x1xf32> to vector<16x32xf32>
    %263 = arith.mulf %253, %262 : vector<16x32xf32>
    %264 = vector.broadcast %164 : vector<1x32xf32> to vector<16x32xf32>
    %265 = arith.mulf %263, %264 : vector<16x32xf32>
    %266 = vector.broadcast %165 : vector<1x32xf32> to vector<16x32xf32>
    %267 = arith.addf %265, %266 : vector<16x32xf32>
    %cst_100 = arith.constant dense<0.000000e+00> : vector<16x64xf32>
    %268 = tpu.matmul %267, %156, %cst_100 {dimension_numbers = #tpu.dot_dimension_numbers<[1], [0], [0], [1], [0, 0, 1, 1], [], []>} : vector<16x32xf32>, vector<32x64xf32>, vector<16x64xf32> -> vector<16x64xf32>
    %269 = vector.broadcast %162 : vector<1x64xf32> to vector<16x64xf32>
    %270 = arith.addf %268, %269 : vector<16x64xf32>
    %cst_101 = arith.constant 0.000000e+00 : f32
    %271 = vector.broadcast %cst_101 : f32 to vector<16x64xf32>
    %272 = arith.maximumf %270, %271 : vector<16x64xf32>
    %cst_102 = arith.constant dense<0.000000e+00> : vector<16x32xf32>
    %273 = tpu.matmul %272, %158, %cst_102 {dimension_numbers = #tpu.dot_dimension_numbers<[1], [0], [0], [1], [0, 0, 1, 1], [], []>} : vector<16x64xf32>, vector<64x32xf32>, vector<16x32xf32> -> vector<16x32xf32>
    %274 = vector.broadcast %166 : vector<1x32xf32> to vector<16x32xf32>
    %275 = arith.addf %273, %274 : vector<16x32xf32>
    %276 = arith.addf %267, %275 : vector<16x32xf32>
    %cst_103 = arith.constant dense<0.000000e+00> : vector<16xf32>
    %277 = vector.multi_reduction <add>, %276, %cst_103 [1] : vector<16x32xf32> to vector<16xf32>
    %278 = vector.shape_cast %277 : vector<16xf32> to vector<16x1xf32>
    %cst_104 = arith.constant 3.200000e+01 : f32
    %279 = vector.broadcast %cst_104 : f32 to vector<16x1xf32>
    %280 = arith.divf %278, %279 : vector<16x1xf32>
    %281 = vector.broadcast %280 : vector<16x1xf32> to vector<16x32xf32>
    %282 = arith.subf %276, %281 : vector<16x32xf32>
    %283 = arith.mulf %282, %282 : vector<16x32xf32>
    %cst_105 = arith.constant dense<0.000000e+00> : vector<16xf32>
    %284 = vector.multi_reduction <add>, %283, %cst_105 [1] : vector<16x32xf32> to vector<16xf32>
    %285 = vector.shape_cast %284 : vector<16xf32> to vector<16x1xf32>
    %cst_106 = arith.constant 3.200000e+01 : f32
    %286 = vector.broadcast %cst_106 : f32 to vector<16x1xf32>
    %287 = arith.divf %285, %286 : vector<16x1xf32>
    %cst_107 = arith.constant 9.99999974E-6 : f32
    %288 = vector.broadcast %cst_107 : f32 to vector<16x1xf32>
    %289 = arith.addf %287, %288 : vector<16x1xf32>
    %290 = math.rsqrt %289 : vector<16x1xf32>
    %291 = vector.broadcast %290 : vector<16x1xf32> to vector<16x32xf32>
    %292 = arith.mulf %282, %291 : vector<16x32xf32>
    %293 = vector.broadcast %167 : vector<1x32xf32> to vector<16x32xf32>
    %294 = arith.mulf %292, %293 : vector<16x32xf32>
    %295 = vector.broadcast %168 : vector<1x32xf32> to vector<16x32xf32>
    %296 = arith.addf %294, %295 : vector<16x32xf32>
    %c0_108 = arith.constant 0 : index
    %c0_109 = arith.constant 0 : index
    %297 = vector.load %arg7[%c0_108, %c0_109] : memref<2x32xf32, #tpu.memory_space<vmem>>, vector<1x32xf32>
    %c1_110 = arith.constant 1 : index
    %c0_111 = arith.constant 0 : index
    %298 = vector.load %arg7[%c1_110, %c0_111] : memref<2x32xf32, #tpu.memory_space<vmem>>, vector<1x32xf32>
    %cst_112 = arith.constant dense<0.000000e+00> : vector<16xf32>
    %299 = vector.multi_reduction <add>, %296, %cst_112 [1] : vector<16x32xf32> to vector<16xf32>
    %300 = vector.shape_cast %299 : vector<16xf32> to vector<16x1xf32>
    %cst_113 = arith.constant 3.200000e+01 : f32
    %301 = vector.broadcast %cst_113 : f32 to vector<16x1xf32>
    %302 = arith.divf %300, %301 : vector<16x1xf32>
    %303 = vector.broadcast %302 : vector<16x1xf32> to vector<16x32xf32>
    %304 = arith.subf %296, %303 : vector<16x32xf32>
    %305 = arith.mulf %304, %304 : vector<16x32xf32>
    %cst_114 = arith.constant dense<0.000000e+00> : vector<16xf32>
    %306 = vector.multi_reduction <add>, %305, %cst_114 [1] : vector<16x32xf32> to vector<16xf32>
    %307 = vector.shape_cast %306 : vector<16xf32> to vector<16x1xf32>
    %cst_115 = arith.constant 3.200000e+01 : f32
    %308 = vector.broadcast %cst_115 : f32 to vector<16x1xf32>
    %309 = arith.divf %307, %308 : vector<16x1xf32>
    %cst_116 = arith.constant 9.99999974E-6 : f32
    %310 = vector.broadcast %cst_116 : f32 to vector<16x1xf32>
    %311 = arith.addf %309, %310 : vector<16x1xf32>
    %312 = math.rsqrt %311 : vector<16x1xf32>
    %313 = vector.broadcast %312 : vector<16x1xf32> to vector<16x32xf32>
    %314 = arith.mulf %304, %313 : vector<16x32xf32>
    %315 = vector.broadcast %297 : vector<1x32xf32> to vector<16x32xf32>
    %316 = arith.mulf %314, %315 : vector<16x32xf32>
    %317 = vector.broadcast %298 : vector<1x32xf32> to vector<16x32xf32>
    %318 = arith.addf %316, %317 : vector<16x32xf32>
    %319 = vector.shape_cast %318 : vector<16x32xf32> to vector<2x8x32xf32>
    %c0_117 = arith.constant 0 : index
    %c0_118 = arith.constant 0 : index
    %c0_119 = arith.constant 0 : index
    %320 = vector.load %arg8[%c0_117, %c0_118, %c0_119] : memref<2x8x32xf32, #tpu.memory_space<vmem>>, vector<2x8x32xf32>
    tpu.vector_store %arg8[%c0_117, %c0_118, %c0_119], %319 {strides = array<i32>} : memref<2x8x32xf32, #tpu.memory_space<vmem>>, vector<2x8x32xf32>,
    return
  }
  func.func @transform_0(%arg0: i32) -> (i32, i32, i32) {
    %c0_i32 = arith.constant 0 : i32
    %c0_i32_0 = arith.constant 0 : i32
    %c0_i32_1 = arith.constant 0 : i32
    return %arg0, %c0_i32, %c0_i32_0 : i32, i32, i32
  }
  func.func @transform_1(%arg0: i32) -> (i32, i32, i32) {
    %c0_i32 = arith.constant 0 : i32
    %c0_i32_0 = arith.constant 0 : i32
    %c0_i32_1 = arith.constant 0 : i32
    %c0_i32_2 = arith.constant 0 : i32
    return %c0_i32, %c0_i32_0, %c0_i32_1 : i32, i32, i32
  }
  func.func @transform_2(%arg0: i32) -> (i32, i32, i32) {
    %c0_i32 = arith.constant 0 : i32
    %c0_i32_0 = arith.constant 0 : i32
    %c0_i32_1 = arith.constant 0 : i32
    %c0_i32_2 = arith.constant 0 : i32
    return %c0_i32, %c0_i32_0, %c0_i32_1 : i32, i32, i32
  }
  func.func @transform_3(%arg0: i32) -> (i32, i32, i32) {
    %c0_i32 = arith.constant 0 : i32
    %c0_i32_0 = arith.constant 0 : i32
    %c0_i32_1 = arith.constant 0 : i32
    %c0_i32_2 = arith.constant 0 : i32
    return %c0_i32, %c0_i32_0, %c0_i32_1 : i32, i32, i32
  }
  func.func @transform_4(%arg0: i32) -> (i32, i32, i32) {
    %c0_i32 = arith.constant 0 : i32
    %c0_i32_0 = arith.constant 0 : i32
    %c0_i32_1 = arith.constant 0 : i32
    %c0_i32_2 = arith.constant 0 : i32
    return %c0_i32, %c0_i32_0, %c0_i32_1 : i32, i32, i32
  }
  func.func @transform_5(%arg0: i32) -> (i32, i32, i32) {
    %c0_i32 = arith.constant 0 : i32
    %c0_i32_0 = arith.constant 0 : i32
    %c0_i32_1 = arith.constant 0 : i32
    %c0_i32_2 = arith.constant 0 : i32
    return %c0_i32, %c0_i32_0, %c0_i32_1 : i32, i32, i32
  }
  func.func @transform_6(%arg0: i32) -> (i32, i32) {
    %c0_i32 = arith.constant 0 : i32
    %c0_i32_0 = arith.constant 0 : i32
    %c0_i32_1 = arith.constant 0 : i32
    return %c0_i32, %c0_i32_0 : i32, i32
  }
  func.func @transform_7(%arg0: i32) -> (i32, i32, i32) {
    %c0_i32 = arith.constant 0 : i32
    %c0_i32_0 = arith.constant 0 : i32
    %c0_i32_1 = arith.constant 0 : i32
    return %arg0, %c0_i32, %c0_i32_0 : i32, i32, i32
  }
}

</mosaic_0001>

<llo_original>
// kernel: tpu_custom_call.1
$region0: #{tpu_custom_call.1}
  #allocation0 [shape = 'u32[]', space=smem, size = 0x4, offset = 0x4, fixed_abs, tag = 'smem constant byte address 0x4 - core index']
  #allocation1 [shape = 'u32[144,128]{1,0:T(1,128)}', space=vmem, size = 0x12000, scoped, tag = 'internal scratch']
  %s0 = inlined_call_operand.hbm [shape: f32[2,8,32], index: 0, kind: input, shape index: {}]
  %s1 = inlined_call_operand.vmem [shape: f32[2,32,96], index: 1, kind: input, shape index: {}]
  %s2 = inlined_call_operand.vmem [shape: f32[2,32,32], index: 2, kind: input, shape index: {}]
  %s3 = inlined_call_operand.vmem [shape: f32[2,32,64], index: 3, kind: input, shape index: {}]
  %s4 = inlined_call_operand.vmem [shape: f32[2,64,32], index: 4, kind: input, shape index: {}]
  %s5 = inlined_call_operand.vmem [shape: f32[2,8,96], index: 5, kind: input, shape index: {}]
  %s6 = inlined_call_operand.vmem [shape: f32[2,32], index: 6, kind: input, shape index: {}]
  %s7 = inlined_call_operand.hbm [shape: f32[2,8,32], index: 7, kind: output, shape index: {}]
  %s8 = sld [smem:[#allocation0]]
  $region42: #{tpu_custom_call.1} parent=0
    _
  %s10 = ssub.s32 1, %s8
  %s11 = scalar_select 0, %s10, %s8
  $region1: #{tpu_custom_call.1} parent=0
    #allocation2 [shape = 'u8[8192]{0}', space=vmem, size = 0x2000, scoped, tag = 'input window, operand 0, single buffered']
    #allocation3 [shape = 's32[1]{0}', space=sflag, size = 0x4, scoped, tag = 'scoped memory for tpu_custom_call.1']
    #allocation4 [shape = 's32[1]{0}', space=sflag, size = 0x4, scoped, tag = 'scoped memory for tpu_custom_call.1']
    #allocation5 [shape = 'u8[8192]{0}', space=vmem, size = 0x2000, scoped, tag = 'output window, operand 0, single buffered']
    %12 = vsyncpa [#allocation3], 0
    %13 = vsyncpa [#allocation4], 0
    // Predicated region
    $region2: #{tpu_custom_call.1} parent=1 // pred_check
      _
    $region3: #{tpu_custom_call.1} parent=1 // pred_check_branch
      %15 = sbr.rel (0) target = $region5
    $region4: #{tpu_custom_call.1} parent=1 // pred_region
      %s17 = ssub.s32 256, 256
      %18 = vsyncadd [#allocation3], %s17
      %s19 = sshll.u32 [#allocation2], 4
      %s20 = int_to_ptr.vmem [resolvable:$true] %s19
      %25 = dma.hbm_to_vmem [thread:$0]  %s0, 256, %s20, [#allocation3], 128, 128, 8
    $region5: #{tpu_custom_call.1} parent=1 // pred_fallthru
      _
    // Predicated region
    $region6: #{tpu_custom_call.1} parent=1 // pred_check
      _
    $region7: #{tpu_custom_call.1} parent=1 // pred_check_branch
      %27 = sbr.rel (0) target = $region9
    $region8: #{tpu_custom_call.1} parent=1 // pred_region
      _
    $region9: #{tpu_custom_call.1} parent=1 // pred_fallthru
      _
    // Predicated region
    $region10: #{tpu_custom_call.1} parent=1 // pred_check
      _
    $region11: #{tpu_custom_call.1} parent=1 // pred_check_branch
      %29 = sbr.rel (0) target = $region13
    $region12: #{tpu_custom_call.1} parent=1 // pred_region
      _
    $region13: #{tpu_custom_call.1} parent=1 // pred_fallthru
      _
    // Predicated region
    $region14: #{tpu_custom_call.1} parent=1 // pred_check
      _
    $region15: #{tpu_custom_call.1} parent=1 // pred_check_branch
      %31 = sbr.rel (0) target = $region17
    $region16: #{tpu_custom_call.1} parent=1 // pred_region
      _
    $region17: #{tpu_custom_call.1} parent=1 // pred_fallthru
      _
    // Predicated region
    $region18: #{tpu_custom_call.1} parent=1 // pred_check
      _
    $region19: #{tpu_custom_call.1} parent=1 // pred_check_branch
      %33 = sbr.rel (0) target = $region21
    $region20: #{tpu_custom_call.1} parent=1 // pred_region
      _
    $region21: #{tpu_custom_call.1} parent=1 // pred_fallthru
      _
    // Predicated region
    $region22: #{tpu_custom_call.1} parent=1 // pred_check
      _
    $region23: #{tpu_custom_call.1} parent=1 // pred_check_branch
      %35 = sbr.rel (0) target = $region25
    $region24: #{tpu_custom_call.1} parent=1 // pred_region
      _
    $region25: #{tpu_custom_call.1} parent=1 // pred_fallthru
      _
    // Predicated region
    $region26: #{tpu_custom_call.1} parent=1 // pred_check
      _
    $region27: #{tpu_custom_call.1} parent=1 // pred_check_branch
      %37 = sbr.rel (0) target = $region29
    $region28: #{tpu_custom_call.1} parent=1 // pred_region
      _
    $region29: #{tpu_custom_call.1} parent=1 // pred_fallthru
      _
    // Predicated region
    $region30: #{tpu_custom_call.1} parent=1 // pred_check
      _
    $region31: #{tpu_custom_call.1} parent=1 // pred_check_branch
      %39 = sbr.rel (0) target = $region33
    $region32: #{tpu_custom_call.1} parent=1 // pred_region
      %40 = dma.done [#allocation3], 256
    $region33: #{tpu_custom_call.1} parent=1 // pred_fallthru
      _
    %v41 = vld [vmem:[#allocation2] sm:$0xff]
    %v42 = vld [vmem:[#allocation2 + $0x8] sm:$0xff]
    %v43 = vlaneseq
    %v44 = vshrl.u32 %v43, 7
    %v45 = vlaneseq
    %v46 = vand.u32 %v45, 127
    %vm47 = vcmp.le.s32.totalorder %v46, %v44
    %v48 = vld [vmem:[%s1] sm:$0xff]
    %v49 = vld [vmem:[%s1 + $0x8] sm:$0xff]
    %v50 = vld [vmem:[%s1 + $0x10] sm:$0xff]
    %v51 = vld [vmem:[%s1 + $0x18] sm:$0xff]
    %v52 = vld [vmem:[%s2] sm:$0xff]
    %v53 = vld [vmem:[%s2 + $0x8] sm:$0xff]
    %v54 = vld [vmem:[%s2 + $0x10] sm:$0xff]
    %v55 = vld [vmem:[%s2 + $0x18] sm:$0xff]
    %v56 = vld [vmem:[%s3] sm:$0xff]
    %v57 = vld [vmem:[%s3 + $0x8] sm:$0xff]
    %v58 = vld [vmem:[%s3 + $0x10] sm:$0xff]
    %v59 = vld [vmem:[%s3 + $0x18] sm:$0xff]
    %v60 = vld [vmem:[%s4] sm:$0xff]
    %v61 = vld [vmem:[%s4 + $0x8] sm:$0xff]
    %v62 = vld [vmem:[%s4 + $0x10] sm:$0xff]
    %v63 = vld [vmem:[%s4 + $0x18] sm:$0xff]
    %v64 = vld [vmem:[%s4 + $0x20] sm:$0xff]
    %v65 = vld [vmem:[%s4 + $0x28] sm:$0xff]
    %v66 = vld [vmem:[%s4 + $0x30] sm:$0xff]
    %v67 = vld [vmem:[%s4 + $0x38] sm:$0xff]
    %v68 = vld [vmem:[%s5] sm:$0xff]
    %v69 = vlaneseq
    %v70 = vshrl.u32 %v69, 7
    %v71 = vsub.s32 0, %v70
    %v72 = vrot.slane %v68, %v71
    %vm73 = vcmask 261120
    %v75 = vsel %vm73, %v41, 0
    %v78 = vsel %vm73, %v42, 0
    %80 = vmatprep.subr.mxu0 0.0
    %81 = vmatpush1.msra.mxu0 %v48
    %82 = vmatprep.subr.mxu0 0.0
    %83 = vmatpush1.msra.mxu0 %v49
    %84 = vmatprep.subr.mxu0 0.0
    %85 = vmatpush1.msra.mxu0 %v50
    %86 = vmatprep.subr.mxu0 0.0
    %87 = vmatpush1.msra.mxu0 %v51
    %88 = vmatprep.subr.mxu0 0.0
    %89 = vmatpush1.msra.mxu0 0.0
    %90 = vmatprep.subr.mxu0 0.0
    %91 = vmatpush1.msra.mxu0 0.0
    %92 = vmatprep.subr.mxu0 0.0
    %93 = vmatpush1.msra.mxu0 0.0
    %94 = vmatprep.subr.mxu0 0.0
    %95 = vmatpush1.msra.mxu0 0.0
    %96 = vmatprep.subr.mxu0 0.0
    %97 = vmatpush1.msra.mxu0 0.0
    %98 = vmatprep.subr.mxu0 0.0
    %99 = vmatpush1.msra.mxu0 0.0
    %100 = vmatprep.subr.mxu0 0.0
    %101 = vmatpush1.msra.mxu0 0.0
    %102 = vmatprep.subr.mxu0 0.0
    %103 = vmatpush1.msra.mxu0 0.0
    %104 = vmatprep.subr.mxu0 0.0
    %105 = vmatpush1.msra.mxu0 0.0
    %106 = vmatprep.subr.mxu0 0.0
    %107 = vmatpush1.msra.mxu0 0.0
    %108 = vmatprep.subr.mxu0 0.0
    %109 = vmatpush1.msra.mxu0 0.0
    %110 = vmatprep.subr.mxu0 0.0
    %111 = vmatpush1.msra.mxu0 0.0
    %112 = vmatprep.subr.mxu0 0.0
    %113 = vmatpush1.msra.mxu0 0.0
    %114 = vmatprep.subr.mxu0 0.0
    %115 = vmatpush1.msra.mxu0 0.0
    %116 = vmatprep.subr.mxu0 0.0
    %117 = vmatpush1.msra.mxu0 0.0
    %118 = vmatprep.subr.mxu0 0.0
    %119 = vmatpush1.msra.mxu0 0.0
    %120 = vmatprep.subr.mxu0 0.0
    %121 = vmatpush1.msra.mxu0 0.0
    %122 = vmatprep.subr.mxu0 0.0
    %123 = vmatpush1.msra.mxu0 0.0
    %124 = vmatprep.subr.mxu0 0.0
    %125 = vmatpush1.msra.mxu0 0.0
    %126 = vmatprep.subr.mxu0 0.0
    %127 = vmatpush1.msra.mxu0 0.0
    %128 = vmatprep.subr.mxu0 0.0
    %129 = vmatpush1.msra.mxu0 0.0
    %130 = vmatprep.subr.mxu0 0.0
    %131 = vmatpush1.msra.mxu0 0.0
    %132 = vmatprep.subr.mxu0 0.0
    %133 = vmatpush1.msra.mxu0 0.0
    %134 = vmatprep.subr.mxu0 0.0
    %135 = vmatpush1.msra.mxu0 0.0
    %136 = vmatprep.subr.mxu0 0.0
    %137 = vmatpush1.msra.mxu0 0.0
    %138 = vmatprep.subr.mxu0 0.0
    %139 = vmatpush1.msra.mxu0 0.0
    %140 = vmatprep.subr.mxu0 0.0
    %141 = vmatpush1.msra.mxu0 0.0
    %142 = vmatprep.subr.mxu0 0.0
    %143 = vmatpush1.msra.mxu0 0.0
    %144 = vmatprep.mubr.f32.mxu0 0.0
    %145 = vmatmul.mubr.f32.gmra.mrb[0].mxu0 %v75
    %v146 = vpop.f32.mrb[0].mxu0
    %v147 = vadd.f32 %v72, %v146
    %v148 = vpop.f32.mrb[0].mxu0
    %149 = vmatprep.mubr.f32.mxu0 0.0
    %150 = vmatmul.mubr.f32.gmra.mrb[0].mxu0 %v78
    %v151 = vpop.f32.mrb[0].mxu0
    %v152 = vadd.f32 %v72, %v151
    %v153 = vpop.f32.mrb[0].mxu0
    %154 = vdwg.mxu0
    %vm155 = vcmp.gt.f32.partialorder %v147, 0.0
    %vm156 = vcmp.gt.f32.partialorder %v152, 0.0
    %v157 = vadd.f32 %v147, 1.0
    %v158 = vadd.f32 %v152, 1.0
    %v159 = vmul.f32 %v147, 1.442695
    %v160 = vpow.pop %v159
    %v161 = vmul.f32 %v152, 1.442695
    %v162 = vpow.pop %v161
    %v163 = vsel %vm155, %v157, %v160
    %v164 = vsel %vm156, %v158, %v162
    %166 = vrot.lane.b32.xlu0 %v163, 96
    %v167 = vpop.permute.xlu0 %166
    %vm168 = vcmask 64512
    %v169 = vsel %vm168, %v163, 0
    %v171 = vsel %vm168, %v167, 0
    %173 = vmatprep.subr.mxu0 0.0
    %174 = vmatpush1.xpose.msra.mxu0 %v171
    %175 = vmatprep.subr.mxu0 0.0
    %176 = vmatpush1.xpose.msra.mxu0 0.0
    %177 = vmatprep.subr.mxu0 0.0
    %178 = vmatpush1.xpose.msra.mxu0 0.0
    %179 = vmatprep.subr.mxu0 0.0
    %180 = vmatpush1.xpose.msra.mxu0 0.0
    %181 = vmatprep.subr.mxu0 0.0
    %182 = vmatpush1.xpose.msra.mxu0 0.0
    %183 = vmatprep.subr.mxu0 0.0
    %184 = vmatpush1.xpose.msra.mxu0 0.0
    %185 = vmatprep.subr.mxu0 0.0
    %186 = vmatpush1.xpose.msra.mxu0 0.0
    %187 = vmatprep.subr.mxu0 0.0
    %188 = vmatpush1.xpose.msra.mxu0 0.0
    %189 = vmatprep.subr.mxu0 0.0
    %190 = vmatpush1.xpose.msra.mxu0 0.0
    %191 = vmatprep.subr.mxu0 0.0
    %192 = vmatpush1.xpose.msra.mxu0 0.0
    %193 = vmatprep.subr.mxu0 0.0
    %194 = vmatpush1.xpose.msra.mxu0 0.0
    %195 = vmatprep.subr.mxu0 0.0
    %196 = vmatpush1.xpose.msra.mxu0 0.0
    %197 = vmatprep.subr.mxu0 0.0
    %198 = vmatpush1.xpose.msra.mxu0 0.0
    %199 = vmatprep.subr.mxu0 0.0
    %200 = vmatpush1.xpose.msra.mxu0 0.0
    %201 = vmatprep.subr.mxu0 0.0
    %202 = vmatpush1.xpose.msra.mxu0 0.0
    %203 = vmatprep.subr.mxu0 0.0
    %204 = vmatpush1.xpose.msra.mxu0 0.0
    %205 = vmatprep.subr.mxu0 0.0
    %206 = vmatpush1.xpose.msra.mxu0 0.0
    %207 = vmatprep.subr.mxu0 0.0
    %208 = vmatpush1.xpose.msra.mxu0 0.0
    %209 = vmatprep.subr.mxu0 0.0
    %210 = vmatpush1.xpose.msra.mxu0 0.0
    %211 = vmatprep.subr.mxu0 0.0
    %212 = vmatpush1.xpose.msra.mxu0 0.0
    %213 = vmatprep.subr.mxu0 0.0
    %214 = vmatpush1.xpose.msra.mxu0 0.0
    %215 = vmatprep.subr.mxu0 0.0
    %216 = vmatpush1.xpose.msra.mxu0 0.0
    %217 = vmatprep.subr.mxu0 0.0
    %218 = vmatpush1.xpose.msra.mxu0 0.0
    %219 = vmatprep.subr.mxu0 0.0
    %220 = vmatpush1.xpose.msra.mxu0 0.0
    %221 = vmatprep.subr.mxu0 0.0
    %222 = vmatpush1.xpose.msra.mxu0 0.0
    %223 = vmatprep.subr.mxu0 0.0
    %224 = vmatpush1.xpose.msra.mxu0 0.0
    %225 = vmatprep.subr.mxu0 0.0
    %226 = vmatpush1.xpose.msra.mxu0 0.0
    %227 = vmatprep.subr.mxu0 0.0
    %228 = vmatpush1.xpose.msra.mxu0 0.0
    %229 = vmatprep.subr.mxu0 0.0
    %230 = vmatpush1.xpose.msra.mxu0 0.0
    %231 = vmatprep.subr.mxu0 0.0
    %232 = vmatpush1.xpose.msra.mxu0 0.0
    %233 = vmatprep.subr.mxu0 0.0
    %234 = vmatpush1.xpose.msra.mxu0 0.0
    %235 = vmatprep.subr.mxu0 0.0
    %236 = vmatpush1.xpose.msra.mxu0 0.0
    %237 = vmatprep.mubr.f32.mxu0 0.0
    %238 = vmatmul.mubr.f32.gmra.mrb[0].mxu0 %v169
    %v239 = vpop.f32.mrb[0].mxu0
    %v240 = vadd.f32 0.0, %v239
    %v241 = vpop.f32.mrb[0].mxu0
    %242 = vdwg.mxu0
    %244 = vrot.lane.b32.xlu0 %v164, 96
    %v245 = vpop.permute.xlu0 %244
    %v246 = vsel %vm168, %v164, 0
    %v248 = vsel %vm168, %v245, 0
    %250 = vmatprep.subr.mxu0 0.0
    %251 = vmatpush1.xpose.msra.mxu0 %v248
    %252 = vmatprep.subr.mxu0 0.0
    %253 = vmatpush1.xpose.msra.mxu0 0.0
    %254 = vmatprep.subr.mxu0 0.0
    %255 = vmatpush1.xpose.msra.mxu0 0.0
    %256 = vmatprep.subr.mxu0 0.0
    %257 = vmatpush1.xpose.msra.mxu0 0.0
    %258 = vmatprep.subr.mxu0 0.0
    %259 = vmatpush1.xpose.msra.mxu0 0.0
    %260 = vmatprep.subr.mxu0 0.0
    %261 = vmatpush1.xpose.msra.mxu0 0.0
    %262 = vmatprep.subr.mxu0 0.0
    %263 = vmatpush1.xpose.msra.mxu0 0.0
    %264 = vmatprep.subr.mxu0 0.0
    %265 = vmatpush1.xpose.msra.mxu0 0.0
    %266 = vmatprep.subr.mxu0 0.0
    %267 = vmatpush1.xpose.msra.mxu0 0.0
    %268 = vmatprep.subr.mxu0 0.0
    %269 = vmatpush1.xpose.msra.mxu0 0.0
    %270 = vmatprep.subr.mxu0 0.0
    %271 = vmatpush1.xpose.msra.mxu0 0.0
    %272 = vmatprep.subr.mxu0 0.0
    %273 = vmatpush1.xpose.msra.mxu0 0.0
    %274 = vmatprep.subr.mxu0 0.0
    %275 = vmatpush1.xpose.msra.mxu0 0.0
    %276 = vmatprep.subr.mxu0 0.0
    %277 = vmatpush1.xpose.msra.mxu0 0.0
    %278 = vmatprep.subr.mxu0 0.0
    %279 = vmatpush1.xpose.msra.mxu0 0.0
    %280 = vmatprep.subr.mxu0 0.0
    %281 = vmatpush1.xpose.msra.mxu0 0.0
    %282 = vmatprep.subr.mxu0 0.0
    %283 = vmatpush1.xpose.msra.mxu0 0.0
    %284 = vmatprep.subr.mxu0 0.0
    %285 = vmatpush1.xpose.msra.mxu0 0.0
    %286 = vmatprep.subr.mxu0 0.0
    %287 = vmatpush1.xpose.msra.mxu0 0.0
    %288 = vmatprep.subr.mxu0 0.0
    %289 = vmatpush1.xpose.msra.mxu0 0.0
    %290 = vmatprep.subr.mxu0 0.0
    %291 = vmatpush1.xpose.msra.mxu0 0.0
    %292 = vmatprep.subr.mxu0 0.0
    %293 = vmatpush1.xpose.msra.mxu0 0.0
    %294 = vmatprep.subr.mxu0 0.0
    %295 = vmatpush1.xpose.msra.mxu0 0.0
    %296 = vmatprep.subr.mxu0 0.0
    %297 = vmatpush1.xpose.msra.mxu0 0.0
    %298 = vmatprep.subr.mxu0 0.0
    %299 = vmatpush1.xpose.msra.mxu0 0.0
    %300 = vmatprep.subr.mxu0 0.0
    %301 = vmatpush1.xpose.msra.mxu0 0.0
    %302 = vmatprep.subr.mxu0 0.0
    %303 = vmatpush1.xpose.msra.mxu0 0.0
    %304 = vmatprep.subr.mxu0 0.0
    %305 = vmatpush1.xpose.msra.mxu0 0.0
    %306 = vmatprep.subr.mxu0 0.0
    %307 = vmatpush1.xpose.msra.mxu0 0.0
    %308 = vmatprep.subr.mxu0 0.0
    %309 = vmatpush1.xpose.msra.mxu0 0.0
    %310 = vmatprep.subr.mxu0 0.0
    %311 = vmatpush1.xpose.msra.mxu0 0.0
    %312 = vmatprep.subr.mxu0 0.0
    %313 = vmatpush1.xpose.msra.mxu0 0.0
    %314 = vmatprep.mubr.f32.mxu0 0.0
    %315 = vmatmul.mubr.f32.gmra.mrb[0].mxu0 %v246
    %v316 = vpop.f32.mrb[0].mxu0
    %v317 = vadd.f32 0.0, %v316
    %v318 = vpop.f32.mrb[0].mxu0
    %319 = vdwg.mxu0
    %v320 = vsel %vm47, %v240, 0.0
    %v321 = vsel %vm47, %v317, 0.0
    %v322 = vsel %vm168, %v320, 0.0
    %323 = vadd.xlane.f32.xlu0 %v322
    %v324 = vpop.xlane.xlu0 %323
    %v325 = vsel %vm168, %v321, 0.0
    %326 = vadd.xlane.f32.xlu0 %v325
    %v327 = vpop.xlane.xlu0 %326
    %v328 = vadd.f32 %v324, 1e-06
    %v329 = vadd.f32 %v327, 1e-06
    %331 = vrot.lane.b32.xlu0 %v147, 64
    %v332 = vpop.permute.xlu0 %331
    %v335 = vsel %vm168, %v320, 0
    %337 = vmatprep.subr.mxu0 0.0
    %338 = vmatpush1.msra.mxu0 %v332
    %339 = vmatprep.subr.mxu0 0.0
    %340 = vmatpush1.msra.mxu0 0.0
    %341 = vmatprep.subr.mxu0 0.0
    %342 = vmatpush1.msra.mxu0 0.0
    %343 = vmatprep.subr.mxu0 0.0
    %344 = vmatpush1.msra.mxu0 0.0
    %345 = vmatprep.subr.mxu0 0.0
    %346 = vmatpush1.msra.mxu0 0.0
    %347 = vmatprep.subr.mxu0 0.0
    %348 = vmatpush1.msra.mxu0 0.0
    %349 = vmatprep.subr.mxu0 0.0
    %350 = vmatpush1.msra.mxu0 0.0
    %351 = vmatprep.subr.mxu0 0.0
    %352 = vmatpush1.msra.mxu0 0.0
    %353 = vmatprep.subr.mxu0 0.0
    %354 = vmatpush1.msra.mxu0 0.0
    %355 = vmatprep.subr.mxu0 0.0
    %356 = vmatpush1.msra.mxu0 0.0
    %357 = vmatprep.subr.mxu0 0.0
    %358 = vmatpush1.msra.mxu0 0.0
    %359 = vmatprep.subr.mxu0 0.0
    %360 = vmatpush1.msra.mxu0 0.0
    %361 = vmatprep.subr.mxu0 0.0
    %362 = vmatpush1.msra.mxu0 0.0
    %363 = vmatprep.subr.mxu0 0.0
    %364 = vmatpush1.msra.mxu0 0.0
    %365 = vmatprep.subr.mxu0 0.0
    %366 = vmatpush1.msra.mxu0 0.0
    %367 = vmatprep.subr.mxu0 0.0
    %368 = vmatpush1.msra.mxu0 0.0
    %369 = vmatprep.subr.mxu0 0.0
    %370 = vmatpush1.msra.mxu0 0.0
    %371 = vmatprep.subr.mxu0 0.0
    %372 = vmatpush1.msra.mxu0 0.0
    %373 = vmatprep.subr.mxu0 0.0
    %374 = vmatpush1.msra.mxu0 0.0
    %375 = vmatprep.subr.mxu0 0.0
    %376 = vmatpush1.msra.mxu0 0.0
    %377 = vmatprep.subr.mxu0 0.0
    %378 = vmatpush1.msra.mxu0 0.0
    %379 = vmatprep.subr.mxu0 0.0
    %380 = vmatpush1.msra.mxu0 0.0
    %381 = vmatprep.subr.mxu0 0.0
    %382 = vmatpush1.msra.mxu0 0.0
    %383 = vmatprep.subr.mxu0 0.0
    %384 = vmatpush1.msra.mxu0 0.0
    %385 = vmatprep.subr.mxu0 0.0
    %386 = vmatpush1.msra.mxu0 0.0
    %387 = vmatprep.subr.mxu0 0.0
    %388 = vmatpush1.msra.mxu0 0.0
    %389 = vmatprep.subr.mxu0 0.0
    %390 = vmatpush1.msra.mxu0 0.0
    %391 = vmatprep.subr.mxu0 0.0
    %392 = vmatpush1.msra.mxu0 0.0
    %393 = vmatprep.subr.mxu0 0.0
    %394 = vmatpush1.msra.mxu0 0.0
    %395 = vmatprep.subr.mxu0 0.0
    %396 = vmatpush1.msra.mxu0 0.0
    %397 = vmatprep.subr.mxu0 0.0
    %398 = vmatpush1.msra.mxu0 0.0
    %399 = vmatprep.subr.mxu0 0.0
    %400 = vmatpush1.msra.mxu0 0.0
    %401 = vmatprep.mubr.f32.mxu0 0.0
    %402 = vmatmul.mubr.f32.gmra.mrb[0].mxu0 %v335
    %v403 = vpop.f32.mrb[0].mxu0
    %v404 = vadd.f32 0.0, %v403
    %v405 = vpop.f32.mrb[0].mxu0
    %406 = vdwg.mxu0
    %408 = vrot.lane.b32.xlu0 %v152, 64
    %v409 = vpop.permute.xlu0 %408
    %v412 = vsel %vm168, %v321, 0
    %414 = vmatprep.subr.mxu0 0.0
    %415 = vmatpush1.msra.mxu0 %v409
    %416 = vmatprep.subr.mxu0 0.0
    %417 = vmatpush1.msra.mxu0 0.0
    %418 = vmatprep.subr.mxu0 0.0
    %419 = vmatpush1.msra.mxu0 0.0
    %420 = vmatprep.subr.mxu0 0.0
    %421 = vmatpush1.msra.mxu0 0.0
    %422 = vmatprep.subr.mxu0 0.0
    %423 = vmatpush1.msra.mxu0 0.0
    %424 = vmatprep.subr.mxu0 0.0
    %425 = vmatpush1.msra.mxu0 0.0
    %426 = vmatprep.subr.mxu0 0.0
    %427 = vmatpush1.msra.mxu0 0.0
    %428 = vmatprep.subr.mxu0 0.0
    %429 = vmatpush1.msra.mxu0 0.0
    %430 = vmatprep.subr.mxu0 0.0
    %431 = vmatpush1.msra.mxu0 0.0
    %432 = vmatprep.subr.mxu0 0.0
    %433 = vmatpush1.msra.mxu0 0.0
    %434 = vmatprep.subr.mxu0 0.0
    %435 = vmatpush1.msra.mxu0 0.0
    %436 = vmatprep.subr.mxu0 0.0
    %437 = vmatpush1.msra.mxu0 0.0
    %438 = vmatprep.subr.mxu0 0.0
    %439 = vmatpush1.msra.mxu0 0.0
    %440 = vmatprep.subr.mxu0 0.0
    %441 = vmatpush1.msra.mxu0 0.0
    %442 = vmatprep.subr.mxu0 0.0
    %443 = vmatpush1.msra.mxu0 0.0
    %444 = vmatprep.subr.mxu0 0.0
    %445 = vmatpush1.msra.mxu0 0.0
    %446 = vmatprep.subr.mxu0 0.0
    %447 = vmatpush1.msra.mxu0 0.0
    %448 = vmatprep.subr.mxu0 0.0
    %449 = vmatpush1.msra.mxu0 0.0
    %450 = vmatprep.subr.mxu0 0.0
    %451 = vmatpush1.msra.mxu0 0.0
    %452 = vmatprep.subr.mxu0 0.0
    %453 = vmatpush1.msra.mxu0 0.0
    %454 = vmatprep.subr.mxu0 0.0
    %455 = vmatpush1.msra.mxu0 0.0
    %456 = vmatprep.subr.mxu0 0.0
    %457 = vmatpush1.msra.mxu0 0.0
    %458 = vmatprep.subr.mxu0 0.0
    %459 = vmatpush1.msra.mxu0 0.0
    %460 = vmatprep.subr.mxu0 0.0
    %461 = vmatpush1.msra.mxu0 0.0
    %462 = vmatprep.subr.mxu0 0.0
    %463 = vmatpush1.msra.mxu0 0.0
    %464 = vmatprep.subr.mxu0 0.0
    %465 = vmatpush1.msra.mxu0 0.0
    %466 = vmatprep.subr.mxu0 0.0
    %467 = vmatpush1.msra.mxu0 0.0
    %468 = vmatprep.subr.mxu0 0.0
    %469 = vmatpush1.msra.mxu0 0.0
    %470 = vmatprep.subr.mxu0 0.0
    %471 = vmatpush1.msra.mxu0 0.0
    %472 = vmatprep.subr.mxu0 0.0
    %473 = vmatpush1.msra.mxu0 0.0
    %474 = vmatprep.subr.mxu0 0.0
    %475 = vmatpush1.msra.mxu0 0.0
    %476 = vmatprep.subr.mxu0 0.0
    %477 = vmatpush1.msra.mxu0 0.0
    %478 = vmatprep.mubr.f32.mxu0 0.0
    %479 = vmatmul.mubr.f32.gmra.mrb[0].mxu0 %v412
    %v480 = vpop.f32.mrb[0].mxu0
    %v481 = vadd.f32 0.0, %v480
    %v482 = vpop.f32.mrb[0].mxu0
    %483 = vdwg.mxu0
    %v484 = vrcp.pop %v328
    %v485 = vmul.f32 %v404, %v484
    %v486 = vrcp.pop %v329
    %v487 = vmul.f32 %v481, %v486
    %488 = vrot.lane.b32.xlu0 %v163, 120
    %v489 = vpop.permute.xlu0 %488
    %490 = vrot.lane.b32.xlu0 %v163, 88
    %v491 = vpop.permute.xlu0 %490
    %v492 = vsel %vm168, %v489, 0
    %v494 = vsel %vm168, %v491, 0
    %496 = vmatprep.subr.mxu0 0.0
    %497 = vmatpush1.xpose.msra.mxu0 %v494
    %498 = vmatprep.subr.mxu0 0.0
    %499 = vmatpush1.xpose.msra.mxu0 0.0
    %500 = vmatprep.subr.mxu0 0.0
    %501 = vmatpush1.xpose.msra.mxu0 0.0
    %502 = vmatprep.subr.mxu0 0.0
    %503 = vmatpush1.xpose.msra.mxu0 0.0
    %504 = vmatprep.subr.mxu0 0.0
    %505 = vmatpush1.xpose.msra.mxu0 0.0
    %506 = vmatprep.subr.mxu0 0.0
    %507 = vmatpush1.xpose.msra.mxu0 0.0
    %508 = vmatprep.subr.mxu0 0.0
    %509 = vmatpush1.xpose.msra.mxu0 0.0
    %510 = vmatprep.subr.mxu0 0.0
    %511 = vmatpush1.xpose.msra.mxu0 0.0
    %512 = vmatprep.subr.mxu0 0.0
    %513 = vmatpush1.xpose.msra.mxu0 0.0
    %514 = vmatprep.subr.mxu0 0.0
    %515 = vmatpush1.xpose.msra.mxu0 0.0
    %516 = vmatprep.subr.mxu0 0.0
    %517 = vmatpush1.xpose.msra.mxu0 0.0
    %518 = vmatprep.subr.mxu0 0.0
    %519 = vmatpush1.xpose.msra.mxu0 0.0
    %520 = vmatprep.subr.mxu0 0.0
    %521 = vmatpush1.xpose.msra.mxu0 0.0
    %522 = vmatprep.subr.mxu0 0.0
    %523 = vmatpush1.xpose.msra.mxu0 0.0
    %524 = vmatprep.subr.mxu0 0.0
    %525 = vmatpush1.xpose.msra.mxu0 0.0
    %526 = vmatprep.subr.mxu0 0.0
    %527 = vmatpush1.xpose.msra.mxu0 0.0
    %528 = vmatprep.subr.mxu0 0.0
    %529 = vmatpush1.xpose.msra.mxu0 0.0
    %530 = vmatprep.subr.mxu0 0.0
    %531 = vmatpush1.xpose.msra.mxu0 0.0
    %532 = vmatprep.subr.mxu0 0.0
    %533 = vmatpush1.xpose.msra.mxu0 0.0
    %534 = vmatprep.subr.mxu0 0.0
    %535 = vmatpush1.xpose.msra.mxu0 0.0
    %536 = vmatprep.subr.mxu0 0.0
    %537 = vmatpush1.xpose.msra.mxu0 0.0
    %538 = vmatprep.subr.mxu0 0.0
    %539 = vmatpush1.xpose.msra.mxu0 0.0
    %540 = vmatprep.subr.mxu0 0.0
    %541 = vmatpush1.xpose.msra.mxu0 0.0
    %542 = vmatprep.subr.mxu0 0.0
    %543 = vmatpush1.xpose.msra.mxu0 0.0
    %544 = vmatprep.subr.mxu0 0.0
    %545 = vmatpush1.xpose.msra.mxu0 0.0
    %546 = vmatprep.subr.mxu0 0.0
    %547 = vmatpush1.xpose.msra.mxu0 0.0
    %548 = vmatprep.subr.mxu0 0.0
    %549 = vmatpush1.xpose.msra.mxu0 0.0
    %550 = vmatprep.subr.mxu0 0.0
    %551 = vmatpush1.xpose.msra.mxu0 0.0
    %552 = vmatprep.subr.mxu0 0.0
    %553 = vmatpush1.xpose.msra.mxu0 0.0
    %554 = vmatprep.subr.mxu0 0.0
    %555 = vmatpush1.xpose.msra.mxu0 0.0
    %556 = vmatprep.subr.mxu0 0.0
    %557 = vmatpush1.xpose.msra.mxu0 0.0
    %558 = vmatprep.subr.mxu0 0.0
    %559 = vmatpush1.xpose.msra.mxu0 0.0
    %560 = vmatprep.mubr.f32.mxu0 0.0
    %561 = vmatmul.mubr.f32.gmra.mrb[0].mxu0 %v492
    %v562 = vpop.f32.mrb[0].mxu0
    %v563 = vadd.f32 0.0, %v562
    %v564 = vpop.f32.mrb[0].mxu0
    %565 = vdwg.mxu0
    %566 = vrot.lane.b32.xlu0 %v164, 120
    %v567 = vpop.permute.xlu0 %566
    %568 = vrot.lane.b32.xlu0 %v164, 88
    %v569 = vpop.permute.xlu0 %568
    %v570 = vsel %vm168, %v567, 0
    %v572 = vsel %vm168, %v569, 0
    %574 = vmatprep.subr.mxu0 0.0
    %575 = vmatpush1.xpose.msra.mxu0 %v572
    %576 = vmatprep.subr.mxu0 0.0
    %577 = vmatpush1.xpose.msra.mxu0 0.0
    %578 = vmatprep.subr.mxu0 0.0
    %579 = vmatpush1.xpose.msra.mxu0 0.0
    %580 = vmatprep.subr.mxu0 0.0
    %581 = vmatpush1.xpose.msra.mxu0 0.0
    %582 = vmatprep.subr.mxu0 0.0
    %583 = vmatpush1.xpose.msra.mxu0 0.0
    %584 = vmatprep.subr.mxu0 0.0
    %585 = vmatpush1.xpose.msra.mxu0 0.0
    %586 = vmatprep.subr.mxu0 0.0
    %587 = vmatpush1.xpose.msra.mxu0 0.0
    %588 = vmatprep.subr.mxu0 0.0
    %589 = vmatpush1.xpose.msra.mxu0 0.0
    %590 = vmatprep.subr.mxu0 0.0
    %591 = vmatpush1.xpose.msra.mxu0 0.0
    %592 = vmatprep.subr.mxu0 0.0
    %593 = vmatpush1.xpose.msra.mxu0 0.0
    %594 = vmatprep.subr.mxu0 0.0
    %595 = vmatpush1.xpose.msra.mxu0 0.0
    %596 = vmatprep.subr.mxu0 0.0
    %597 = vmatpush1.xpose.msra.mxu0 0.0
    %598 = vmatprep.subr.mxu0 0.0
    %599 = vmatpush1.xpose.msra.mxu0 0.0
    %600 = vmatprep.subr.mxu0 0.0
    %601 = vmatpush1.xpose.msra.mxu0 0.0
    %602 = vmatprep.subr.mxu0 0.0
    %603 = vmatpush1.xpose.msra.mxu0 0.0
    %604 = vmatprep.subr.mxu0 0.0
    %605 = vmatpush1.xpose.msra.mxu0 0.0
    %606 = vmatprep.subr.mxu0 0.0
    %607 = vmatpush1.xpose.msra.mxu0 0.0
    %608 = vmatprep.subr.mxu0 0.0
    %609 = vmatpush1.xpose.msra.mxu0 0.0
    %610 = vmatprep.subr.mxu0 0.0
    %611 = vmatpush1.xpose.msra.mxu0 0.0
    %612 = vmatprep.subr.mxu0 0.0
    %613 = vmatpush1.xpose.msra.mxu0 0.0
    %614 = vmatprep.subr.mxu0 0.0
    %615 = vmatpush1.xpose.msra.mxu0 0.0
    %616 = vmatprep.subr.mxu0 0.0
    %617 = vmatpush1.xpose.msra.mxu0 0.0
    %618 = vmatprep.subr.mxu0 0.0
    %619 = vmatpush1.xpose.msra.mxu0 0.0
    %620 = vmatprep.subr.mxu0 0.0
    %621 = vmatpush1.xpose.msra.mxu0 0.0
    %622 = vmatprep.subr.mxu0 0.0
    %623 = vmatpush1.xpose.msra.mxu0 0.0
    %624 = vmatprep.subr.mxu0 0.0
    %625 = vmatpush1.xpose.msra.mxu0 0.0
    %626 = vmatprep.subr.mxu0 0.0
    %627 = vmatpush1.xpose.msra.mxu0 0.0
    %628 = vmatprep.subr.mxu0 0.0
    %629 = vmatpush1.xpose.msra.mxu0 0.0
    %630 = vmatprep.subr.mxu0 0.0
    %631 = vmatpush1.xpose.msra.mxu0 0.0
    %632 = vmatprep.subr.mxu0 0.0
    %633 = vmatpush1.xpose.msra.mxu0 0.0
    %634 = vmatprep.subr.mxu0 0.0
    %635 = vmatpush1.xpose.msra.mxu0 0.0
    %636 = vmatprep.subr.mxu0 0.0
    %637 = vmatpush1.xpose.msra.mxu0 0.0
    %638 = vmatprep.mubr.f32.mxu0 0.0
    %639 = vmatmul.mubr.f32.gmra.mrb[0].mxu0 %v570
    %v640 = vpop.f32.mrb[0].mxu0
    %v641 = vadd.f32 0.0, %v640
    %v642 = vpop.f32.mrb[0].mxu0
    %643 = vdwg.mxu0
    %v644 = vsel %vm47, %v563, 0.0
    %v645 = vsel %vm47, %v641, 0.0
    %v646 = vsel %vm168, %v644, 0.0
    %647 = vadd.xlane.f32.xlu0 %v646
    %v648 = vpop.xlane.xlu0 %647
    %v649 = vsel %vm168, %v645, 0.0
    %650 = vadd.xlane.f32.xlu0 %v649
    %v651 = vpop.xlane.xlu0 %650
    %v652 = vadd.f32 %v648, 1e-06
    %v653 = vadd.f32 %v651, 1e-06
    %654 = vrot.lane.b32.xlu0 %v147, 56
    %v655 = vpop.permute.xlu0 %654
    %v658 = vsel %vm168, %v644, 0
    %660 = vmatprep.subr.mxu0 0.0
    %661 = vmatpush1.msra.mxu0 %v655
    %662 = vmatprep.subr.mxu0 0.0
    %663 = vmatpush1.msra.mxu0 0.0
    %664 = vmatprep.subr.mxu0 0.0
    %665 = vmatpush1.msra.mxu0 0.0
    %666 = vmatprep.subr.mxu0 0.0
    %667 = vmatpush1.msra.mxu0 0.0
    %668 = vmatprep.subr.mxu0 0.0
    %669 = vmatpush1.msra.mxu0 0.0
    %670 = vmatprep.subr.mxu0 0.0
    %671 = vmatpush1.msra.mxu0 0.0
    %672 = vmatprep.subr.mxu0 0.0
    %673 = vmatpush1.msra.mxu0 0.0
    %674 = vmatprep.subr.mxu0 0.0
    %675 = vmatpush1.msra.mxu0 0.0
    %676 = vmatprep.subr.mxu0 0.0
    %677 = vmatpush1.msra.mxu0 0.0
    %678 = vmatprep.subr.mxu0 0.0
    %679 = vmatpush1.msra.mxu0 0.0
    %680 = vmatprep.subr.mxu0 0.0
    %681 = vmatpush1.msra.mxu0 0.0
    %682 = vmatprep.subr.mxu0 0.0
    %683 = vmatpush1.msra.mxu0 0.0
    %684 = vmatprep.subr.mxu0 0.0
    %685 = vmatpush1.msra.mxu0 0.0
    %686 = vmatprep.subr.mxu0 0.0
    %687 = vmatpush1.msra.mxu0 0.0
    %688 = vmatprep.subr.mxu0 0.0
    %689 = vmatpush1.msra.mxu0 0.0
    %690 = vmatprep.subr.mxu0 0.0
    %691 = vmatpush1.msra.mxu0 0.0
    %692 = vmatprep.subr.mxu0 0.0
    %693 = vmatpush1.msra.mxu0 0.0
    %694 = vmatprep.subr.mxu0 0.0
    %695 = vmatpush1.msra.mxu0 0.0
    %696 = vmatprep.subr.mxu0 0.0
    %697 = vmatpush1.msra.mxu0 0.0
    %698 = vmatprep.subr.mxu0 0.0
    %699 = vmatpush1.msra.mxu0 0.0
    %700 = vmatprep.subr.mxu0 0.0
    %701 = vmatpush1.msra.mxu0 0.0
    %702 = vmatprep.subr.mxu0 0.0
    %703 = vmatpush1.msra.mxu0 0.0
    %704 = vmatprep.subr.mxu0 0.0
    %705 = vmatpush1.msra.mxu0 0.0
    %706 = vmatprep.subr.mxu0 0.0
    %707 = vmatpush1.msra.mxu0 0.0
    %708 = vmatprep.subr.mxu0 0.0
    %709 = vmatpush1.msra.mxu0 0.0
    %710 = vmatprep.subr.mxu0 0.0
    %711 = vmatpush1.msra.mxu0 0.0
    %712 = vmatprep.subr.mxu0 0.0
    %713 = vmatpush1.msra.mxu0 0.0
    %714 = vmatprep.subr.mxu0 0.0
    %715 = vmatpush1.msra.mxu0 0.0
    %716 = vmatprep.subr.mxu0 0.0
    %717 = vmatpush1.msra.mxu0 0.0
    %718 = vmatprep.subr.mxu0 0.0
    %719 = vmatpush1.msra.mxu0 0.0
    %720 = vmatprep.subr.mxu0 0.0
    %721 = vmatpush1.msra.mxu0 0.0
    %722 = vmatprep.subr.mxu0 0.0
    %723 = vmatpush1.msra.mxu0 0.0
    %724 = vmatprep.mubr.f32.mxu0 0.0
    %725 = vmatmul.mubr.f32.gmra.mrb[0].mxu0 %v658
    %v726 = vpop.f32.mrb[0].mxu0
    %v727 = vadd.f32 0.0, %v726
    %v728 = vpop.f32.mrb[0].mxu0
    %729 = vdwg.mxu0
    %730 = vrot.lane.b32.xlu0 %v152, 56
    %v731 = vpop.permute.xlu0 %730
    %v734 = vsel %vm168, %v645, 0
    %736 = vmatprep.subr.mxu0 0.0
    %737 = vmatpush1.msra.mxu0 %v731
    %738 = vmatprep.subr.mxu0 0.0
    %739 = vmatpush1.msra.mxu0 0.0
    %740 = vmatprep.subr.mxu0 0.0
    %741 = vmatpush1.msra.mxu0 0.0
    %742 = vmatprep.subr.mxu0 0.0
    %743 = vmatpush1.msra.mxu0 0.0
    %744 = vmatprep.subr.mxu0 0.0
    %745 = vmatpush1.msra.mxu0 0.0
    %746 = vmatprep.subr.mxu0 0.0
    %747 = vmatpush1.msra.mxu0 0.0
    %748 = vmatprep.subr.mxu0 0.0
    %749 = vmatpush1.msra.mxu0 0.0
    %750 = vmatprep.subr.mxu0 0.0
    %751 = vmatpush1.msra.mxu0 0.0
    %752 = vmatprep.subr.mxu0 0.0
    %753 = vmatpush1.msra.mxu0 0.0
    %754 = vmatprep.subr.mxu0 0.0
    %755 = vmatpush1.msra.mxu0 0.0
    %756 = vmatprep.subr.mxu0 0.0
    %757 = vmatpush1.msra.mxu0 0.0
    %758 = vmatprep.subr.mxu0 0.0
    %759 = vmatpush1.msra.mxu0 0.0
    %760 = vmatprep.subr.mxu0 0.0
    %761 = vmatpush1.msra.mxu0 0.0
    %762 = vmatprep.subr.mxu0 0.0
    %763 = vmatpush1.msra.mxu0 0.0
    %764 = vmatprep.subr.mxu0 0.0
    %765 = vmatpush1.msra.mxu0 0.0
    %766 = vmatprep.subr.mxu0 0.0
    %767 = vmatpush1.msra.mxu0 0.0
    %768 = vmatprep.subr.mxu0 0.0
    %769 = vmatpush1.msra.mxu0 0.0
    %770 = vmatprep.subr.mxu0 0.0
    %771 = vmatpush1.msra.mxu0 0.0
    %772 = vmatprep.subr.mxu0 0.0
    %773 = vmatpush1.msra.mxu0 0.0
    %774 = vmatprep.subr.mxu0 0.0
    %775 = vmatpush1.msra.mxu0 0.0
    %776 = vmatprep.subr.mxu0 0.0
    %777 = vmatpush1.msra.mxu0 0.0
    %778 = vmatprep.subr.mxu0 0.0
    %779 = vmatpush1.msra.mxu0 0.0
    %780 = vmatprep.subr.mxu0 0.0
    %781 = vmatpush1.msra.mxu0 0.0
    %782 = vmatprep.subr.mxu0 0.0
    %783 = vmatpush1.msra.mxu0 0.0
    %784 = vmatprep.subr.mxu0 0.0
    %785 = vmatpush1.msra.mxu0 0.0
    %786 = vmatprep.subr.mxu0 0.0
    %787 = vmatpush1.msra.mxu0 0.0
    %788 = vmatprep.subr.mxu0 0.0
    %789 = vmatpush1.msra.mxu0 0.0
    %790 = vmatprep.subr.mxu0 0.0
    %791 = vmatpush1.msra.mxu0 0.0
    %792 = vmatprep.subr.mxu0 0.0
    %793 = vmatpush1.msra.mxu0 0.0
    %794 = vmatprep.subr.mxu0 0.0
    %795 = vmatpush1.msra.mxu0 0.0
    %796 = vmatprep.subr.mxu0 0.0
    %797 = vmatpush1.msra.mxu0 0.0
    %798 = vmatprep.subr.mxu0 0.0
    %799 = vmatpush1.msra.mxu0 0.0
    %800 = vmatprep.mubr.f32.mxu0 0.0
    %801 = vmatmul.mubr.f32.gmra.mrb[0].mxu0 %v734
    %v802 = vpop.f32.mrb[0].mxu0
    %v803 = vadd.f32 0.0, %v802
    %v804 = vpop.f32.mrb[0].mxu0
    %805 = vdwg.mxu0
    %v806 = vrcp.pop %v652
    %v807 = vmul.f32 %v727, %v806
    %v808 = vrcp.pop %v653
    %v809 = vmul.f32 %v803, %v808
    %810 = vrot.lane.b32.xlu0 %v163, 112
    %v811 = vpop.permute.xlu0 %810
    %812 = vrot.lane.b32.xlu0 %v163, 80
    %v813 = vpop.permute.xlu0 %812
    %v814 = vsel %vm168, %v811, 0
    %v816 = vsel %vm168, %v813, 0
    %818 = vmatprep.subr.mxu0 0.0
    %819 = vmatpush1.xpose.msra.mxu0 %v816
    %820 = vmatprep.subr.mxu0 0.0
    %821 = vmatpush1.xpose.msra.mxu0 0.0
    %822 = vmatprep.subr.mxu0 0.0
    %823 = vmatpush1.xpose.msra.mxu0 0.0
    %824 = vmatprep.subr.mxu0 0.0
    %825 = vmatpush1.xpose.msra.mxu0 0.0
    %826 = vmatprep.subr.mxu0 0.0
    %827 = vmatpush1.xpose.msra.mxu0 0.0
    %828 = vmatprep.subr.mxu0 0.0
    %829 = vmatpush1.xpose.msra.mxu0 0.0
    %830 = vmatprep.subr.mxu0 0.0
    %831 = vmatpush1.xpose.msra.mxu0 0.0
    %832 = vmatprep.subr.mxu0 0.0
    %833 = vmatpush1.xpose.msra.mxu0 0.0
    %834 = vmatprep.subr.mxu0 0.0
    %835 = vmatpush1.xpose.msra.mxu0 0.0
    %836 = vmatprep.subr.mxu0 0.0
    %837 = vmatpush1.xpose.msra.mxu0 0.0
    %838 = vmatprep.subr.mxu0 0.0
    %839 = vmatpush1.xpose.msra.mxu0 0.0
    %840 = vmatprep.subr.mxu0 0.0
    %841 = vmatpush1.xpose.msra.mxu0 0.0
    %842 = vmatprep.subr.mxu0 0.0
    %843 = vmatpush1.xpose.msra.mxu0 0.0
    %844 = vmatprep.subr.mxu0 0.0
    %845 = vmatpush1.xpose.msra.mxu0 0.0
    %846 = vmatprep.subr.mxu0 0.0
    %847 = vmatpush1.xpose.msra.mxu0 0.0
    %848 = vmatprep.subr.mxu0 0.0
    %849 = vmatpush1.xpose.msra.mxu0 0.0
    %850 = vmatprep.subr.mxu0 0.0
    %851 = vmatpush1.xpose.msra.mxu0 0.0
    %852 = vmatprep.subr.mxu0 0.0
    %853 = vmatpush1.xpose.msra.mxu0 0.0
    %854 = vmatprep.subr.mxu0 0.0
    %855 = vmatpush1.xpose.msra.mxu0 0.0
    %856 = vmatprep.subr.mxu0 0.0
    %857 = vmatpush1.xpose.msra.mxu0 0.0
    %858 = vmatprep.subr.mxu0 0.0
    %859 = vmatpush1.xpose.msra.mxu0 0.0
    %860 = vmatprep.subr.mxu0 0.0
    %861 = vmatpush1.xpose.msra.mxu0 0.0
    %862 = vmatprep.subr.mxu0 0.0
    %863 = vmatpush1.xpose.msra.mxu0 0.0
    %864 = vmatprep.subr.mxu0 0.0
    %865 = vmatpush1.xpose.msra.mxu0 0.0
    %866 = vmatprep.subr.mxu0 0.0
    %867 = vmatpush1.xpose.msra.mxu0 0.0
    %868 = vmatprep.subr.mxu0 0.0
    %869 = vmatpush1.xpose.msra.mxu0 0.0
    %870 = vmatprep.subr.mxu0 0.0
    %871 = vmatpush1.xpose.msra.mxu0 0.0
    %872 = vmatprep.subr.mxu0 0.0
    %873 = vmatpush1.xpose.msra.mxu0 0.0
    %874 = vmatprep.subr.mxu0 0.0
    %875 = vmatpush1.xpose.msra.mxu0 0.0
    %876 = vmatprep.subr.mxu0 0.0
    %877 = vmatpush1.xpose.msra.mxu0 0.0
    %878 = vmatprep.subr.mxu0 0.0
    %879 = vmatpush1.xpose.msra.mxu0 0.0
    %880 = vmatprep.subr.mxu0 0.0
    %881 = vmatpush1.xpose.msra.mxu0 0.0
    %882 = vmatprep.mubr.f32.mxu0 0.0
    %883 = vmatmul.mubr.f32.gmra.mrb[0].mxu0 %v814
    %v884 = vpop.f32.mrb[0].mxu0
    %v885 = vadd.f32 0.0, %v884
    %v886 = vpop.f32.mrb[0].mxu0
    %887 = vdwg.mxu0
    %888 = vrot.lane.b32.xlu0 %v164, 112
    %v889 = vpop.permute.xlu0 %888
    %890 = vrot.lane.b32.xlu0 %v164, 80
    %v891 = vpop.permute.xlu0 %890
    %v892 = vsel %vm168, %v889, 0
    %v894 = vsel %vm168, %v891, 0
    %896 = vmatprep.subr.mxu0 0.0
    %897 = vmatpush1.xpose.msra.mxu0 %v894
    %898 = vmatprep.subr.mxu0 0.0
    %899 = vmatpush1.xpose.msra.mxu0 0.0
    %900 = vmatprep.subr.mxu0 0.0
    %901 = vmatpush1.xpose.msra.mxu0 0.0
    %902 = vmatprep.subr.mxu0 0.0
    %903 = vmatpush1.xpose.msra.mxu0 0.0
    %904 = vmatprep.subr.mxu0 0.0
    %905 = vmatpush1.xpose.msra.mxu0 0.0
    %906 = vmatprep.subr.mxu0 0.0
    %907 = vmatpush1.xpose.msra.mxu0 0.0
    %908 = vmatprep.subr.mxu0 0.0
    %909 = vmatpush1.xpose.msra.mxu0 0.0
    %910 = vmatprep.subr.mxu0 0.0
    %911 = vmatpush1.xpose.msra.mxu0 0.0
    %912 = vmatprep.subr.mxu0 0.0
    %913 = vmatpush1.xpose.msra.mxu0 0.0
    %914 = vmatprep.subr.mxu0 0.0
    %915 = vmatpush1.xpose.msra.mxu0 0.0
    %916 = vmatprep.subr.mxu0 0.0
    %917 = vmatpush1.xpose.msra.mxu0 0.0
    %918 = vmatprep.subr.mxu0 0.0
    %919 = vmatpush1.xpose.msra.mxu0 0.0
    %920 = vmatprep.subr.mxu0 0.0
    %921 = vmatpush1.xpose.msra.mxu0 0.0
    %922 = vmatprep.subr.mxu0 0.0
    %923 = vmatpush1.xpose.msra.mxu0 0.0
    %924 = vmatprep.subr.mxu0 0.0
    %925 = vmatpush1.xpose.msra.mxu0 0.0
    %926 = vmatprep.subr.mxu0 0.0
    %927 = vmatpush1.xpose.msra.mxu0 0.0
    %928 = vmatprep.subr.mxu0 0.0
    %929 = vmatpush1.xpose.msra.mxu0 0.0
    %930 = vmatprep.subr.mxu0 0.0
    %931 = vmatpush1.xpose.msra.mxu0 0.0
    %932 = vmatprep.subr.mxu0 0.0
    %933 = vmatpush1.xpose.msra.mxu0 0.0
    %934 = vmatprep.subr.mxu0 0.0
    %935 = vmatpush1.xpose.msra.mxu0 0.0
    %936 = vmatprep.subr.mxu0 0.0
    %937 = vmatpush1.xpose.msra.mxu0 0.0
    %938 = vmatprep.subr.mxu0 0.0
    %939 = vmatpush1.xpose.msra.mxu0 0.0
    %940 = vmatprep.subr.mxu0 0.0
    %941 = vmatpush1.xpose.msra.mxu0 0.0
    %942 = vmatprep.subr.mxu0 0.0
    %943 = vmatpush1.xpose.msra.mxu0 0.0
    %944 = vmatprep.subr.mxu0 0.0
    %945 = vmatpush1.xpose.msra.mxu0 0.0
    %946 = vmatprep.subr.mxu0 0.0
    %947 = vmatpush1.xpose.msra.mxu0 0.0
    %948 = vmatprep.subr.mxu0 0.0
    %949 = vmatpush1.xpose.msra.mxu0 0.0
    %950 = vmatprep.subr.mxu0 0.0
    %951 = vmatpush1.xpose.msra.mxu0 0.0
    %952 = vmatprep.subr.mxu0 0.0
    %953 = vmatpush1.xpose.msra.mxu0 0.0
    %954 = vmatprep.subr.mxu0 0.0
    %955 = vmatpush1.xpose.msra.mxu0 0.0
    %956 = vmatprep.subr.mxu0 0.0
    %957 = vmatpush1.xpose.msra.mxu0 0.0
    %958 = vmatprep.subr.mxu0 0.0
    %959 = vmatpush1.xpose.msra.mxu0 0.0
    %960 = vmatprep.mubr.f32.mxu0 0.0
    %961 = vmatmul.mubr.f32.gmra.mrb[0].mxu0 %v892
    %v962 = vpop.f32.mrb[0].mxu0
    %v963 = vadd.f32 0.0, %v962
    %v964 = vpop.f32.mrb[0].mxu0
    %965 = vdwg.mxu0
    %v966 = vsel %vm47, %v885, 0.0
    %v967 = vsel %vm47, %v963, 0.0
    %v968 = vsel %vm168, %v966, 0.0
    %969 = vadd.xlane.f32.xlu0 %v968
    %v970 = vpop.xlane.xlu0 %969
    %v971 = vsel %vm168, %v967, 0.0
    %972 = vadd.xlane.f32.xlu0 %v971
    %v973 = vpop.xlane.xlu0 %972
    %v974 = vadd.f32 %v970, 1e-06
    %v975 = vadd.f32 %v973, 1e-06
    %976 = vrot.lane.b32.xlu0 %v147, 48
    %v977 = vpop.permute.xlu0 %976
    %v980 = vsel %vm168, %v966, 0
    %982 = vmatprep.subr.mxu0 0.0
    %983 = vmatpush1.msra.mxu0 %v977
    %984 = vmatprep.subr.mxu0 0.0
    %985 = vmatpush1.msra.mxu0 0.0
    %986 = vmatprep.subr.mxu0 0.0
    %987 = vmatpush1.msra.mxu0 0.0
    %988 = vmatprep.subr.mxu0 0.0
    %989 = vmatpush1.msra.mxu0 0.0
    %990 = vmatprep.subr.mxu0 0.0
    %991 = vmatpush1.msra.mxu0 0.0
    %992 = vmatprep.subr.mxu0 0.0
    %993 = vmatpush1.msra.mxu0 0.0
    %994 = vmatprep.subr.mxu0 0.0
    %995 = vmatpush1.msra.mxu0 0.0
    %996 = vmatprep.subr.mxu0 0.0
    %997 = vmatpush1.msra.mxu0 0.0
    %998 = vmatprep.subr.mxu0 0.0
    %999 = vmatpush1.msra.mxu0 0.0
    %1000 = vmatprep.subr.mxu0 0.0
    %1001 = vmatpush1.msra.mxu0 0.0
    %1002 = vmatprep.subr.mxu0 0.0
    %1003 = vmatpush1.msra.mxu0 0.0
    %1004 = vmatprep.subr.mxu0 0.0
    %1005 = vmatpush1.msra.mxu0 0.0
    %1006 = vmatprep.subr.mxu0 0.0
    %1007 = vmatpush1.msra.mxu0 0.0
    %1008 = vmatprep.subr.mxu0 0.0
    %1009 = vmatpush1.msra.mxu0 0.0
    %1010 = vmatprep.subr.mxu0 0.0
    %1011 = vmatpush1.msra.mxu0 0.0
    %1012 = vmatprep.subr.mxu0 0.0
    %1013 = vmatpush1.msra.mxu0 0.0
    %1014 = vmatprep.subr.mxu0 0.0
    %1015 = vmatpush1.msra.mxu0 0.0
    %1016 = vmatprep.subr.mxu0 0.0
    %1017 = vmatpush1.msra.mxu0 0.0
    %1018 = vmatprep.subr.mxu0 0.0
    %1019 = vmatpush1.msra.mxu0 0.0
    %1020 = vmatprep.subr.mxu0 0.0
    %1021 = vmatpush1.msra.mxu0 0.0
    %1022 = vmatprep.subr.mxu0 0.0
    %1023 = vmatpush1.msra.mxu0 0.0
    %1024 = vmatprep.subr.mxu0 0.0
    %1025 = vmatpush1.msra.mxu0 0.0
    %1026 = vmatprep.subr.mxu0 0.0
    %1027 = vmatpush1.msra.mxu0 0.0
    %1028 = vmatprep.subr.mxu0 0.0
    %1029 = vmatpush1.msra.mxu0 0.0
    %1030 = vmatprep.subr.mxu0 0.0
    %1031 = vmatpush1.msra.mxu0 0.0
    %1032 = vmatprep.subr.mxu0 0.0
    %1033 = vmatpush1.msra.mxu0 0.0
    %1034 = vmatprep.subr.mxu0 0.0
    %1035 = vmatpush1.msra.mxu0 0.0
    %1036 = vmatprep.subr.mxu0 0.0
    %1037 = vmatpush1.msra.mxu0 0.0
    %1038 = vmatprep.subr.mxu0 0.0
    %1039 = vmatpush1.msra.mxu0 0.0
    %1040 = vmatprep.subr.mxu0 0.0
    %1041 = vmatpush1.msra.mxu0 0.0
    %1042 = vmatprep.subr.mxu0 0.0
    %1043 = vmatpush1.msra.mxu0 0.0
    %1044 = vmatprep.subr.mxu0 0.0
    %1045 = vmatpush1.msra.mxu0 0.0
    %1046 = vmatprep.mubr.f32.mxu0 0.0
    %1047 = vmatmul.mubr.f32.gmra.mrb[0].mxu0 %v980
    %v1048 = vpop.f32.mrb[0].mxu0
    %v1049 = vadd.f32 0.0, %v1048
    %v1050 = vpop.f32.mrb[0].mxu0
    %1051 = vdwg.mxu0
    %1052 = vrot.lane.b32.xlu0 %v152, 48
    %v1053 = vpop.permute.xlu0 %1052
    %v1056 = vsel %vm168, %v967, 0
    %1058 = vmatprep.subr.mxu0 0.0
    %1059 = vmatpush1.msra.mxu0 %v1053
    %1060 = vmatprep.subr.mxu0 0.0
    %1061 = vmatpush1.msra.mxu0 0.0
    %1062 = vmatprep.subr.mxu0 0.0
    %1063 = vmatpush1.msra.mxu0 0.0
    %1064 = vmatprep.subr.mxu0 0.0
    %1065 = vmatpush1.msra.mxu0 0.0
    %1066 = vmatprep.subr.mxu0 0.0
    %1067 = vmatpush1.msra.mxu0 0.0
    %1068 = vmatprep.subr.mxu0 0.0
    %1069 = vmatpush1.msra.mxu0 0.0
    %1070 = vmatprep.subr.mxu0 0.0
    %1071 = vmatpush1.msra.mxu0 0.0
    %1072 = vmatprep.subr.mxu0 0.0
    %1073 = vmatpush1.msra.mxu0 0.0
    %1074 = vmatprep.subr.mxu0 0.0
    %1075 = vmatpush1.msra.mxu0 0.0
    %1076 = vmatprep.subr.mxu0 0.0
    %1077 = vmatpush1.msra.mxu0 0.0
    %1078 = vmatprep.subr.mxu0 0.0
    %1079 = vmatpush1.msra.mxu0 0.0
    %1080 = vmatprep.subr.mxu0 0.0
    %1081 = vmatpush1.msra.mxu0 0.0
    %1082 = vmatprep.subr.mxu0 0.0
    %1083 = vmatpush1.msra.mxu0 0.0
    %1084 = vmatprep.subr.mxu0 0.0
    %1085 = vmatpush1.msra.mxu0 0.0
    %1086 = vmatprep.subr.mxu0 0.0
    %1087 = vmatpush1.msra.mxu0 0.0
    %1088 = vmatprep.subr.mxu0 0.0
    %1089 = vmatpush1.msra.mxu0 0.0
    %1090 = vmatprep.subr.mxu0 0.0
    %1091 = vmatpush1.msra.mxu0 0.0
    %1092 = vmatprep.subr.mxu0 0.0
    %1093 = vmatpush1.msra.mxu0 0.0
    %1094 = vmatprep.subr.mxu0 0.0
    %1095 = vmatpush1.msra.mxu0 0.0
    %1096 = vmatprep.subr.mxu0 0.0
    %1097 = vmatpush1.msra.mxu0 0.0
    %1098 = vmatprep.subr.mxu0 0.0
    %1099 = vmatpush1.msra.mxu0 0.0
    %1100 = vmatprep.subr.mxu0 0.0
    %1101 = vmatpush1.msra.mxu0 0.0
    %1102 = vmatprep.subr.mxu0 0.0
    %1103 = vmatpush1.msra.mxu0 0.0
    %1104 = vmatprep.subr.mxu0 0.0
    %1105 = vmatpush1.msra.mxu0 0.0
    %1106 = vmatprep.subr.mxu0 0.0
    %1107 = vmatpush1.msra.mxu0 0.0
    %1108 = vmatprep.subr.mxu0 0.0
    %1109 = vmatpush1.msra.mxu0 0.0
    %1110 = vmatprep.subr.mxu0 0.0
    %1111 = vmatpush1.msra.mxu0 0.0
    %1112 = vmatprep.subr.mxu0 0.0
    %1113 = vmatpush1.msra.mxu0 0.0
    %1114 = vmatprep.subr.mxu0 0.0
    %1115 = vmatpush1.msra.mxu0 0.0
    %1116 = vmatprep.subr.mxu0 0.0
    %1117 = vmatpush1.msra.mxu0 0.0
    %1118 = vmatprep.subr.mxu0 0.0
    %1119 = vmatpush1.msra.mxu0 0.0
    %1120 = vmatprep.subr.mxu0 0.0
    %1121 = vmatpush1.msra.mxu0 0.0
    %1122 = vmatprep.mubr.f32.mxu0 0.0
    %1123 = vmatmul.mubr.f32.gmra.mrb[0].mxu0 %v1056
    %v1124 = vpop.f32.mrb[0].mxu0
    %v1125 = vadd.f32 0.0, %v1124
    %v1126 = vpop.f32.mrb[0].mxu0
    %1127 = vdwg.mxu0
    %v1128 = vrcp.pop %v974
    %v1129 = vmul.f32 %v1049, %v1128
    %v1130 = vrcp.pop %v975
    %v1131 = vmul.f32 %v1125, %v1130
    %1132 = vrot.lane.b32.xlu0 %v163, 104
    %v1133 = vpop.permute.xlu0 %1132
    %1134 = vrot.lane.b32.xlu0 %v163, 72
    %v1135 = vpop.permute.xlu0 %1134
    %v1136 = vsel %vm168, %v1133, 0
    %v1138 = vsel %vm168, %v1135, 0
    %1140 = vmatprep.subr.mxu0 0.0
    %1141 = vmatpush1.xpose.msra.mxu0 %v1138
    %1142 = vmatprep.subr.mxu0 0.0
    %1143 = vmatpush1.xpose.msra.mxu0 0.0
    %1144 = vmatprep.subr.mxu0 0.0
    %1145 = vmatpush1.xpose.msra.mxu0 0.0
    %1146 = vmatprep.subr.mxu0 0.0
    %1147 = vmatpush1.xpose.msra.mxu0 0.0
    %1148 = vmatprep.subr.mxu0 0.0
    %1149 = vmatpush1.xpose.msra.mxu0 0.0
    %1150 = vmatprep.subr.mxu0 0.0
    %1151 = vmatpush1.xpose.msra.mxu0 0.0
    %1152 = vmatprep.subr.mxu0 0.0
    %1153 = vmatpush1.xpose.msra.mxu0 0.0
    %1154 = vmatprep.subr.mxu0 0.0
    %1155 = vmatpush1.xpose.msra.mxu0 0.0
    %1156 = vmatprep.subr.mxu0 0.0
    %1157 = vmatpush1.xpose.msra.mxu0 0.0
    %1158 = vmatprep.subr.mxu0 0.0
    %1159 = vmatpush1.xpose.msra.mxu0 0.0
    %1160 = vmatprep.subr.mxu0 0.0
    %1161 = vmatpush1.xpose.msra.mxu0 0.0
    %1162 = vmatprep.subr.mxu0 0.0
    %1163 = vmatpush1.xpose.msra.mxu0 0.0
    %1164 = vmatprep.subr.mxu0 0.0
    %1165 = vmatpush1.xpose.msra.mxu0 0.0
    %1166 = vmatprep.subr.mxu0 0.0
    %1167 = vmatpush1.xpose.msra.mxu0 0.0
    %1168 = vmatprep.subr.mxu0 0.0
    %1169 = vmatpush1.xpose.msra.mxu0 0.0
    %1170 = vmatprep.subr.mxu0 0.0
    %1171 = vmatpush1.xpose.msra.mxu0 0.0
    %1172 = vmatprep.subr.mxu0 0.0
    %1173 = vmatpush1.xpose.msra.mxu0 0.0
    %1174 = vmatprep.subr.mxu0 0.0
    %1175 = vmatpush1.xpose.msra.mxu0 0.0
    %1176 = vmatprep.subr.mxu0 0.0
    %1177 = vmatpush1.xpose.msra.mxu0 0.0
    %1178 = vmatprep.subr.mxu0 0.0
    %1179 = vmatpush1.xpose.msra.mxu0 0.0
    %1180 = vmatprep.subr.mxu0 0.0
    %1181 = vmatpush1.xpose.msra.mxu0 0.0
    %1182 = vmatprep.subr.mxu0 0.0
    %1183 = vmatpush1.xpose.msra.mxu0 0.0
    %1184 = vmatprep.subr.mxu0 0.0
    %1185 = vmatpush1.xpose.msra.mxu0 0.0
    %1186 = vmatprep.subr.mxu0 0.0
    %1187 = vmatpush1.xpose.msra.mxu0 0.0
    %1188 = vmatprep.subr.mxu0 0.0
    %1189 = vmatpush1.xpose.msra.mxu0 0.0
    %1190 = vmatprep.subr.mxu0 0.0
    %1191 = vmatpush1.xpose.msra.mxu0 0.0
    %1192 = vmatprep.subr.mxu0 0.0
    %1193 = vmatpush1.xpose.msra.mxu0 0.0
    %1194 = vmatprep.subr.mxu0 0.0
    %1195 = vmatpush1.xpose.msra.mxu0 0.0
    %1196 = vmatprep.subr.mxu0 0.0
    %1197 = vmatpush1.xpose.msra.mxu0 0.0
    %1198 = vmatprep.subr.mxu0 0.0
    %1199 = vmatpush1.xpose.msra.mxu0 0.0
    %1200 = vmatprep.subr.mxu0 0.0
    %1201 = vmatpush1.xpose.msra.mxu0 0.0
    %1202 = vmatprep.subr.mxu0 0.0
    %1203 = vmatpush1.xpose.msra.mxu0 0.0
    %1204 = vmatprep.mubr.f32.mxu0 0.0
    %1205 = vmatmul.mubr.f32.gmra.mrb[0].mxu0 %v1136
    %v1206 = vpop.f32.mrb[0].mxu0
    %v1207 = vadd.f32 0.0, %v1206
    %v1208 = vpop.f32.mrb[0].mxu0
    %1209 = vdwg.mxu0
    %1210 = vrot.lane.b32.xlu0 %v164, 104
    %v1211 = vpop.permute.xlu0 %1210
    %1212 = vrot.lane.b32.xlu0 %v164, 72
    %v1213 = vpop.permute.xlu0 %1212
    %v1214 = vsel %vm168, %v1211, 0
    %v1216 = vsel %vm168, %v1213, 0
    %1218 = vmatprep.subr.mxu0 0.0
    %1219 = vmatpush1.xpose.msra.mxu0 %v1216
    %1220 = vmatprep.subr.mxu0 0.0
    %1221 = vmatpush1.xpose.msra.mxu0 0.0
    %1222 = vmatprep.subr.mxu0 0.0
    %1223 = vmatpush1.xpose.msra.mxu0 0.0
    %1224 = vmatprep.subr.mxu0 0.0
    %1225 = vmatpush1.xpose.msra.mxu0 0.0
    %1226 = vmatprep.subr.mxu0 0.0
    %1227 = vmatpush1.xpose.msra.mxu0 0.0
    %1228 = vmatprep.subr.mxu0 0.0
    %1229 = vmatpush1.xpose.msra.mxu0 0.0
    %1230 = vmatprep.subr.mxu0 0.0
    %1231 = vmatpush1.xpose.msra.mxu0 0.0
    %1232 = vmatprep.subr.mxu0 0.0
    %1233 = vmatpush1.xpose.msra.mxu0 0.0
    %1234 = vmatprep.subr.mxu0 0.0
    %1235 = vmatpush1.xpose.msra.mxu0 0.0
    %1236 = vmatprep.subr.mxu0 0.0
    %1237 = vmatpush1.xpose.msra.mxu0 0.0
    %1238 = vmatprep.subr.mxu0 0.0
    %1239 = vmatpush1.xpose.msra.mxu0 0.0
    %1240 = vmatprep.subr.mxu0 0.0
    %1241 = vmatpush1.xpose.msra.mxu0 0.0
    %1242 = vmatprep.subr.mxu0 0.0
    %1243 = vmatpush1.xpose.msra.mxu0 0.0
    %1244 = vmatprep.subr.mxu0 0.0
    %1245 = vmatpush1.xpose.msra.mxu0 0.0
    %1246 = vmatprep.subr.mxu0 0.0
    %1247 = vmatpush1.xpose.msra.mxu0 0.0
    %1248 = vmatprep.subr.mxu0 0.0
    %1249 = vmatpush1.xpose.msra.mxu0 0.0
    %1250 = vmatprep.subr.mxu0 0.0
    %1251 = vmatpush1.xpose.msra.mxu0 0.0
    %1252 = vmatprep.subr.mxu0 0.0
    %1253 = vmatpush1.xpose.msra.mxu0 0.0
    %1254 = vmatprep.subr.mxu0 0.0
    %1255 = vmatpush1.xpose.msra.mxu0 0.0
    %1256 = vmatprep.subr.mxu0 0.0
    %1257 = vmatpush1.xpose.msra.mxu0 0.0
    %1258 = vmatprep.subr.mxu0 0.0
    %1259 = vmatpush1.xpose.msra.mxu0 0.0
    %1260 = vmatprep.subr.mxu0 0.0
    %1261 = vmatpush1.xpose.msra.mxu0 0.0
    %1262 = vmatprep.subr.mxu0 0.0
    %1263 = vmatpush1.xpose.msra.mxu0 0.0
    %1264 = vmatprep.subr.mxu0 0.0
    %1265 = vmatpush1.xpose.msra.mxu0 0.0
    %1266 = vmatprep.subr.mxu0 0.0
    %1267 = vmatpush1.xpose.msra.mxu0 0.0
    %1268 = vmatprep.subr.mxu0 0.0
    %1269 = vmatpush1.xpose.msra.mxu0 0.0
    %1270 = vmatprep.subr.mxu0 0.0
    %1271 = vmatpush1.xpose.msra.mxu0 0.0
    %1272 = vmatprep.subr.mxu0 0.0
    %1273 = vmatpush1.xpose.msra.mxu0 0.0
    %1274 = vmatprep.subr.mxu0 0.0
    %1275 = vmatpush1.xpose.msra.mxu0 0.0
    %1276 = vmatprep.subr.mxu0 0.0
    %1277 = vmatpush1.xpose.msra.mxu0 0.0
    %1278 = vmatprep.subr.mxu0 0.0
    %1279 = vmatpush1.xpose.msra.mxu0 0.0
    %1280 = vmatprep.subr.mxu0 0.0
    %1281 = vmatpush1.xpose.msra.mxu0 0.0
    %1282 = vmatprep.mubr.f32.mxu0 0.0
    %1283 = vmatmul.mubr.f32.gmra.mrb[0].mxu0 %v1214
    %v1284 = vpop.f32.mrb[0].mxu0
    %v1285 = vadd.f32 0.0, %v1284
    %v1286 = vpop.f32.mrb[0].mxu0
    %1287 = vdwg.mxu0
    %v1288 = vsel %vm47, %v1207, 0.0
    %v1289 = vsel %vm47, %v1285, 0.0
    %v1290 = vsel %vm168, %v1288, 0.0
    %1291 = vadd.xlane.f32.xlu0 %v1290
    %v1292 = vpop.xlane.xlu0 %1291
    %v1293 = vsel %vm168, %v1289, 0.0
    %1294 = vadd.xlane.f32.xlu0 %v1293
    %v1295 = vpop.xlane.xlu0 %1294
    %v1296 = vadd.f32 %v1292, 1e-06
    %v1297 = vadd.f32 %v1295, 1e-06
    %1298 = vrot.lane.b32.xlu0 %v147, 40
    %v1299 = vpop.permute.xlu0 %1298
    %v1302 = vsel %vm168, %v1288, 0
    %1304 = vmatprep.subr.mxu0 0.0
    %1305 = vmatpush1.msra.mxu0 %v1299
    %1306 = vmatprep.subr.mxu0 0.0
    %1307 = vmatpush1.msra.mxu0 0.0
    %1308 = vmatprep.subr.mxu0 0.0
    %1309 = vmatpush1.msra.mxu0 0.0
    %1310 = vmatprep.subr.mxu0 0.0
    %1311 = vmatpush1.msra.mxu0 0.0
    %1312 = vmatprep.subr.mxu0 0.0
    %1313 = vmatpush1.msra.mxu0 0.0
    %1314 = vmatprep.subr.mxu0 0.0
    %1315 = vmatpush1.msra.mxu0 0.0
    %1316 = vmatprep.subr.mxu0 0.0
    %1317 = vmatpush1.msra.mxu0 0.0
    %1318 = vmatprep.subr.mxu0 0.0
    %1319 = vmatpush1.msra.mxu0 0.0
    %1320 = vmatprep.subr.mxu0 0.0
    %1321 = vmatpush1.msra.mxu0 0.0
    %1322 = vmatprep.subr.mxu0 0.0
    %1323 = vmatpush1.msra.mxu0 0.0
    %1324 = vmatprep.subr.mxu0 0.0
    %1325 = vmatpush1.msra.mxu0 0.0
    %1326 = vmatprep.subr.mxu0 0.0
    %1327 = vmatpush1.msra.mxu0 0.0
    %1328 = vmatprep.subr.mxu0 0.0
    %1329 = vmatpush1.msra.mxu0 0.0
    %1330 = vmatprep.subr.mxu0 0.0
    %1331 = vmatpush1.msra.mxu0 0.0
    %1332 = vmatprep.subr.mxu0 0.0
    %1333 = vmatpush1.msra.mxu0 0.0
    %1334 = vmatprep.subr.mxu0 0.0
    %1335 = vmatpush1.msra.mxu0 0.0
    %1336 = vmatprep.subr.mxu0 0.0
    %1337 = vmatpush1.msra.mxu0 0.0
    %1338 = vmatprep.subr.mxu0 0.0
    %1339 = vmatpush1.msra.mxu0 0.0
    %1340 = vmatprep.subr.mxu0 0.0
    %1341 = vmatpush1.msra.mxu0 0.0
    %1342 = vmatprep.subr.mxu0 0.0
    %1343 = vmatpush1.msra.mxu0 0.0
    %1344 = vmatprep.subr.mxu0 0.0
    %1345 = vmatpush1.msra.mxu0 0.0
    %1346 = vmatprep.subr.mxu0 0.0
    %1347 = vmatpush1.msra.mxu0 0.0
    %1348 = vmatprep.subr.mxu0 0.0
    %1349 = vmatpush1.msra.mxu0 0.0
    %1350 = vmatprep.subr.mxu0 0.0
    %1351 = vmatpush1.msra.mxu0 0.0
    %1352 = vmatprep.subr.mxu0 0.0
    %1353 = vmatpush1.msra.mxu0 0.0
    %1354 = vmatprep.subr.mxu0 0.0
    %1355 = vmatpush1.msra.mxu0 0.0
    %1356 = vmatprep.subr.mxu0 0.0
    %1357 = vmatpush1.msra.mxu0 0.0
    %1358 = vmatprep.subr.mxu0 0.0
    %1359 = vmatpush1.msra.mxu0 0.0
    %1360 = vmatprep.subr.mxu0 0.0
    %1361 = vmatpush1.msra.mxu0 0.0
    %1362 = vmatprep.subr.mxu0 0.0
    %1363 = vmatpush1.msra.mxu0 0.0
    %1364 = vmatprep.subr.mxu0 0.0
    %1365 = vmatpush1.msra.mxu0 0.0
    %1366 = vmatprep.subr.mxu0 0.0
    %1367 = vmatpush1.msra.mxu0 0.0
    %1368 = vmatprep.mubr.f32.mxu0 0.0
    %1369 = vmatmul.mubr.f32.gmra.mrb[0].mxu0 %v1302
    %v1370 = vpop.f32.mrb[0].mxu0
    %v1371 = vadd.f32 0.0, %v1370
    %v1372 = vpop.f32.mrb[0].mxu0
    %1373 = vdwg.mxu0
    %1374 = vrot.lane.b32.xlu0 %v152, 40
    %v1375 = vpop.permute.xlu0 %1374
    %v1378 = vsel %vm168, %v1289, 0
    %1380 = vmatprep.subr.mxu0 0.0
    %1381 = vmatpush1.msra.mxu0 %v1375
    %1382 = vmatprep.subr.mxu0 0.0
    %1383 = vmatpush1.msra.mxu0 0.0
    %1384 = vmatprep.subr.mxu0 0.0
    %1385 = vmatpush1.msra.mxu0 0.0
    %1386 = vmatprep.subr.mxu0 0.0
    %1387 = vmatpush1.msra.mxu0 0.0
    %1388 = vmatprep.subr.mxu0 0.0
    %1389 = vmatpush1.msra.mxu0 0.0
    %1390 = vmatprep.subr.mxu0 0.0
    %1391 = vmatpush1.msra.mxu0 0.0
    %1392 = vmatprep.subr.mxu0 0.0
    %1393 = vmatpush1.msra.mxu0 0.0
    %1394 = vmatprep.subr.mxu0 0.0
    %1395 = vmatpush1.msra.mxu0 0.0
    %1396 = vmatprep.subr.mxu0 0.0
    %1397 = vmatpush1.msra.mxu0 0.0
    %1398 = vmatprep.subr.mxu0 0.0
    %1399 = vmatpush1.msra.mxu0 0.0
    %1400 = vmatprep.subr.mxu0 0.0
    %1401 = vmatpush1.msra.mxu0 0.0
    %1402 = vmatprep.subr.mxu0 0.0
    %1403 = vmatpush1.msra.mxu0 0.0
    %1404 = vmatprep.subr.mxu0 0.0
    %1405 = vmatpush1.msra.mxu0 0.0
    %1406 = vmatprep.subr.mxu0 0.0
    %1407 = vmatpush1.msra.mxu0 0.0
    %1408 = vmatprep.subr.mxu0 0.0
    %1409 = vmatpush1.msra.mxu0 0.0
    %1410 = vmatprep.subr.mxu0 0.0
    %1411 = vmatpush1.msra.mxu0 0.0
    %1412 = vmatprep.subr.mxu0 0.0
    %1413 = vmatpush1.msra.mxu0 0.0
    %1414 = vmatprep.subr.mxu0 0.0
    %1415 = vmatpush1.msra.mxu0 0.0
    %1416 = vmatprep.subr.mxu0 0.0
    %1417 = vmatpush1.msra.mxu0 0.0
    %1418 = vmatprep.subr.mxu0 0.0
    %1419 = vmatpush1.msra.mxu0 0.0
    %1420 = vmatprep.subr.mxu0 0.0
    %1421 = vmatpush1.msra.mxu0 0.0
    %1422 = vmatprep.subr.mxu0 0.0
    %1423 = vmatpush1.msra.mxu0 0.0
    %1424 = vmatprep.subr.mxu0 0.0
    %1425 = vmatpush1.msra.mxu0 0.0
    %1426 = vmatprep.subr.mxu0 0.0
    %1427 = vmatpush1.msra.mxu0 0.0
    %1428 = vmatprep.subr.mxu0 0.0
    %1429 = vmatpush1.msra.mxu0 0.0
    %1430 = vmatprep.subr.mxu0 0.0
    %1431 = vmatpush1.msra.mxu0 0.0
    %1432 = vmatprep.subr.mxu0 0.0
    %1433 = vmatpush1.msra.mxu0 0.0
    %1434 = vmatprep.subr.mxu0 0.0
    %1435 = vmatpush1.msra.mxu0 0.0
    %1436 = vmatprep.subr.mxu0 0.0
    %1437 = vmatpush1.msra.mxu0 0.0
    %1438 = vmatprep.subr.mxu0 0.0
    %1439 = vmatpush1.msra.mxu0 0.0
    %1440 = vmatprep.subr.mxu0 0.0
    %1441 = vmatpush1.msra.mxu0 0.0
    %1442 = vmatprep.subr.mxu0 0.0
    %1443 = vmatpush1.msra.mxu0 0.0
    %1444 = vmatprep.mubr.f32.mxu0 0.0
    %1445 = vmatmul.mubr.f32.gmra.mrb[0].mxu0 %v1378
    %v1446 = vpop.f32.mrb[0].mxu0
    %v1447 = vadd.f32 0.0, %v1446
    %v1448 = vpop.f32.mrb[0].mxu0
    %1449 = vdwg.mxu0
    %v1450 = vrcp.pop %v1296
    %v1451 = vmul.f32 %v1371, %v1450
    %v1452 = vrcp.pop %v1297
    %v1453 = vmul.f32 %v1447, %v1452
    %1456 = vrot.lane.b32.xlu0 %v807, 8
    %v1457 = vpop.permute.xlu0 %1456
    %1458 = vrot.lane.b32.xlu0 %v809, 8
    %v1459 = vpop.permute.xlu0 %1458
    %1464 = vrot.lane.b32.xlu0 %v1129, 16
    %v1465 = vpop.permute.xlu0 %1464
    %1466 = vrot.lane.b32.xlu0 %v1131, 16
    %v1467 = vpop.permute.xlu0 %1466
    %1472 = vrot.lane.b32.xlu0 %v1451, 24
    %v1473 = vpop.permute.xlu0 %1472
    %1474 = vrot.lane.b32.xlu0 %v1453, 24
    %v1475 = vpop.permute.xlu0 %1474
    %v1478 = vsel %vm168, %v485, %v1457
    %v1479 = vsel %vm168, %v487, %v1459
    %vm1480 = vcmask 130048
    %v1481 = vsel %vm1480, %v1478, %v1465
    %v1482 = vsel %vm1480, %v1479, %v1467
    %vm1483 = vcmask 195584
    %v1484 = vsel %vm1483, %v1481, %v1473
    %v1485 = vsel %vm1483, %v1482, %v1475
    %v1487 = vsel %vm73, %v1484, 0
    %v1490 = vsel %vm73, %v1485, 0
    %1492 = vmatprep.subr.mxu0 0.0
    %1493 = vmatpush1.msra.mxu0 %v52
    %1494 = vmatprep.subr.mxu0 0.0
    %1495 = vmatpush1.msra.mxu0 %v53
    %1496 = vmatprep.subr.mxu0 0.0
    %1497 = vmatpush1.msra.mxu0 %v54
    %1498 = vmatprep.subr.mxu0 0.0
    %1499 = vmatpush1.msra.mxu0 %v55
    %1500 = vmatprep.subr.mxu0 0.0
    %1501 = vmatpush1.msra.mxu0 0.0
    %1502 = vmatprep.subr.mxu0 0.0
    %1503 = vmatpush1.msra.mxu0 0.0
    %1504 = vmatprep.subr.mxu0 0.0
    %1505 = vmatpush1.msra.mxu0 0.0
    %1506 = vmatprep.subr.mxu0 0.0
    %1507 = vmatpush1.msra.mxu0 0.0
    %1508 = vmatprep.subr.mxu0 0.0
    %1509 = vmatpush1.msra.mxu0 0.0
    %1510 = vmatprep.subr.mxu0 0.0
    %1511 = vmatpush1.msra.mxu0 0.0
    %1512 = vmatprep.subr.mxu0 0.0
    %1513 = vmatpush1.msra.mxu0 0.0
    %1514 = vmatprep.subr.mxu0 0.0
    %1515 = vmatpush1.msra.mxu0 0.0
    %1516 = vmatprep.subr.mxu0 0.0
    %1517 = vmatpush1.msra.mxu0 0.0
    %1518 = vmatprep.subr.mxu0 0.0
    %1519 = vmatpush1.msra.mxu0 0.0
    %1520 = vmatprep.subr.mxu0 0.0
    %1521 = vmatpush1.msra.mxu0 0.0
    %1522 = vmatprep.subr.mxu0 0.0
    %1523 = vmatpush1.msra.mxu0 0.0
    %1524 = vmatprep.subr.mxu0 0.0
    %1525 = vmatpush1.msra.mxu0 0.0
    %1526 = vmatprep.subr.mxu0 0.0
    %1527 = vmatpush1.msra.mxu0 0.0
    %1528 = vmatprep.subr.mxu0 0.0
    %1529 = vmatpush1.msra.mxu0 0.0
    %1530 = vmatprep.subr.mxu0 0.0
    %1531 = vmatpush1.msra.mxu0 0.0
    %1532 = vmatprep.subr.mxu0 0.0
    %1533 = vmatpush1.msra.mxu0 0.0
    %1534 = vmatprep.subr.mxu0 0.0
    %1535 = vmatpush1.msra.mxu0 0.0
    %1536 = vmatprep.subr.mxu0 0.0
    %1537 = vmatpush1.msra.mxu0 0.0
    %1538 = vmatprep.subr.mxu0 0.0
    %1539 = vmatpush1.msra.mxu0 0.0
    %1540 = vmatprep.subr.mxu0 0.0
    %1541 = vmatpush1.msra.mxu0 0.0
    %1542 = vmatprep.subr.mxu0 0.0
    %1543 = vmatpush1.msra.mxu0 0.0
    %1544 = vmatprep.subr.mxu0 0.0
    %1545 = vmatpush1.msra.mxu0 0.0
    %1546 = vmatprep.subr.mxu0 0.0
    %1547 = vmatpush1.msra.mxu0 0.0
    %1548 = vmatprep.subr.mxu0 0.0
    %1549 = vmatpush1.msra.mxu0 0.0
    %1550 = vmatprep.subr.mxu0 0.0
    %1551 = vmatpush1.msra.mxu0 0.0
    %1552 = vmatprep.subr.mxu0 0.0
    %1553 = vmatpush1.msra.mxu0 0.0
    %1554 = vmatprep.subr.mxu0 0.0
    %1555 = vmatpush1.msra.mxu0 0.0
    %1556 = vmatprep.mubr.f32.mxu0 0.0
    %1557 = vmatmul.mubr.f32.gmra.mrb[0].mxu0 %v1487
    %v1558 = vpop.f32.mrb[0].mxu0
    %v1559 = vadd.f32 0.0, %v1558
    %v1560 = vpop.f32.mrb[0].mxu0
    %1561 = vmatprep.mubr.f32.mxu0 0.0
    %1562 = vmatmul.mubr.f32.gmra.mrb[0].mxu0 %v1490
    %v1563 = vpop.f32.mrb[0].mxu0
    %v1564 = vadd.f32 0.0, %v1563
    %v1565 = vpop.f32.mrb[0].mxu0
    %1566 = vdwg.mxu0
    %v1567 = vadd.f32 %v41, %v1559
    %v1568 = vadd.f32 %v42, %v1564
    %v1569 = vlaneseq
    %v1570 = vshrl.u32 %v1569, 7
    %v1571 = vsub.s32 2, %v1570
    %v1572 = vrot.slane %v68, %v1571
    %v1573 = vadd.f32 %v1567, %v1572
    %v1574 = vadd.f32 %v1568, %v1572
    %v1575 = vsel %vm73, %v1573, 0.0
    %1576 = vadd.xlane.f32.xlu0 %v1575
    %v1577 = vpop.xlane.xlu0 %1576
    %v1578 = vsel %vm73, %v1574, 0.0
    %1579 = vadd.xlane.f32.xlu0 %v1578
    %v1580 = vpop.xlane.xlu0 %1579
    %v1581 = vrcp.pop 32.0
    %v1582 = vmul.f32 %v1577, %v1581
    %v1583 = vmul.f32 %v1580, %v1581
    %v1584 = vsub.f32 %v1573, %v1582
    %v1585 = vsub.f32 %v1574, %v1583
    %v1586 = vmul.f32 %v1584, %v1584
    %v1587 = vmul.f32 %v1585, %v1585
    %v1588 = vsel %vm73, %v1586, 0.0
    %1589 = vadd.xlane.f32.xlu0 %v1588
    %v1590 = vpop.xlane.xlu0 %1589
    %v1591 = vsel %vm73, %v1587, 0.0
    %1592 = vadd.xlane.f32.xlu0 %v1591
    %v1593 = vpop.xlane.xlu0 %1592
    %v1594 = vmul.f32 %v1590, %v1581
    %v1595 = vmul.f32 %v1593, %v1581
    %v1596 = vadd.f32 %v1594, 1e-05
    %v1597 = vadd.f32 %v1595, 1e-05
    %v1598 = vrsqrt.pop %v1596
    %v1599 = vrsqrt.pop %v1597
    %v1600 = vmul.f32 %v1584, %v1598
    %v1601 = vmul.f32 %v1585, %v1599
    %v1602 = vlaneseq
    %v1603 = vshrl.u32 %v1602, 7
    %v1604 = vsub.s32 3, %v1603
    %v1605 = vrot.slane %v68, %v1604
    %v1606 = vmul.f32 %v1600, %v1605
    %v1607 = vmul.f32 %v1601, %v1605
    %v1608 = vlaneseq
    %v1609 = vshrl.u32 %v1608, 7
    %v1610 = vsub.s32 4, %v1609
    %v1611 = vrot.slane %v68, %v1610
    %v1612 = vadd.f32 %v1606, %v1611
    %v1613 = vadd.f32 %v1607, %v1611
    %v1614 = vlaneseq
    %v1615 = vshrl.u32 %v1614, 7
    %v1616 = vsub.s32 1, %v1615
    %v1617 = vrot.slane %v68, %v1616
    %v1619 = vsel %vm73, %v1612, 0
    %v1622 = vsel %vm73, %v1613, 0
    %1624 = vmatprep.subr.mxu0 0.0
    %1625 = vmatpush1.msra.mxu0 %v56
    %1626 = vmatprep.subr.mxu0 0.0
    %1627 = vmatpush1.msra.mxu0 %v57
    %1628 = vmatprep.subr.mxu0 0.0
    %1629 = vmatpush1.msra.mxu0 %v58
    %1630 = vmatprep.subr.mxu0 0.0
    %1631 = vmatpush1.msra.mxu0 %v59
    %1632 = vmatprep.subr.mxu0 0.0
    %1633 = vmatpush1.msra.mxu0 0.0
    %1634 = vmatprep.subr.mxu0 0.0
    %1635 = vmatpush1.msra.mxu0 0.0
    %1636 = vmatprep.subr.mxu0 0.0
    %1637 = vmatpush1.msra.mxu0 0.0
    %1638 = vmatprep.subr.mxu0 0.0
    %1639 = vmatpush1.msra.mxu0 0.0
    %1640 = vmatprep.subr.mxu0 0.0
    %1641 = vmatpush1.msra.mxu0 0.0
    %1642 = vmatprep.subr.mxu0 0.0
    %1643 = vmatpush1.msra.mxu0 0.0
    %1644 = vmatprep.subr.mxu0 0.0
    %1645 = vmatpush1.msra.mxu0 0.0
    %1646 = vmatprep.subr.mxu0 0.0
    %1647 = vmatpush1.msra.mxu0 0.0
    %1648 = vmatprep.subr.mxu0 0.0
    %1649 = vmatpush1.msra.mxu0 0.0
    %1650 = vmatprep.subr.mxu0 0.0
    %1651 = vmatpush1.msra.mxu0 0.0
    %1652 = vmatprep.subr.mxu0 0.0
    %1653 = vmatpush1.msra.mxu0 0.0
    %1654 = vmatprep.subr.mxu0 0.0
    %1655 = vmatpush1.msra.mxu0 0.0
    %1656 = vmatprep.subr.mxu0 0.0
    %1657 = vmatpush1.msra.mxu0 0.0
    %1658 = vmatprep.subr.mxu0 0.0
    %1659 = vmatpush1.msra.mxu0 0.0
    %1660 = vmatprep.subr.mxu0 0.0
    %1661 = vmatpush1.msra.mxu0 0.0
    %1662 = vmatprep.subr.mxu0 0.0
    %1663 = vmatpush1.msra.mxu0 0.0
    %1664 = vmatprep.subr.mxu0 0.0
    %1665 = vmatpush1.msra.mxu0 0.0
    %1666 = vmatprep.subr.mxu0 0.0
    %1667 = vmatpush1.msra.mxu0 0.0
    %1668 = vmatprep.subr.mxu0 0.0
    %1669 = vmatpush1.msra.mxu0 0.0
    %1670 = vmatprep.subr.mxu0 0.0
    %1671 = vmatpush1.msra.mxu0 0.0
    %1672 = vmatprep.subr.mxu0 0.0
    %1673 = vmatpush1.msra.mxu0 0.0
    %1674 = vmatprep.subr.mxu0 0.0
    %1675 = vmatpush1.msra.mxu0 0.0
    %1676 = vmatprep.subr.mxu0 0.0
    %1677 = vmatpush1.msra.mxu0 0.0
    %1678 = vmatprep.subr.mxu0 0.0
    %1679 = vmatpush1.msra.mxu0 0.0
    %1680 = vmatprep.subr.mxu0 0.0
    %1681 = vmatpush1.msra.mxu0 0.0
    %1682 = vmatprep.subr.mxu0 0.0
    %1683 = vmatpush1.msra.mxu0 0.0
    %1684 = vmatprep.subr.mxu0 0.0
    %1685 = vmatpush1.msra.mxu0 0.0
    %1686 = vmatprep.subr.mxu0 0.0
    %1687 = vmatpush1.msra.mxu0 0.0
    %1688 = vmatprep.mubr.f32.mxu0 0.0
    %1689 = vmatmul.mubr.f32.gmra.mrb[0].mxu0 %v1619
    %v1690 = vpop.f32.mrb[0].mxu0
    %v1691 = vadd.f32 %v1617, %v1690
    %v1692 = vpop.f32.mrb[0].mxu0
    %1693 = vmatprep.mubr.f32.mxu0 0.0
    %1694 = vmatmul.mubr.f32.gmra.mrb[0].mxu0 %v1622
    %v1695 = vpop.f32.mrb[0].mxu0
    %v1696 = vadd.f32 %v1617, %v1695
    %v1697 = vpop.f32.mrb[0].mxu0
    %1698 = vdwg.mxu0
    %v1699 = vmax.f32 %v1691, 0.0
    %v1700 = vmax.f32 %v1696, 0.0
    %v1701 = vlaneseq
    %v1702 = vshrl.u32 %v1701, 7
    %v1703 = vsub.s32 5, %v1702
    %v1704 = vrot.slane %v68, %v1703
    %vm1705 = vcmask 523264
    %v1707 = vsel %vm1705, %v1699, 0
    %v1710 = vsel %vm1705, %v1700, 0
    %1712 = vmatprep.subr.mxu0 0.0
    %1713 = vmatpush1.msra.mxu0 %v60
    %1714 = vmatprep.subr.mxu0 0.0
    %1715 = vmatpush1.msra.mxu0 %v61
    %1716 = vmatprep.subr.mxu0 0.0
    %1717 = vmatpush1.msra.mxu0 %v62
    %1718 = vmatprep.subr.mxu0 0.0
    %1719 = vmatpush1.msra.mxu0 %v63
    %1720 = vmatprep.subr.mxu0 0.0
    %1721 = vmatpush1.msra.mxu0 %v64
    %1722 = vmatprep.subr.mxu0 0.0
    %1723 = vmatpush1.msra.mxu0 %v65
    %1724 = vmatprep.subr.mxu0 0.0
    %1725 = vmatpush1.msra.mxu0 %v66
    %1726 = vmatprep.subr.mxu0 0.0
    %1727 = vmatpush1.msra.mxu0 %v67
    %1728 = vmatprep.subr.mxu0 0.0
    %1729 = vmatpush1.msra.mxu0 0.0
    %1730 = vmatprep.subr.mxu0 0.0
    %1731 = vmatpush1.msra.mxu0 0.0
    %1732 = vmatprep.subr.mxu0 0.0
    %1733 = vmatpush1.msra.mxu0 0.0
    %1734 = vmatprep.subr.mxu0 0.0
    %1735 = vmatpush1.msra.mxu0 0.0
    %1736 = vmatprep.subr.mxu0 0.0
    %1737 = vmatpush1.msra.mxu0 0.0
    %1738 = vmatprep.subr.mxu0 0.0
    %1739 = vmatpush1.msra.mxu0 0.0
    %1740 = vmatprep.subr.mxu0 0.0
    %1741 = vmatpush1.msra.mxu0 0.0
    %1742 = vmatprep.subr.mxu0 0.0
    %1743 = vmatpush1.msra.mxu0 0.0
    %1744 = vmatprep.subr.mxu0 0.0
    %1745 = vmatpush1.msra.mxu0 0.0
    %1746 = vmatprep.subr.mxu0 0.0
    %1747 = vmatpush1.msra.mxu0 0.0
    %1748 = vmatprep.subr.mxu0 0.0
    %1749 = vmatpush1.msra.mxu0 0.0
    %1750 = vmatprep.subr.mxu0 0.0
    %1751 = vmatpush1.msra.mxu0 0.0
    %1752 = vmatprep.subr.mxu0 0.0
    %1753 = vmatpush1.msra.mxu0 0.0
    %1754 = vmatprep.subr.mxu0 0.0
    %1755 = vmatpush1.msra.mxu0 0.0
    %1756 = vmatprep.subr.mxu0 0.0
    %1757 = vmatpush1.msra.mxu0 0.0
    %1758 = vmatprep.subr.mxu0 0.0
    %1759 = vmatpush1.msra.mxu0 0.0
    %1760 = vmatprep.subr.mxu0 0.0
    %1761 = vmatpush1.msra.mxu0 0.0
    %1762 = vmatprep.subr.mxu0 0.0
    %1763 = vmatpush1.msra.mxu0 0.0
    %1764 = vmatprep.subr.mxu0 0.0
    %1765 = vmatpush1.msra.mxu0 0.0
    %1766 = vmatprep.subr.mxu0 0.0
    %1767 = vmatpush1.msra.mxu0 0.0
    %1768 = vmatprep.subr.mxu0 0.0
    %1769 = vmatpush1.msra.mxu0 0.0
    %1770 = vmatprep.subr.mxu0 0.0
    %1771 = vmatpush1.msra.mxu0 0.0
    %1772 = vmatprep.subr.mxu0 0.0
    %1773 = vmatpush1.msra.mxu0 0.0
    %1774 = vmatprep.subr.mxu0 0.0
    %1775 = vmatpush1.msra.mxu0 0.0
    %1776 = vmatprep.mubr.f32.mxu0 0.0
    %1777 = vmatmul.mubr.f32.gmra.mrb[0].mxu0 %v1707
    %v1778 = vpop.f32.mrb[0].mxu0
    %v1779 = vadd.f32 %v1704, %v1778
    %v1780 = vpop.f32.mrb[0].mxu0
    %1781 = vmatprep.mubr.f32.mxu0 0.0
    %1782 = vmatmul.mubr.f32.gmra.mrb[0].mxu0 %v1710
    %v1783 = vpop.f32.mrb[0].mxu0
    %v1784 = vadd.f32 %v1704, %v1783
    %v1785 = vpop.f32.mrb[0].mxu0
    %1786 = vdwg.mxu0
    %v1787 = vadd.f32 %v1612, %v1779
    %v1788 = vadd.f32 %v1613, %v1784
    %v1789 = vsel %vm73, %v1787, 0.0
    %1790 = vadd.xlane.f32.xlu0 %v1789
    %v1791 = vpop.xlane.xlu0 %1790
    %v1792 = vsel %vm73, %v1788, 0.0
    %1793 = vadd.xlane.f32.xlu0 %v1792
    %v1794 = vpop.xlane.xlu0 %1793
    %v1795 = vmul.f32 %v1791, %v1581
    %v1796 = vmul.f32 %v1794, %v1581
    %v1797 = vsub.f32 %v1787, %v1795
    %v1798 = vsub.f32 %v1788, %v1796
    %v1799 = vmul.f32 %v1797, %v1797
    %v1800 = vmul.f32 %v1798, %v1798
    %v1801 = vsel %vm73, %v1799, 0.0
    %1802 = vadd.xlane.f32.xlu0 %v1801
    %v1803 = vpop.xlane.xlu0 %1802
    %v1804 = vsel %vm73, %v1800, 0.0
    %1805 = vadd.xlane.f32.xlu0 %v1804
    %v1806 = vpop.xlane.xlu0 %1805
    %v1807 = vmul.f32 %v1803, %v1581
    %v1808 = vmul.f32 %v1806, %v1581
    %v1809 = vadd.f32 %v1807, 1e-05
    %v1810 = vadd.f32 %v1808, 1e-05
    %v1811 = vrsqrt.pop %v1809
    %v1812 = vrsqrt.pop %v1810
    %v1813 = vmul.f32 %v1797, %v1811
    %v1814 = vmul.f32 %v1798, %v1812
    %v1815 = vlaneseq
    %v1816 = vshrl.u32 %v1815, 7
    %v1817 = vsub.s32 6, %v1816
    %v1818 = vrot.slane %v68, %v1817
    %v1819 = vmul.f32 %v1813, %v1818
    %v1820 = vmul.f32 %v1814, %v1818
    %v1821 = vlaneseq
    %v1822 = vshrl.u32 %v1821, 7
    %v1823 = vsub.s32 7, %v1822
    %v1824 = vrot.slane %v68, %v1823
    %v1825 = vadd.f32 %v1819, %v1824
    %v1826 = vadd.f32 %v1820, %v1824
    %s1827 = scalar_lea.vmem %s1, 32
    %v1828 = vld [vmem:[%s1827] sm:$0xff]
    %v1829 = vld [vmem:[%s1827 + $0x8] sm:$0xff]
    %v1830 = vld [vmem:[%s1827 + $0x10] sm:$0xff]
    %v1831 = vld [vmem:[%s1827 + $0x18] sm:$0xff]
    %s1832 = scalar_lea.vmem %s2, 32
    %v1833 = vld [vmem:[%s1832] sm:$0xff]
    %v1834 = vld [vmem:[%s1832 + $0x8] sm:$0xff]
    %v1835 = vld [vmem:[%s1832 + $0x10] sm:$0xff]
    %v1836 = vld [vmem:[%s1832 + $0x18] sm:$0xff]
    %s1837 = scalar_lea.vmem %s3, 32
    %v1838 = vld [vmem:[%s1837] sm:$0xff]
    %v1839 = vld [vmem:[%s1837 + $0x8] sm:$0xff]
    %v1840 = vld [vmem:[%s1837 + $0x10] sm:$0xff]
    %v1841 = vld [vmem:[%s1837 + $0x18] sm:$0xff]
    %s1842 = scalar_lea.vmem %s4, 64
    %v1843 = vld [vmem:[%s1842] sm:$0xff]
    %v1844 = vld [vmem:[%s1842 + $0x8] sm:$0xff]
    %v1845 = vld [vmem:[%s1842 + $0x10] sm:$0xff]
    %v1846 = vld [vmem:[%s1842 + $0x18] sm:$0xff]
    %v1847 = vld [vmem:[%s1842 + $0x20] sm:$0xff]
    %v1848 = vld [vmem:[%s1842 + $0x28] sm:$0xff]
    %v1849 = vld [vmem:[%s1842 + $0x30] sm:$0xff]
    %v1850 = vld [vmem:[%s1842 + $0x38] sm:$0xff]
    %s1851 = scalar_lea.vmem %s5, 8
    %v1852 = vld [vmem:[%s1851] sm:$0xff]
    %v1853 = vlaneseq
    %v1854 = vshrl.u32 %v1853, 7
    %v1855 = vsub.s32 0, %v1854
    %v1856 = vrot.slane %v1852, %v1855
    %v1858 = vsel %vm73, %v1825, 0
    %v1861 = vsel %vm73, %v1826, 0
    %1863 = vmatprep.subr.mxu0 0.0
    %1864 = vmatpush1.msra.mxu0 %v1828
    %1865 = vmatprep.subr.mxu0 0.0
    %1866 = vmatpush1.msra.mxu0 %v1829
    %1867 = vmatprep.subr.mxu0 0.0
    %1868 = vmatpush1.msra.mxu0 %v1830
    %1869 = vmatprep.subr.mxu0 0.0
    %1870 = vmatpush1.msra.mxu0 %v1831
    %1871 = vmatprep.subr.mxu0 0.0
    %1872 = vmatpush1.msra.mxu0 0.0
    %1873 = vmatprep.subr.mxu0 0.0
    %1874 = vmatpush1.msra.mxu0 0.0
    %1875 = vmatprep.subr.mxu0 0.0
    %1876 = vmatpush1.msra.mxu0 0.0
    %1877 = vmatprep.subr.mxu0 0.0
    %1878 = vmatpush1.msra.mxu0 0.0
    %1879 = vmatprep.subr.mxu0 0.0
    %1880 = vmatpush1.msra.mxu0 0.0
    %1881 = vmatprep.subr.mxu0 0.0
    %1882 = vmatpush1.msra.mxu0 0.0
    %1883 = vmatprep.subr.mxu0 0.0
    %1884 = vmatpush1.msra.mxu0 0.0
    %1885 = vmatprep.subr.mxu0 0.0
    %1886 = vmatpush1.msra.mxu0 0.0
    %1887 = vmatprep.subr.mxu0 0.0
    %1888 = vmatpush1.msra.mxu0 0.0
    %1889 = vmatprep.subr.mxu0 0.0
    %1890 = vmatpush1.msra.mxu0 0.0
    %1891 = vmatprep.subr.mxu0 0.0
    %1892 = vmatpush1.msra.mxu0 0.0
    %1893 = vmatprep.subr.mxu0 0.0
    %1894 = vmatpush1.msra.mxu0 0.0
    %1895 = vmatprep.subr.mxu0 0.0
    %1896 = vmatpush1.msra.mxu0 0.0
    %1897 = vmatprep.subr.mxu0 0.0
    %1898 = vmatpush1.msra.mxu0 0.0
    %1899 = vmatprep.subr.mxu0 0.0
    %1900 = vmatpush1.msra.mxu0 0.0
    %1901 = vmatprep.subr.mxu0 0.0
    %1902 = vmatpush1.msra.mxu0 0.0
    %1903 = vmatprep.subr.mxu0 0.0
    %1904 = vmatpush1.msra.mxu0 0.0
    %1905 = vmatprep.subr.mxu0 0.0
    %1906 = vmatpush1.msra.mxu0 0.0
    %1907 = vmatprep.subr.mxu0 0.0
    %1908 = vmatpush1.msra.mxu0 0.0
    %1909 = vmatprep.subr.mxu0 0.0
    %1910 = vmatpush1.msra.mxu0 0.0
    %1911 = vmatprep.subr.mxu0 0.0
    %1912 = vmatpush1.msra.mxu0 0.0
    %1913 = vmatprep.subr.mxu0 0.0
    %1914 = vmatpush1.msra.mxu0 0.0
    %1915 = vmatprep.subr.mxu0 0.0
    %1916 = vmatpush1.msra.mxu0 0.0
    %1917 = vmatprep.subr.mxu0 0.0
    %1918 = vmatpush1.msra.mxu0 0.0
    %1919 = vmatprep.subr.mxu0 0.0
    %1920 = vmatpush1.msra.mxu0 0.0
    %1921 = vmatprep.subr.mxu0 0.0
    %1922 = vmatpush1.msra.mxu0 0.0
    %1923 = vmatprep.subr.mxu0 0.0
    %1924 = vmatpush1.msra.mxu0 0.0
    %1925 = vmatprep.subr.mxu0 0.0
    %1926 = vmatpush1.msra.mxu0 0.0
    %1927 = vmatprep.mubr.f32.mxu0 0.0
    %1928 = vmatmul.mubr.f32.gmra.mrb[0].mxu0 %v1858
    %v1929 = vpop.f32.mrb[0].mxu0
    %v1930 = vadd.f32 %v1856, %v1929
    %v1931 = vpop.f32.mrb[0].mxu0
    %1932 = vmatprep.mubr.f32.mxu0 0.0
    %1933 = vmatmul.mubr.f32.gmra.mrb[0].mxu0 %v1861
    %v1934 = vpop.f32.mrb[0].mxu0
    %v1935 = vadd.f32 %v1856, %v1934
    %v1936 = vpop.f32.mrb[0].mxu0
    %1937 = vdwg.mxu0
    %vm1938 = vcmp.gt.f32.partialorder %v1930, 0.0
    %vm1939 = vcmp.gt.f32.partialorder %v1935, 0.0
    %v1940 = vadd.f32 %v1930, 1.0
    %v1941 = vadd.f32 %v1935, 1.0
    %v1942 = vmul.f32 %v1930, 1.442695
    %v1943 = vpow.pop %v1942
    %v1944 = vmul.f32 %v1935, 1.442695
    %v1945 = vpow.pop %v1944
    %v1946 = vsel %vm1938, %v1940, %v1943
    %v1947 = vsel %vm1939, %v1941, %v1945
    %1949 = vrot.lane.b32.xlu0 %v1946, 96
    %v1950 = vpop.permute.xlu0 %1949
    %v1951 = vsel %vm168, %v1946, 0
    %v1953 = vsel %vm168, %v1950, 0
    %1955 = vmatprep.subr.mxu0 0.0
    %1956 = vmatpush1.xpose.msra.mxu0 %v1953
    %1957 = vmatprep.subr.mxu0 0.0
    %1958 = vmatpush1.xpose.msra.mxu0 0.0
    %1959 = vmatprep.subr.mxu0 0.0
    %1960 = vmatpush1.xpose.msra.mxu0 0.0
    %1961 = vmatprep.subr.mxu0 0.0
    %1962 = vmatpush1.xpose.msra.mxu0 0.0
    %1963 = vmatprep.subr.mxu0 0.0
    %1964 = vmatpush1.xpose.msra.mxu0 0.0
    %1965 = vmatprep.subr.mxu0 0.0
    %1966 = vmatpush1.xpose.msra.mxu0 0.0
    %1967 = vmatprep.subr.mxu0 0.0
    %1968 = vmatpush1.xpose.msra.mxu0 0.0
    %1969 = vmatprep.subr.mxu0 0.0
    %1970 = vmatpush1.xpose.msra.mxu0 0.0
    %1971 = vmatprep.subr.mxu0 0.0
    %1972 = vmatpush1.xpose.msra.mxu0 0.0
    %1973 = vmatprep.subr.mxu0 0.0
    %1974 = vmatpush1.xpose.msra.mxu0 0.0
    %1975 = vmatprep.subr.mxu0 0.0
    %1976 = vmatpush1.xpose.msra.mxu0 0.0
    %1977 = vmatprep.subr.mxu0 0.0
    %1978 = vmatpush1.xpose.msra.mxu0 0.0
    %1979 = vmatprep.subr.mxu0 0.0
    %1980 = vmatpush1.xpose.msra.mxu0 0.0
    %1981 = vmatprep.subr.mxu0 0.0
    %1982 = vmatpush1.xpose.msra.mxu0 0.0
    %1983 = vmatprep.subr.mxu0 0.0
    %1984 = vmatpush1.xpose.msra.mxu0 0.0
    %1985 = vmatprep.subr.mxu0 0.0
    %1986 = vmatpush1.xpose.msra.mxu0 0.0
    %1987 = vmatprep.subr.mxu0 0.0
    %1988 = vmatpush1.xpose.msra.mxu0 0.0
    %1989 = vmatprep.subr.mxu0 0.0
    %1990 = vmatpush1.xpose.msra.mxu0 0.0
    %1991 = vmatprep.subr.mxu0 0.0
    %1992 = vmatpush1.xpose.msra.mxu0 0.0
    %1993 = vmatprep.subr.mxu0 0.0
    %1994 = vmatpush1.xpose.msra.mxu0 0.0
    %1995 = vmatprep.subr.mxu0 0.0
    %1996 = vmatpush1.xpose.msra.mxu0 0.0
    %1997 = vmatprep.subr.mxu0 0.0
    %1998 = vmatpush1.xpose.msra.mxu0 0.0
    %1999 = vmatprep.subr.mxu0 0.0
    %2000 = vmatpush1.xpose.msra.mxu0 0.0
    %2001 = vmatprep.subr.mxu0 0.0
    %2002 = vmatpush1.xpose.msra.mxu0 0.0
    %2003 = vmatprep.subr.mxu0 0.0
    %2004 = vmatpush1.xpose.msra.mxu0 0.0
    %2005 = vmatprep.subr.mxu0 0.0
    %2006 = vmatpush1.xpose.msra.mxu0 0.0
    %2007 = vmatprep.subr.mxu0 0.0
    %2008 = vmatpush1.xpose.msra.mxu0 0.0
    %2009 = vmatprep.subr.mxu0 0.0
    %2010 = vmatpush1.xpose.msra.mxu0 0.0
    %2011 = vmatprep.subr.mxu0 0.0
    %2012 = vmatpush1.xpose.msra.mxu0 0.0
    %2013 = vmatprep.subr.mxu0 0.0
    %2014 = vmatpush1.xpose.msra.mxu0 0.0
    %2015 = vmatprep.subr.mxu0 0.0
    %2016 = vmatpush1.xpose.msra.mxu0 0.0
    %2017 = vmatprep.subr.mxu0 0.0
    %2018 = vmatpush1.xpose.msra.mxu0 0.0
    %2019 = vmatprep.mubr.f32.mxu0 0.0
    %2020 = vmatmul.mubr.f32.gmra.mrb[0].mxu0 %v1951
    %v2021 = vpop.f32.mrb[0].mxu0
    %v2022 = vadd.f32 0.0, %v2021
    %v2023 = vpop.f32.mrb[0].mxu0
    %2024 = vdwg.mxu0
    %2026 = vrot.lane.b32.xlu0 %v1947, 96
    %v2027 = vpop.permute.xlu0 %2026
    %v2028 = vsel %vm168, %v1947, 0
    %v2030 = vsel %vm168, %v2027, 0
    %2032 = vmatprep.subr.mxu0 0.0
    %2033 = vmatpush1.xpose.msra.mxu0 %v2030
    %2034 = vmatprep.subr.mxu0 0.0
    %2035 = vmatpush1.xpose.msra.mxu0 0.0
    %2036 = vmatprep.subr.mxu0 0.0
    %2037 = vmatpush1.xpose.msra.mxu0 0.0
    %2038 = vmatprep.subr.mxu0 0.0
    %2039 = vmatpush1.xpose.msra.mxu0 0.0
    %2040 = vmatprep.subr.mxu0 0.0
    %2041 = vmatpush1.xpose.msra.mxu0 0.0
    %2042 = vmatprep.subr.mxu0 0.0
    %2043 = vmatpush1.xpose.msra.mxu0 0.0
    %2044 = vmatprep.subr.mxu0 0.0
    %2045 = vmatpush1.xpose.msra.mxu0 0.0
    %2046 = vmatprep.subr.mxu0 0.0
    %2047 = vmatpush1.xpose.msra.mxu0 0.0
    %2048 = vmatprep.subr.mxu0 0.0
    %2049 = vmatpush1.xpose.msra.mxu0 0.0
    %2050 = vmatprep.subr.mxu0 0.0
    %2051 = vmatpush1.xpose.msra.mxu0 0.0
    %2052 = vmatprep.subr.mxu0 0.0
    %2053 = vmatpush1.xpose.msra.mxu0 0.0
    %2054 = vmatprep.subr.mxu0 0.0
    %2055 = vmatpush1.xpose.msra.mxu0 0.0
    %2056 = vmatprep.subr.mxu0 0.0
    %2057 = vmatpush1.xpose.msra.mxu0 0.0
    %2058 = vmatprep.subr.mxu0 0.0
    %2059 = vmatpush1.xpose.msra.mxu0 0.0
    %2060 = vmatprep.subr.mxu0 0.0
    %2061 = vmatpush1.xpose.msra.mxu0 0.0
    %2062 = vmatprep.subr.mxu0 0.0
    %2063 = vmatpush1.xpose.msra.mxu0 0.0
    %2064 = vmatprep.subr.mxu0 0.0
    %2065 = vmatpush1.xpose.msra.mxu0 0.0
    %2066 = vmatprep.subr.mxu0 0.0
    %2067 = vmatpush1.xpose.msra.mxu0 0.0
    %2068 = vmatprep.subr.mxu0 0.0
    %2069 = vmatpush1.xpose.msra.mxu0 0.0
    %2070 = vmatprep.subr.mxu0 0.0
    %2071 = vmatpush1.xpose.msra.mxu0 0.0
    %2072 = vmatprep.subr.mxu0 0.0
    %2073 = vmatpush1.xpose.msra.mxu0 0.0
    %2074 = vmatprep.subr.mxu0 0.0
    %2075 = vmatpush1.xpose.msra.mxu0 0.0
    %2076 = vmatprep.subr.mxu0 0.0
    %2077 = vmatpush1.xpose.msra.mxu0 0.0
    %2078 = vmatprep.subr.mxu0 0.0
    %2079 = vmatpush1.xpose.msra.mxu0 0.0
    %2080 = vmatprep.subr.mxu0 0.0
    %2081 = vmatpush1.xpose.msra.mxu0 0.0
    %2082 = vmatprep.subr.mxu0 0.0
    %2083 = vmatpush1.xpose.msra.mxu0 0.0
    %2084 = vmatprep.subr.mxu0 0.0
    %2085 = vmatpush1.xpose.msra.mxu0 0.0
    %2086 = vmatprep.subr.mxu0 0.0
    %2087 = vmatpush1.xpose.msra.mxu0 0.0
    %2088 = vmatprep.subr.mxu0 0.0
    %2089 = vmatpush1.xpose.msra.mxu0 0.0
    %2090 = vmatprep.subr.mxu0 0.0
    %2091 = vmatpush1.xpose.msra.mxu0 0.0
    %2092 = vmatprep.subr.mxu0 0.0
    %2093 = vmatpush1.xpose.msra.mxu0 0.0
    %2094 = vmatprep.subr.mxu0 0.0
    %2095 = vmatpush1.xpose.msra.mxu0 0.0
    %2096 = vmatprep.mubr.f32.mxu0 0.0
    %2097 = vmatmul.mubr.f32.gmra.mrb[0].mxu0 %v2028
    %v2098 = vpop.f32.mrb[0].mxu0
    %v2099 = vadd.f32 0.0, %v2098
    %v2100 = vpop.f32.mrb[0].mxu0
    %2101 = vdwg.mxu0
    %v2102 = vsel %vm47, %v2022, 0.0
    %v2103 = vsel %vm47, %v2099, 0.0
    %v2104 = vsel %vm168, %v2102, 0.0
    %2105 = vadd.xlane.f32.xlu0 %v2104
    %v2106 = vpop.xlane.xlu0 %2105
    %v2107 = vsel %vm168, %v2103, 0.0
    %2108 = vadd.xlane.f32.xlu0 %v2107
    %v2109 = vpop.xlane.xlu0 %2108
    %v2110 = vadd.f32 %v2106, 1e-06
    %v2111 = vadd.f32 %v2109, 1e-06
    %2113 = vrot.lane.b32.xlu0 %v1930, 64
    %v2114 = vpop.permute.xlu0 %2113
    %v2117 = vsel %vm168, %v2102, 0
    %2119 = vmatprep.subr.mxu0 0.0
    %2120 = vmatpush1.msra.mxu0 %v2114
    %2121 = vmatprep.subr.mxu0 0.0
    %2122 = vmatpush1.msra.mxu0 0.0
    %2123 = vmatprep.subr.mxu0 0.0
    %2124 = vmatpush1.msra.mxu0 0.0
    %2125 = vmatprep.subr.mxu0 0.0
    %2126 = vmatpush1.msra.mxu0 0.0
    %2127 = vmatprep.subr.mxu0 0.0
    %2128 = vmatpush1.msra.mxu0 0.0
    %2129 = vmatprep.subr.mxu0 0.0
    %2130 = vmatpush1.msra.mxu0 0.0
    %2131 = vmatprep.subr.mxu0 0.0
    %2132 = vmatpush1.msra.mxu0 0.0
    %2133 = vmatprep.subr.mxu0 0.0
    %2134 = vmatpush1.msra.mxu0 0.0
    %2135 = vmatprep.subr.mxu0 0.0
    %2136 = vmatpush1.msra.mxu0 0.0
    %2137 = vmatprep.subr.mxu0 0.0
    %2138 = vmatpush1.msra.mxu0 0.0
    %2139 = vmatprep.subr.mxu0 0.0
    %2140 = vmatpush1.msra.mxu0 0.0
    %2141 = vmatprep.subr.mxu0 0.0
    %2142 = vmatpush1.msra.mxu0 0.0
    %2143 = vmatprep.subr.mxu0 0.0
    %2144 = vmatpush1.msra.mxu0 0.0
    %2145 = vmatprep.subr.mxu0 0.0
    %2146 = vmatpush1.msra.mxu0 0.0
    %2147 = vmatprep.subr.mxu0 0.0
    %2148 = vmatpush1.msra.mxu0 0.0
    %2149 = vmatprep.subr.mxu0 0.0
    %2150 = vmatpush1.msra.mxu0 0.0
    %2151 = vmatprep.subr.mxu0 0.0
    %2152 = vmatpush1.msra.mxu0 0.0
    %2153 = vmatprep.subr.mxu0 0.0
    %2154 = vmatpush1.msra.mxu0 0.0
    %2155 = vmatprep.subr.mxu0 0.0
    %2156 = vmatpush1.msra.mxu0 0.0
    %2157 = vmatprep.subr.mxu0 0.0
    %2158 = vmatpush1.msra.mxu0 0.0
    %2159 = vmatprep.subr.mxu0 0.0
    %2160 = vmatpush1.msra.mxu0 0.0
    %2161 = vmatprep.subr.mxu0 0.0
    %2162 = vmatpush1.msra.mxu0 0.0
    %2163 = vmatprep.subr.mxu0 0.0
    %2164 = vmatpush1.msra.mxu0 0.0
    %2165 = vmatprep.subr.mxu0 0.0
    %2166 = vmatpush1.msra.mxu0 0.0
    %2167 = vmatprep.subr.mxu0 0.0
    %2168 = vmatpush1.msra.mxu0 0.0
    %2169 = vmatprep.subr.mxu0 0.0
    %2170 = vmatpush1.msra.mxu0 0.0
    %2171 = vmatprep.subr.mxu0 0.0
    %2172 = vmatpush1.msra.mxu0 0.0
    %2173 = vmatprep.subr.mxu0 0.0
    %2174 = vmatpush1.msra.mxu0 0.0
    %2175 = vmatprep.subr.mxu0 0.0
    %2176 = vmatpush1.msra.mxu0 0.0
    %2177 = vmatprep.subr.mxu0 0.0
    %2178 = vmatpush1.msra.mxu0 0.0
    %2179 = vmatprep.subr.mxu0 0.0
    %2180 = vmatpush1.msra.mxu0 0.0
    %2181 = vmatprep.subr.mxu0 0.0
    %2182 = vmatpush1.msra.mxu0 0.0
    %2183 = vmatprep.mubr.f32.mxu0 0.0
    %2184 = vmatmul.mubr.f32.gmra.mrb[0].mxu0 %v2117
    %v2185 = vpop.f32.mrb[0].mxu0
    %v2186 = vadd.f32 0.0, %v2185
    %v2187 = vpop.f32.mrb[0].mxu0
    %2188 = vdwg.mxu0
    %2190 = vrot.lane.b32.xlu0 %v1935, 64
    %v2191 = vpop.permute.xlu0 %2190
    %v2194 = vsel %vm168, %v2103, 0
    %2196 = vmatprep.subr.mxu0 0.0
    %2197 = vmatpush1.msra.mxu0 %v2191
    %2198 = vmatprep.subr.mxu0 0.0
    %2199 = vmatpush1.msra.mxu0 0.0
    %2200 = vmatprep.subr.mxu0 0.0
    %2201 = vmatpush1.msra.mxu0 0.0
    %2202 = vmatprep.subr.mxu0 0.0
    %2203 = vmatpush1.msra.mxu0 0.0
    %2204 = vmatprep.subr.mxu0 0.0
    %2205 = vmatpush1.msra.mxu0 0.0
    %2206 = vmatprep.subr.mxu0 0.0
    %2207 = vmatpush1.msra.mxu0 0.0
    %2208 = vmatprep.subr.mxu0 0.0
    %2209 = vmatpush1.msra.mxu0 0.0
    %2210 = vmatprep.subr.mxu0 0.0
    %2211 = vmatpush1.msra.mxu0 0.0
    %2212 = vmatprep.subr.mxu0 0.0
    %2213 = vmatpush1.msra.mxu0 0.0
    %2214 = vmatprep.subr.mxu0 0.0
    %2215 = vmatpush1.msra.mxu0 0.0
    %2216 = vmatprep.subr.mxu0 0.0
    %2217 = vmatpush1.msra.mxu0 0.0
    %2218 = vmatprep.subr.mxu0 0.0
    %2219 = vmatpush1.msra.mxu0 0.0
    %2220 = vmatprep.subr.mxu0 0.0
    %2221 = vmatpush1.msra.mxu0 0.0
    %2222 = vmatprep.subr.mxu0 0.0
    %2223 = vmatpush1.msra.mxu0 0.0
    %2224 = vmatprep.subr.mxu0 0.0
    %2225 = vmatpush1.msra.mxu0 0.0
    %2226 = vmatprep.subr.mxu0 0.0
    %2227 = vmatpush1.msra.mxu0 0.0
    %2228 = vmatprep.subr.mxu0 0.0
    %2229 = vmatpush1.msra.mxu0 0.0
    %2230 = vmatprep.subr.mxu0 0.0
    %2231 = vmatpush1.msra.mxu0 0.0
    %2232 = vmatprep.subr.mxu0 0.0
    %2233 = vmatpush1.msra.mxu0 0.0
    %2234 = vmatprep.subr.mxu0 0.0
    %2235 = vmatpush1.msra.mxu0 0.0
    %2236 = vmatprep.subr.mxu0 0.0
    %2237 = vmatpush1.msra.mxu0 0.0
    %2238 = vmatprep.subr.mxu0 0.0
    %2239 = vmatpush1.msra.mxu0 0.0
    %2240 = vmatprep.subr.mxu0 0.0
    %2241 = vmatpush1.msra.mxu0 0.0
    %2242 = vmatprep.subr.mxu0 0.0
    %2243 = vmatpush1.msra.mxu0 0.0
    %2244 = vmatprep.subr.mxu0 0.0
    %2245 = vmatpush1.msra.mxu0 0.0
    %2246 = vmatprep.subr.mxu0 0.0
    %2247 = vmatpush1.msra.mxu0 0.0
    %2248 = vmatprep.subr.mxu0 0.0
    %2249 = vmatpush1.msra.mxu0 0.0
    %2250 = vmatprep.subr.mxu0 0.0
    %2251 = vmatpush1.msra.mxu0 0.0
    %2252 = vmatprep.subr.mxu0 0.0
    %2253 = vmatpush1.msra.mxu0 0.0
    %2254 = vmatprep.subr.mxu0 0.0
    %2255 = vmatpush1.msra.mxu0 0.0
    %2256 = vmatprep.subr.mxu0 0.0
    %2257 = vmatpush1.msra.mxu0 0.0
    %2258 = vmatprep.subr.mxu0 0.0
    %2259 = vmatpush1.msra.mxu0 0.0
    %2260 = vmatprep.mubr.f32.mxu0 0.0
    %2261 = vmatmul.mubr.f32.gmra.mrb[0].mxu0 %v2194
    %v2262 = vpop.f32.mrb[0].mxu0
    %v2263 = vadd.f32 0.0, %v2262
    %v2264 = vpop.f32.mrb[0].mxu0
    %2265 = vdwg.mxu0
    %v2266 = vrcp.pop %v2110
    %v2267 = vmul.f32 %v2186, %v2266
    %v2268 = vrcp.pop %v2111
    %v2269 = vmul.f32 %v2263, %v2268
    %2270 = vrot.lane.b32.xlu0 %v1946, 120
    %v2271 = vpop.permute.xlu0 %2270
    %2272 = vrot.lane.b32.xlu0 %v1946, 88
    %v2273 = vpop.permute.xlu0 %2272
    %v2274 = vsel %vm168, %v2271, 0
    %v2276 = vsel %vm168, %v2273, 0
    %2278 = vmatprep.subr.mxu0 0.0
    %2279 = vmatpush1.xpose.msra.mxu0 %v2276
    %2280 = vmatprep.subr.mxu0 0.0
    %2281 = vmatpush1.xpose.msra.mxu0 0.0
    %2282 = vmatprep.subr.mxu0 0.0
    %2283 = vmatpush1.xpose.msra.mxu0 0.0
    %2284 = vmatprep.subr.mxu0 0.0
    %2285 = vmatpush1.xpose.msra.mxu0 0.0
    %2286 = vmatprep.subr.mxu0 0.0
    %2287 = vmatpush1.xpose.msra.mxu0 0.0
    %2288 = vmatprep.subr.mxu0 0.0
    %2289 = vmatpush1.xpose.msra.mxu0 0.0
    %2290 = vmatprep.subr.mxu0 0.0
    %2291 = vmatpush1.xpose.msra.mxu0 0.0
    %2292 = vmatprep.subr.mxu0 0.0
    %2293 = vmatpush1.xpose.msra.mxu0 0.0
    %2294 = vmatprep.subr.mxu0 0.0
    %2295 = vmatpush1.xpose.msra.mxu0 0.0
    %2296 = vmatprep.subr.mxu0 0.0
    %2297 = vmatpush1.xpose.msra.mxu0 0.0
    %2298 = vmatprep.subr.mxu0 0.0
    %2299 = vmatpush1.xpose.msra.mxu0 0.0
    %2300 = vmatprep.subr.mxu0 0.0
    %2301 = vmatpush1.xpose.msra.mxu0 0.0
    %2302 = vmatprep.subr.mxu0 0.0
    %2303 = vmatpush1.xpose.msra.mxu0 0.0
    %2304 = vmatprep.subr.mxu0 0.0
    %2305 = vmatpush1.xpose.msra.mxu0 0.0
    %2306 = vmatprep.subr.mxu0 0.0
    %2307 = vmatpush1.xpose.msra.mxu0 0.0
    %2308 = vmatprep.subr.mxu0 0.0
    %2309 = vmatpush1.xpose.msra.mxu0 0.0
    %2310 = vmatprep.subr.mxu0 0.0
    %2311 = vmatpush1.xpose.msra.mxu0 0.0
    %2312 = vmatprep.subr.mxu0 0.0
    %2313 = vmatpush1.xpose.msra.mxu0 0.0
    %2314 = vmatprep.subr.mxu0 0.0
    %2315 = vmatpush1.xpose.msra.mxu0 0.0
    %2316 = vmatprep.subr.mxu0 0.0
    %2317 = vmatpush1.xpose.msra.mxu0 0.0
    %2318 = vmatprep.subr.mxu0 0.0
    %2319 = vmatpush1.xpose.msra.mxu0 0.0
    %2320 = vmatprep.subr.mxu0 0.0
    %2321 = vmatpush1.xpose.msra.mxu0 0.0
    %2322 = vmatprep.subr.mxu0 0.0
    %2323 = vmatpush1.xpose.msra.mxu0 0.0
    %2324 = vmatprep.subr.mxu0 0.0
    %2325 = vmatpush1.xpose.msra.mxu0 0.0
    %2326 = vmatprep.subr.mxu0 0.0
    %2327 = vmatpush1.xpose.msra.mxu0 0.0
    %2328 = vmatprep.subr.mxu0 0.0
    %2329 = vmatpush1.xpose.msra.mxu0 0.0
    %2330 = vmatprep.subr.mxu0 0.0
    %2331 = vmatpush1.xpose.msra.mxu0 0.0
    %2332 = vmatprep.subr.mxu0 0.0
    %2333 = vmatpush1.xpose.msra.mxu0 0.0
    %2334 = vmatprep.subr.mxu0 0.0
    %2335 = vmatpush1.xpose.msra.mxu0 0.0
    %2336 = vmatprep.subr.mxu0 0.0
    %2337 = vmatpush1.xpose.msra.mxu0 0.0
    %2338 = vmatprep.subr.mxu0 0.0
    %2339 = vmatpush1.xpose.msra.mxu0 0.0
    %2340 = vmatprep.subr.mxu0 0.0
    %2341 = vmatpush1.xpose.msra.mxu0 0.0
    %2342 = vmatprep.mubr.f32.mxu0 0.0
    %2343 = vmatmul.mubr.f32.gmra.mrb[0].mxu0 %v2274
    %v2344 = vpop.f32.mrb[0].mxu0
    %v2345 = vadd.f32 0.0, %v2344
    %v2346 = vpop.f32.mrb[0].mxu0
    %2347 = vdwg.mxu0
    %2348 = vrot.lane.b32.xlu0 %v1947, 120
    %v2349 = vpop.permute.xlu0 %2348
    %2350 = vrot.lane.b32.xlu0 %v1947, 88
    %v2351 = vpop.permute.xlu0 %2350
    %v2352 = vsel %vm168, %v2349, 0
    %v2354 = vsel %vm168, %v2351, 0
    %2356 = vmatprep.subr.mxu0 0.0
    %2357 = vmatpush1.xpose.msra.mxu0 %v2354
    %2358 = vmatprep.subr.mxu0 0.0
    %2359 = vmatpush1.xpose.msra.mxu0 0.0
    %2360 = vmatprep.subr.mxu0 0.0
    %2361 = vmatpush1.xpose.msra.mxu0 0.0
    %2362 = vmatprep.subr.mxu0 0.0
    %2363 = vmatpush1.xpose.msra.mxu0 0.0
    %2364 = vmatprep.subr.mxu0 0.0
    %2365 = vmatpush1.xpose.msra.mxu0 0.0
    %2366 = vmatprep.subr.mxu0 0.0
    %2367 = vmatpush1.xpose.msra.mxu0 0.0
    %2368 = vmatprep.subr.mxu0 0.0
    %2369 = vmatpush1.xpose.msra.mxu0 0.0
    %2370 = vmatprep.subr.mxu0 0.0
    %2371 = vmatpush1.xpose.msra.mxu0 0.0
    %2372 = vmatprep.subr.mxu0 0.0
    %2373 = vmatpush1.xpose.msra.mxu0 0.0
    %2374 = vmatprep.subr.mxu0 0.0
    %2375 = vmatpush1.xpose.msra.mxu0 0.0
    %2376 = vmatprep.subr.mxu0 0.0
    %2377 = vmatpush1.xpose.msra.mxu0 0.0
    %2378 = vmatprep.subr.mxu0 0.0
    %2379 = vmatpush1.xpose.msra.mxu0 0.0
    %2380 = vmatprep.subr.mxu0 0.0
    %2381 = vmatpush1.xpose.msra.mxu0 0.0
    %2382 = vmatprep.subr.mxu0 0.0
    %2383 = vmatpush1.xpose.msra.mxu0 0.0
    %2384 = vmatprep.subr.mxu0 0.0
    %2385 = vmatpush1.xpose.msra.mxu0 0.0
    %2386 = vmatprep.subr.mxu0 0.0
    %2387 = vmatpush1.xpose.msra.mxu0 0.0
    %2388 = vmatprep.subr.mxu0 0.0
    %2389 = vmatpush1.xpose.msra.mxu0 0.0
    %2390 = vmatprep.subr.mxu0 0.0
    %2391 = vmatpush1.xpose.msra.mxu0 0.0
    %2392 = vmatprep.subr.mxu0 0.0
    %2393 = vmatpush1.xpose.msra.mxu0 0.0
    %2394 = vmatprep.subr.mxu0 0.0
    %2395 = vmatpush1.xpose.msra.mxu0 0.0
    %2396 = vmatprep.subr.mxu0 0.0
    %2397 = vmatpush1.xpose.msra.mxu0 0.0
    %2398 = vmatprep.subr.mxu0 0.0
    %2399 = vmatpush1.xpose.msra.mxu0 0.0
    %2400 = vmatprep.subr.mxu0 0.0
    %2401 = vmatpush1.xpose.msra.mxu0 0.0
    %2402 = vmatprep.subr.mxu0 0.0
    %2403 = vmatpush1.xpose.msra.mxu0 0.0
    %2404 = vmatprep.subr.mxu0 0.0
    %2405 = vmatpush1.xpose.msra.mxu0 0.0
    %2406 = vmatprep.subr.mxu0 0.0
    %2407 = vmatpush1.xpose.msra.mxu0 0.0
    %2408 = vmatprep.subr.mxu0 0.0
    %2409 = vmatpush1.xpose.msra.mxu0 0.0
    %2410 = vmatprep.subr.mxu0 0.0
    %2411 = vmatpush1.xpose.msra.mxu0 0.0
    %2412 = vmatprep.subr.mxu0 0.0
    %2413 = vmatpush1.xpose.msra.mxu0 0.0
    %2414 = vmatprep.subr.mxu0 0.0
    %2415 = vmatpush1.xpose.msra.mxu0 0.0
    %2416 = vmatprep.subr.mxu0 0.0
    %2417 = vmatpush1.xpose.msra.mxu0 0.0
    %2418 = vmatprep.subr.mxu0 0.0
    %2419 = vmatpush1.xpose.msra.mxu0 0.0
    %2420 = vmatprep.mubr.f32.mxu0 0.0
    %2421 = vmatmul.mubr.f32.gmra.mrb[0].mxu0 %v2352
    %v2422 = vpop.f32.mrb[0].mxu0
    %v2423 = vadd.f32 0.0, %v2422
    %v2424 = vpop.f32.mrb[0].mxu0
    %2425 = vdwg.mxu0
    %v2426 = vsel %vm47, %v2345, 0.0
    %v2427 = vsel %vm47, %v2423, 0.0
    %v2428 = vsel %vm168, %v2426, 0.0
    %2429 = vadd.xlane.f32.xlu0 %v2428
    %v2430 = vpop.xlane.xlu0 %2429
    %v2431 = vsel %vm168, %v2427, 0.0
    %2432 = vadd.xlane.f32.xlu0 %v2431
    %v2433 = vpop.xlane.xlu0 %2432
    %v2434 = vadd.f32 %v2430, 1e-06
    %v2435 = vadd.f32 %v2433, 1e-06
    %2436 = vrot.lane.b32.xlu0 %v1930, 56
    %v2437 = vpop.permute.xlu0 %2436
    %v2440 = vsel %vm168, %v2426, 0
    %2442 = vmatprep.subr.mxu0 0.0
    %2443 = vmatpush1.msra.mxu0 %v2437
    %2444 = vmatprep.subr.mxu0 0.0
    %2445 = vmatpush1.msra.mxu0 0.0
    %2446 = vmatprep.subr.mxu0 0.0
    %2447 = vmatpush1.msra.mxu0 0.0
    %2448 = vmatprep.subr.mxu0 0.0
    %2449 = vmatpush1.msra.mxu0 0.0
    %2450 = vmatprep.subr.mxu0 0.0
    %2451 = vmatpush1.msra.mxu0 0.0
    %2452 = vmatprep.subr.mxu0 0.0
    %2453 = vmatpush1.msra.mxu0 0.0
    %2454 = vmatprep.subr.mxu0 0.0
    %2455 = vmatpush1.msra.mxu0 0.0
    %2456 = vmatprep.subr.mxu0 0.0
    %2457 = vmatpush1.msra.mxu0 0.0
    %2458 = vmatprep.subr.mxu0 0.0
    %2459 = vmatpush1.msra.mxu0 0.0
    %2460 = vmatprep.subr.mxu0 0.0
    %2461 = vmatpush1.msra.mxu0 0.0
    %2462 = vmatprep.subr.mxu0 0.0
    %2463 = vmatpush1.msra.mxu0 0.0
    %2464 = vmatprep.subr.mxu0 0.0
    %2465 = vmatpush1.msra.mxu0 0.0
    %2466 = vmatprep.subr.mxu0 0.0
    %2467 = vmatpush1.msra.mxu0 0.0
    %2468 = vmatprep.subr.mxu0 0.0
    %2469 = vmatpush1.msra.mxu0 0.0
    %2470 = vmatprep.subr.mxu0 0.0
    %2471 = vmatpush1.msra.mxu0 0.0
    %2472 = vmatprep.subr.mxu0 0.0
    %2473 = vmatpush1.msra.mxu0 0.0
    %2474 = vmatprep.subr.mxu0 0.0
    %2475 = vmatpush1.msra.mxu0 0.0
    %2476 = vmatprep.subr.mxu0 0.0
    %2477 = vmatpush1.msra.mxu0 0.0
    %2478 = vmatprep.subr.mxu0 0.0
    %2479 = vmatpush1.msra.mxu0 0.0
    %2480 = vmatprep.subr.mxu0 0.0
    %2481 = vmatpush1.msra.mxu0 0.0
    %2482 = vmatprep.subr.mxu0 0.0
    %2483 = vmatpush1.msra.mxu0 0.0
    %2484 = vmatprep.subr.mxu0 0.0
    %2485 = vmatpush1.msra.mxu0 0.0
    %2486 = vmatprep.subr.mxu0 0.0
    %2487 = vmatpush1.msra.mxu0 0.0
    %2488 = vmatprep.subr.mxu0 0.0
    %2489 = vmatpush1.msra.mxu0 0.0
    %2490 = vmatprep.subr.mxu0 0.0
    %2491 = vmatpush1.msra.mxu0 0.0
    %2492 = vmatprep.subr.mxu0 0.0
    %2493 = vmatpush1.msra.mxu0 0.0
    %2494 = vmatprep.subr.mxu0 0.0
    %2495 = vmatpush1.msra.mxu0 0.0
    %2496 = vmatprep.subr.mxu0 0.0
    %2497 = vmatpush1.msra.mxu0 0.0
    %2498 = vmatprep.subr.mxu0 0.0
    %2499 = vmatpush1.msra.mxu0 0.0
    %2500 = vmatprep.subr.mxu0 0.0
    %2501 = vmatpush1.msra.mxu0 0.0
    %2502 = vmatprep.subr.mxu0 0.0
    %2503 = vmatpush1.msra.mxu0 0.0
    %2504 = vmatprep.subr.mxu0 0.0
    %2505 = vmatpush1.msra.mxu0 0.0
    %2506 = vmatprep.mubr.f32.mxu0 0.0
    %2507 = vmatmul.mubr.f32.gmra.mrb[0].mxu0 %v2440
    %v2508 = vpop.f32.mrb[0].mxu0
    %v2509 = vadd.f32 0.0, %v2508
    %v2510 = vpop.f32.mrb[0].mxu0
    %2511 = vdwg.mxu0
    %2512 = vrot.lane.b32.xlu0 %v1935, 56
    %v2513 = vpop.permute.xlu0 %2512
    %v2516 = vsel %vm168, %v2427, 0
    %2518 = vmatprep.subr.mxu0 0.0
    %2519 = vmatpush1.msra.mxu0 %v2513
    %2520 = vmatprep.subr.mxu0 0.0
    %2521 = vmatpush1.msra.mxu0 0.0
    %2522 = vmatprep.subr.mxu0 0.0
    %2523 = vmatpush1.msra.mxu0 0.0
    %2524 = vmatprep.subr.mxu0 0.0
    %2525 = vmatpush1.msra.mxu0 0.0
    %2526 = vmatprep.subr.mxu0 0.0
    %2527 = vmatpush1.msra.mxu0 0.0
    %2528 = vmatprep.subr.mxu0 0.0
    %2529 = vmatpush1.msra.mxu0 0.0
    %2530 = vmatprep.subr.mxu0 0.0
    %2531 = vmatpush1.msra.mxu0 0.0
    %2532 = vmatprep.subr.mxu0 0.0
    %2533 = vmatpush1.msra.mxu0 0.0
    %2534 = vmatprep.subr.mxu0 0.0
    %2535 = vmatpush1.msra.mxu0 0.0
    %2536 = vmatprep.subr.mxu0 0.0
    %2537 = vmatpush1.msra.mxu0 0.0
    %2538 = vmatprep.subr.mxu0 0.0
    %2539 = vmatpush1.msra.mxu0 0.0
    %2540 = vmatprep.subr.mxu0 0.0
    %2541 = vmatpush1.msra.mxu0 0.0
    %2542 = vmatprep.subr.mxu0 0.0
    %2543 = vmatpush1.msra.mxu0 0.0
    %2544 = vmatprep.subr.mxu0 0.0
    %2545 = vmatpush1.msra.mxu0 0.0
    %2546 = vmatprep.subr.mxu0 0.0
    %2547 = vmatpush1.msra.mxu0 0.0
    %2548 = vmatprep.subr.mxu0 0.0
    %2549 = vmatpush1.msra.mxu0 0.0
    %2550 = vmatprep.subr.mxu0 0.0
    %2551 = vmatpush1.msra.mxu0 0.0
    %2552 = vmatprep.subr.mxu0 0.0
    %2553 = vmatpush1.msra.mxu0 0.0
    %2554 = vmatprep.subr.mxu0 0.0
    %2555 = vmatpush1.msra.mxu0 0.0
    %2556 = vmatprep.subr.mxu0 0.0
    %2557 = vmatpush1.msra.mxu0 0.0
    %2558 = vmatprep.subr.mxu0 0.0
    %2559 = vmatpush1.msra.mxu0 0.0
    %2560 = vmatprep.subr.mxu0 0.0
    %2561 = vmatpush1.msra.mxu0 0.0
    %2562 = vmatprep.subr.mxu0 0.0
    %2563 = vmatpush1.msra.mxu0 0.0
    %2564 = vmatprep.subr.mxu0 0.0
    %2565 = vmatpush1.msra.mxu0 0.0
    %2566 = vmatprep.subr.mxu0 0.0
    %2567 = vmatpush1.msra.mxu0 0.0
    %2568 = vmatprep.subr.mxu0 0.0
    %2569 = vmatpush1.msra.mxu0 0.0
    %2570 = vmatprep.subr.mxu0 0.0
    %2571 = vmatpush1.msra.mxu0 0.0
    %2572 = vmatprep.subr.mxu0 0.0
    %2573 = vmatpush1.msra.mxu0 0.0
    %2574 = vmatprep.subr.mxu0 0.0
    %2575 = vmatpush1.msra.mxu0 0.0
    %2576 = vmatprep.subr.mxu0 0.0
    %2577 = vmatpush1.msra.mxu0 0.0
    %2578 = vmatprep.subr.mxu0 0.0
    %2579 = vmatpush1.msra.mxu0 0.0
    %2580 = vmatprep.subr.mxu0 0.0
    %2581 = vmatpush1.msra.mxu0 0.0
    %2582 = vmatprep.mubr.f32.mxu0 0.0
    %2583 = vmatmul.mubr.f32.gmra.mrb[0].mxu0 %v2516
    %v2584 = vpop.f32.mrb[0].mxu0
    %v2585 = vadd.f32 0.0, %v2584
    %v2586 = vpop.f32.mrb[0].mxu0
    %2587 = vdwg.mxu0
    %v2588 = vrcp.pop %v2434
    %v2589 = vmul.f32 %v2509, %v2588
    %v2590 = vrcp.pop %v2435
    %v2591 = vmul.f32 %v2585, %v2590
    %2592 = vrot.lane.b32.xlu0 %v1946, 112
    %v2593 = vpop.permute.xlu0 %2592
    %2594 = vrot.lane.b32.xlu0 %v1946, 80
    %v2595 = vpop.permute.xlu0 %2594
    %v2596 = vsel %vm168, %v2593, 0
    %v2598 = vsel %vm168, %v2595, 0
    %2600 = vmatprep.subr.mxu0 0.0
    %2601 = vmatpush1.xpose.msra.mxu0 %v2598
    %2602 = vmatprep.subr.mxu0 0.0
    %2603 = vmatpush1.xpose.msra.mxu0 0.0
    %2604 = vmatprep.subr.mxu0 0.0
    %2605 = vmatpush1.xpose.msra.mxu0 0.0
    %2606 = vmatprep.subr.mxu0 0.0
    %2607 = vmatpush1.xpose.msra.mxu0 0.0
    %2608 = vmatprep.subr.mxu0 0.0
    %2609 = vmatpush1.xpose.msra.mxu0 0.0
    %2610 = vmatprep.subr.mxu0 0.0
    %2611 = vmatpush1.xpose.msra.mxu0 0.0
    %2612 = vmatprep.subr.mxu0 0.0
    %2613 = vmatpush1.xpose.msra.mxu0 0.0
    %2614 = vmatprep.subr.mxu0 0.0
    %2615 = vmatpush1.xpose.msra.mxu0 0.0
    %2616 = vmatprep.subr.mxu0 0.0
    %2617 = vmatpush1.xpose.msra.mxu0 0.0
    %2618 = vmatprep.subr.mxu0 0.0
    %2619 = vmatpush1.xpose.msra.mxu0 0.0
    %2620 = vmatprep.subr.mxu0 0.0
    %2621 = vmatpush1.xpose.msra.mxu0 0.0
    %2622 = vmatprep.subr.mxu0 0.0
    %2623 = vmatpush1.xpose.msra.mxu0 0.0
    %2624 = vmatprep.subr.mxu0 0.0
    %2625 = vmatpush1.xpose.msra.mxu0 0.0
    %2626 = vmatprep.subr.mxu0 0.0
    %2627 = vmatpush1.xpose.msra.mxu0 0.0
    %2628 = vmatprep.subr.mxu0 0.0
    %2629 = vmatpush1.xpose.msra.mxu0 0.0
    %2630 = vmatprep.subr.mxu0 0.0
    %2631 = vmatpush1.xpose.msra.mxu0 0.0
    %2632 = vmatprep.subr.mxu0 0.0
    %2633 = vmatpush1.xpose.msra.mxu0 0.0
    %2634 = vmatprep.subr.mxu0 0.0
    %2635 = vmatpush1.xpose.msra.mxu0 0.0
    %2636 = vmatprep.subr.mxu0 0.0
    %2637 = vmatpush1.xpose.msra.mxu0 0.0
    %2638 = vmatprep.subr.mxu0 0.0
    %2639 = vmatpush1.xpose.msra.mxu0 0.0
    %2640 = vmatprep.subr.mxu0 0.0
    %2641 = vmatpush1.xpose.msra.mxu0 0.0
    %2642 = vmatprep.subr.mxu0 0.0
    %2643 = vmatpush1.xpose.msra.mxu0 0.0
    %2644 = vmatprep.subr.mxu0 0.0
    %2645 = vmatpush1.xpose.msra.mxu0 0.0
    %2646 = vmatprep.subr.mxu0 0.0
    %2647 = vmatpush1.xpose.msra.mxu0 0.0
    %2648 = vmatprep.subr.mxu0 0.0
    %2649 = vmatpush1.xpose.msra.mxu0 0.0
    %2650 = vmatprep.subr.mxu0 0.0
    %2651 = vmatpush1.xpose.msra.mxu0 0.0
    %2652 = vmatprep.subr.mxu0 0.0
    %2653 = vmatpush1.xpose.msra.mxu0 0.0
    %2654 = vmatprep.subr.mxu0 0.0
    %2655 = vmatpush1.xpose.msra.mxu0 0.0
    %2656 = vmatprep.subr.mxu0 0.0
    %2657 = vmatpush1.xpose.msra.mxu0 0.0
    %2658 = vmatprep.subr.mxu0 0.0
    %2659 = vmatpush1.xpose.msra.mxu0 0.0
    %2660 = vmatprep.subr.mxu0 0.0
    %2661 = vmatpush1.xpose.msra.mxu0 0.0
    %2662 = vmatprep.subr.mxu0 0.0
    %2663 = vmatpush1.xpose.msra.mxu0 0.0
    %2664 = vmatprep.mubr.f32.mxu0 0.0
    %2665 = vmatmul.mubr.f32.gmra.mrb[0].mxu0 %v2596
    %v2666 = vpop.f32.mrb[0].mxu0
    %v2667 = vadd.f32 0.0, %v2666
    %v2668 = vpop.f32.mrb[0].mxu0
    %2669 = vdwg.mxu0
    %2670 = vrot.lane.b32.xlu0 %v1947, 112
    %v2671 = vpop.permute.xlu0 %2670
    %2672 = vrot.lane.b32.xlu0 %v1947, 80
    %v2673 = vpop.permute.xlu0 %2672
    %v2674 = vsel %vm168, %v2671, 0
    %v2676 = vsel %vm168, %v2673, 0
    %2678 = vmatprep.subr.mxu0 0.0
    %2679 = vmatpush1.xpose.msra.mxu0 %v2676
    %2680 = vmatprep.subr.mxu0 0.0
    %2681 = vmatpush1.xpose.msra.mxu0 0.0
    %2682 = vmatprep.subr.mxu0 0.0
    %2683 = vmatpush1.xpose.msra.mxu0 0.0
    %2684 = vmatprep.subr.mxu0 0.0
    %2685 = vmatpush1.xpose.msra.mxu0 0.0
    %2686 = vmatprep.subr.mxu0 0.0
    %2687 = vmatpush1.xpose.msra.mxu0 0.0
    %2688 = vmatprep.subr.mxu0 0.0
    %2689 = vmatpush1.xpose.msra.mxu0 0.0
    %2690 = vmatprep.subr.mxu0 0.0
    %2691 = vmatpush1.xpose.msra.mxu0 0.0
    %2692 = vmatprep.subr.mxu0 0.0
    %2693 = vmatpush1.xpose.msra.mxu0 0.0
    %2694 = vmatprep.subr.mxu0 0.0
    %2695 = vmatpush1.xpose.msra.mxu0 0.0
    %2696 = vmatprep.subr.mxu0 0.0
    %2697 = vmatpush1.xpose.msra.mxu0 0.0
    %2698 = vmatprep.subr.mxu0 0.0
    %2699 = vmatpush1.xpose.msra.mxu0 0.0
    %2700 = vmatprep.subr.mxu0 0.0
    %2701 = vmatpush1.xpose.msra.mxu0 0.0
    %2702 = vmatprep.subr.mxu0 0.0
    %2703 = vmatpush1.xpose.msra.mxu0 0.0
    %2704 = vmatprep.subr.mxu0 0.0
    %2705 = vmatpush1.xpose.msra.mxu0 0.0
    %2706 = vmatprep.subr.mxu0 0.0
    %2707 = vmatpush1.xpose.msra.mxu0 0.0
    %2708 = vmatprep.subr.mxu0 0.0
    %2709 = vmatpush1.xpose.msra.mxu0 0.0
    %2710 = vmatprep.subr.mxu0 0.0
    %2711 = vmatpush1.xpose.msra.mxu0 0.0
    %2712 = vmatprep.subr.mxu0 0.0
    %2713 = vmatpush1.xpose.msra.mxu0 0.0
    %2714 = vmatprep.subr.mxu0 0.0
    %2715 = vmatpush1.xpose.msra.mxu0 0.0
    %2716 = vmatprep.subr.mxu0 0.0
    %2717 = vmatpush1.xpose.msra.mxu0 0.0
    %2718 = vmatprep.subr.mxu0 0.0
    %2719 = vmatpush1.xpose.msra.mxu0 0.0
    %2720 = vmatprep.subr.mxu0 0.0
    %2721 = vmatpush1.xpose.msra.mxu0 0.0
    %2722 = vmatprep.subr.mxu0 0.0
    %2723 = vmatpush1.xpose.msra.mxu0 0.0
    %2724 = vmatprep.subr.mxu0 0.0
    %2725 = vmatpush1.xpose.msra.mxu0 0.0
    %2726 = vmatprep.subr.mxu0 0.0
    %2727 = vmatpush1.xpose.msra.mxu0 0.0
    %2728 = vmatprep.subr.mxu0 0.0
    %2729 = vmatpush1.xpose.msra.mxu0 0.0
    %2730 = vmatprep.subr.mxu0 0.0
    %2731 = vmatpush1.xpose.msra.mxu0 0.0
    %2732 = vmatprep.subr.mxu0 0.0
    %2733 = vmatpush1.xpose.msra.mxu0 0.0
    %2734 = vmatprep.subr.mxu0 0.0
    %2735 = vmatpush1.xpose.msra.mxu0 0.0
    %2736 = vmatprep.subr.mxu0 0.0
    %2737 = vmatpush1.xpose.msra.mxu0 0.0
    %2738 = vmatprep.subr.mxu0 0.0
    %2739 = vmatpush1.xpose.msra.mxu0 0.0
    %2740 = vmatprep.subr.mxu0 0.0
    %2741 = vmatpush1.xpose.msra.mxu0 0.0
    %2742 = vmatprep.mubr.f32.mxu0 0.0
    %2743 = vmatmul.mubr.f32.gmra.mrb[0].mxu0 %v2674
    %v2744 = vpop.f32.mrb[0].mxu0
    %v2745 = vadd.f32 0.0, %v2744
    %v2746 = vpop.f32.mrb[0].mxu0
    %2747 = vdwg.mxu0
    %v2748 = vsel %vm47, %v2667, 0.0
    %v2749 = vsel %vm47, %v2745, 0.0
    %v2750 = vsel %vm168, %v2748, 0.0
    %2751 = vadd.xlane.f32.xlu0 %v2750
    %v2752 = vpop.xlane.xlu0 %2751
    %v2753 = vsel %vm168, %v2749, 0.0
    %2754 = vadd.xlane.f32.xlu0 %v2753
    %v2755 = vpop.xlane.xlu0 %2754
    %v2756 = vadd.f32 %v2752, 1e-06
    %v2757 = vadd.f32 %v2755, 1e-06
    %2758 = vrot.lane.b32.xlu0 %v1930, 48
    %v2759 = vpop.permute.xlu0 %2758
    %v2762 = vsel %vm168, %v2748, 0
    %2764 = vmatprep.subr.mxu0 0.0
    %2765 = vmatpush1.msra.mxu0 %v2759
    %2766 = vmatprep.subr.mxu0 0.0
    %2767 = vmatpush1.msra.mxu0 0.0
    %2768 = vmatprep.subr.mxu0 0.0
    %2769 = vmatpush1.msra.mxu0 0.0
    %2770 = vmatprep.subr.mxu0 0.0
    %2771 = vmatpush1.msra.mxu0 0.0
    %2772 = vmatprep.subr.mxu0 0.0
    %2773 = vmatpush1.msra.mxu0 0.0
    %2774 = vmatprep.subr.mxu0 0.0
    %2775 = vmatpush1.msra.mxu0 0.0
    %2776 = vmatprep.subr.mxu0 0.0
    %2777 = vmatpush1.msra.mxu0 0.0
    %2778 = vmatprep.subr.mxu0 0.0
    %2779 = vmatpush1.msra.mxu0 0.0
    %2780 = vmatprep.subr.mxu0 0.0
    %2781 = vmatpush1.msra.mxu0 0.0
    %2782 = vmatprep.subr.mxu0 0.0
    %2783 = vmatpush1.msra.mxu0 0.0
    %2784 = vmatprep.subr.mxu0 0.0
    %2785 = vmatpush1.msra.mxu0 0.0
    %2786 = vmatprep.subr.mxu0 0.0
    %2787 = vmatpush1.msra.mxu0 0.0
    %2788 = vmatprep.subr.mxu0 0.0
    %2789 = vmatpush1.msra.mxu0 0.0
    %2790 = vmatprep.subr.mxu0 0.0
    %2791 = vmatpush1.msra.mxu0 0.0
    %2792 = vmatprep.subr.mxu0 0.0
    %2793 = vmatpush1.msra.mxu0 0.0
    %2794 = vmatprep.subr.mxu0 0.0
    %2795 = vmatpush1.msra.mxu0 0.0
    %2796 = vmatprep.subr.mxu0 0.0
    %2797 = vmatpush1.msra.mxu0 0.0
    %2798 = vmatprep.subr.mxu0 0.0
    %2799 = vmatpush1.msra.mxu0 0.0
    %2800 = vmatprep.subr.mxu0 0.0
    %2801 = vmatpush1.msra.mxu0 0.0
    %2802 = vmatprep.subr.mxu0 0.0
    %2803 = vmatpush1.msra.mxu0 0.0
    %2804 = vmatprep.subr.mxu0 0.0
    %2805 = vmatpush1.msra.mxu0 0.0
    %2806 = vmatprep.subr.mxu0 0.0
    %2807 = vmatpush1.msra.mxu0 0.0
    %2808 = vmatprep.subr.mxu0 0.0
    %2809 = vmatpush1.msra.mxu0 0.0
    %2810 = vmatprep.subr.mxu0 0.0
    %2811 = vmatpush1.msra.mxu0 0.0
    %2812 = vmatprep.subr.mxu0 0.0
    %2813 = vmatpush1.msra.mxu0 0.0
    %2814 = vmatprep.subr.mxu0 0.0
    %2815 = vmatpush1.msra.mxu0 0.0
    %2816 = vmatprep.subr.mxu0 0.0
    %2817 = vmatpush1.msra.mxu0 0.0
    %2818 = vmatprep.subr.mxu0 0.0
    %2819 = vmatpush1.msra.mxu0 0.0
    %2820 = vmatprep.subr.mxu0 0.0
    %2821 = vmatpush1.msra.mxu0 0.0
    %2822 = vmatprep.subr.mxu0 0.0
    %2823 = vmatpush1.msra.mxu0 0.0
    %2824 = vmatprep.subr.mxu0 0.0
    %2825 = vmatpush1.msra.mxu0 0.0
    %2826 = vmatprep.subr.mxu0 0.0
    %2827 = vmatpush1.msra.mxu0 0.0
    %2828 = vmatprep.mubr.f32.mxu0 0.0
    %2829 = vmatmul.mubr.f32.gmra.mrb[0].mxu0 %v2762
    %v2830 = vpop.f32.mrb[0].mxu0
    %v2831 = vadd.f32 0.0, %v2830
    %v2832 = vpop.f32.mrb[0].mxu0
    %2833 = vdwg.mxu0
    %2834 = vrot.lane.b32.xlu0 %v1935, 48
    %v2835 = vpop.permute.xlu0 %2834
    %v2838 = vsel %vm168, %v2749, 0
    %2840 = vmatprep.subr.mxu0 0.0
    %2841 = vmatpush1.msra.mxu0 %v2835
    %2842 = vmatprep.subr.mxu0 0.0
    %2843 = vmatpush1.msra.mxu0 0.0
    %2844 = vmatprep.subr.mxu0 0.0
    %2845 = vmatpush1.msra.mxu0 0.0
    %2846 = vmatprep.subr.mxu0 0.0
    %2847 = vmatpush1.msra.mxu0 0.0
    %2848 = vmatprep.subr.mxu0 0.0
    %2849 = vmatpush1.msra.mxu0 0.0
    %2850 = vmatprep.subr.mxu0 0.0
    %2851 = vmatpush1.msra.mxu0 0.0
    %2852 = vmatprep.subr.mxu0 0.0
    %2853 = vmatpush1.msra.mxu0 0.0
    %2854 = vmatprep.subr.mxu0 0.0
    %2855 = vmatpush1.msra.mxu0 0.0
    %2856 = vmatprep.subr.mxu0 0.0
    %2857 = vmatpush1.msra.mxu0 0.0
    %2858 = vmatprep.subr.mxu0 0.0
    %2859 = vmatpush1.msra.mxu0 0.0
    %2860 = vmatprep.subr.mxu0 0.0
    %2861 = vmatpush1.msra.mxu0 0.0
    %2862 = vmatprep.subr.mxu0 0.0
    %2863 = vmatpush1.msra.mxu0 0.0
    %2864 = vmatprep.subr.mxu0 0.0
    %2865 = vmatpush1.msra.mxu0 0.0
    %2866 = vmatprep.subr.mxu0 0.0
    %2867 = vmatpush1.msra.mxu0 0.0
    %2868 = vmatprep.subr.mxu0 0.0
    %2869 = vmatpush1.msra.mxu0 0.0
    %2870 = vmatprep.subr.mxu0 0.0
    %2871 = vmatpush1.msra.mxu0 0.0
    %2872 = vmatprep.subr.mxu0 0.0
    %2873 = vmatpush1.msra.mxu0 0.0
    %2874 = vmatprep.subr.mxu0 0.0
    %2875 = vmatpush1.msra.mxu0 0.0
    %2876 = vmatprep.subr.mxu0 0.0
    %2877 = vmatpush1.msra.mxu0 0.0
    %2878 = vmatprep.subr.mxu0 0.0
    %2879 = vmatpush1.msra.mxu0 0.0
    %2880 = vmatprep.subr.mxu0 0.0
    %2881 = vmatpush1.msra.mxu0 0.0
    %2882 = vmatprep.subr.mxu0 0.0
    %2883 = vmatpush1.msra.mxu0 0.0
    %2884 = vmatprep.subr.mxu0 0.0
    %2885 = vmatpush1.msra.mxu0 0.0
    %2886 = vmatprep.subr.mxu0 0.0
    %2887 = vmatpush1.msra.mxu0 0.0
    %2888 = vmatprep.subr.mxu0 0.0
    %2889 = vmatpush1.msra.mxu0 0.0
    %2890 = vmatprep.subr.mxu0 0.0
    %2891 = vmatpush1.msra.mxu0 0.0
    %2892 = vmatprep.subr.mxu0 0.0
    %2893 = vmatpush1.msra.mxu0 0.0
    %2894 = vmatprep.subr.mxu0 0.0
    %2895 = vmatpush1.msra.mxu0 0.0
    %2896 = vmatprep.subr.mxu0 0.0
    %2897 = vmatpush1.msra.mxu0 0.0
    %2898 = vmatprep.subr.mxu0 0.0
    %2899 = vmatpush1.msra.mxu0 0.0
    %2900 = vmatprep.subr.mxu0 0.0
    %2901 = vmatpush1.msra.mxu0 0.0
    %2902 = vmatprep.subr.mxu0 0.0
    %2903 = vmatpush1.msra.mxu0 0.0
    %2904 = vmatprep.mubr.f32.mxu0 0.0
    %2905 = vmatmul.mubr.f32.gmra.mrb[0].mxu0 %v2838
    %v2906 = vpop.f32.mrb[0].mxu0
    %v2907 = vadd.f32 0.0, %v2906
    %v2908 = vpop.f32.mrb[0].mxu0
    %2909 = vdwg.mxu0
    %v2910 = vrcp.pop %v2756
    %v2911 = vmul.f32 %v2831, %v2910
    %v2912 = vrcp.pop %v2757
    %v2913 = vmul.f32 %v2907, %v2912
    %2914 = vrot.lane.b32.xlu0 %v1946, 104
    %v2915 = vpop.permute.xlu0 %2914
    %2916 = vrot.lane.b32.xlu0 %v1946, 72
    %v2917 = vpop.permute.xlu0 %2916
    %v2918 = vsel %vm168, %v2915, 0
    %v2920 = vsel %vm168, %v2917, 0
    %2922 = vmatprep.subr.mxu0 0.0
    %2923 = vmatpush1.xpose.msra.mxu0 %v2920
    %2924 = vmatprep.subr.mxu0 0.0
    %2925 = vmatpush1.xpose.msra.mxu0 0.0
    %2926 = vmatprep.subr.mxu0 0.0
    %2927 = vmatpush1.xpose.msra.mxu0 0.0
    %2928 = vmatprep.subr.mxu0 0.0
    %2929 = vmatpush1.xpose.msra.mxu0 0.0
    %2930 = vmatprep.subr.mxu0 0.0
    %2931 = vmatpush1.xpose.msra.mxu0 0.0
    %2932 = vmatprep.subr.mxu0 0.0
    %2933 = vmatpush1.xpose.msra.mxu0 0.0
    %2934 = vmatprep.subr.mxu0 0.0
    %2935 = vmatpush1.xpose.msra.mxu0 0.0
    %2936 = vmatprep.subr.mxu0 0.0
    %2937 = vmatpush1.xpose.msra.mxu0 0.0
    %2938 = vmatprep.subr.mxu0 0.0
    %2939 = vmatpush1.xpose.msra.mxu0 0.0
    %2940 = vmatprep.subr.mxu0 0.0
    %2941 = vmatpush1.xpose.msra.mxu0 0.0
    %2942 = vmatprep.subr.mxu0 0.0
    %2943 = vmatpush1.xpose.msra.mxu0 0.0
    %2944 = vmatprep.subr.mxu0 0.0
    %2945 = vmatpush1.xpose.msra.mxu0 0.0
    %2946 = vmatprep.subr.mxu0 0.0
    %2947 = vmatpush1.xpose.msra.mxu0 0.0
    %2948 = vmatprep.subr.mxu0 0.0
    %2949 = vmatpush1.xpose.msra.mxu0 0.0
    %2950 = vmatprep.subr.mxu0 0.0
    %2951 = vmatpush1.xpose.msra.mxu0 0.0
    %2952 = vmatprep.subr.mxu0 0.0
    %2953 = vmatpush1.xpose.msra.mxu0 0.0
    %2954 = vmatprep.subr.mxu0 0.0
    %2955 = vmatpush1.xpose.msra.mxu0 0.0
    %2956 = vmatprep.subr.mxu0 0.0
    %2957 = vmatpush1.xpose.msra.mxu0 0.0
    %2958 = vmatprep.subr.mxu0 0.0
    %2959 = vmatpush1.xpose.msra.mxu0 0.0
    %2960 = vmatprep.subr.mxu0 0.0
    %2961 = vmatpush1.xpose.msra.mxu0 0.0
    %2962 = vmatprep.subr.mxu0 0.0
    %2963 = vmatpush1.xpose.msra.mxu0 0.0
    %2964 = vmatprep.subr.mxu0 0.0
    %2965 = vmatpush1.xpose.msra.mxu0 0.0
    %2966 = vmatprep.subr.mxu0 0.0
    %2967 = vmatpush1.xpose.msra.mxu0 0.0
    %2968 = vmatprep.subr.mxu0 0.0
    %2969 = vmatpush1.xpose.msra.mxu0 0.0
    %2970 = vmatprep.subr.mxu0 0.0
    %2971 = vmatpush1.xpose.msra.mxu0 0.0
    %2972 = vmatprep.subr.mxu0 0.0
    %2973 = vmatpush1.xpose.msra.mxu0 0.0
    %2974 = vmatprep.subr.mxu0 0.0
    %2975 = vmatpush1.xpose.msra.mxu0 0.0
    %2976 = vmatprep.subr.mxu0 0.0
    %2977 = vmatpush1.xpose.msra.mxu0 0.0
    %2978 = vmatprep.subr.mxu0 0.0
    %2979 = vmatpush1.xpose.msra.mxu0 0.0
    %2980 = vmatprep.subr.mxu0 0.0
    %2981 = vmatpush1.xpose.msra.mxu0 0.0
    %2982 = vmatprep.subr.mxu0 0.0
    %2983 = vmatpush1.xpose.msra.mxu0 0.0
    %2984 = vmatprep.subr.mxu0 0.0
    %2985 = vmatpush1.xpose.msra.mxu0 0.0
    %2986 = vmatprep.mubr.f32.mxu0 0.0
    %2987 = vmatmul.mubr.f32.gmra.mrb[0].mxu0 %v2918
    %v2988 = vpop.f32.mrb[0].mxu0
    %v2989 = vadd.f32 0.0, %v2988
    %v2990 = vpop.f32.mrb[0].mxu0
    %2991 = vdwg.mxu0
    %2992 = vrot.lane.b32.xlu0 %v1947, 104
    %v2993 = vpop.permute.xlu0 %2992
    %2994 = vrot.lane.b32.xlu0 %v1947, 72
    %v2995 = vpop.permute.xlu0 %2994
    %v2996 = vsel %vm168, %v2993, 0
    %v2998 = vsel %vm168, %v2995, 0
    %3000 = vmatprep.subr.mxu0 0.0
    %3001 = vmatpush1.xpose.msra.mxu0 %v2998
    %3002 = vmatprep.subr.mxu0 0.0
    %3003 = vmatpush1.xpose.msra.mxu0 0.0
    %3004 = vmatprep.subr.mxu0 0.0
    %3005 = vmatpush1.xpose.msra.mxu0 0.0
    %3006 = vmatprep.subr.mxu0 0.0
    %3007 = vmatpush1.xpose.msra.mxu0 0.0
    %3008 = vmatprep.subr.mxu0 0.0
    %3009 = vmatpush1.xpose.msra.mxu0 0.0
    %3010 = vmatprep.subr.mxu0 0.0
    %3011 = vmatpush1.xpose.msra.mxu0 0.0
    %3012 = vmatprep.subr.mxu0 0.0
    %3013 = vmatpush1.xpose.msra.mxu0 0.0
    %3014 = vmatprep.subr.mxu0 0.0
    %3015 = vmatpush1.xpose.msra.mxu0 0.0
    %3016 = vmatprep.subr.mxu0 0.0
    %3017 = vmatpush1.xpose.msra.mxu0 0.0
    %3018 = vmatprep.subr.mxu0 0.0
    %3019 = vmatpush1.xpose.msra.mxu0 0.0
    %3020 = vmatprep.subr.mxu0 0.0
    %3021 = vmatpush1.xpose.msra.mxu0 0.0
    %3022 = vmatprep.subr.mxu0 0.0
    %3023 = vmatpush1.xpose.msra.mxu0 0.0
    %3024 = vmatprep.subr.mxu0 0.0
    %3025 = vmatpush1.xpose.msra.mxu0 0.0
    %3026 = vmatprep.subr.mxu0 0.0
    %3027 = vmatpush1.xpose.msra.mxu0 0.0
    %3028 = vmatprep.subr.mxu0 0.0
    %3029 = vmatpush1.xpose.msra.mxu0 0.0
    %3030 = vmatprep.subr.mxu0 0.0
    %3031 = vmatpush1.xpose.msra.mxu0 0.0
    %3032 = vmatprep.subr.mxu0 0.0
    %3033 = vmatpush1.xpose.msra.mxu0 0.0
    %3034 = vmatprep.subr.mxu0 0.0
    %3035 = vmatpush1.xpose.msra.mxu0 0.0
    %3036 = vmatprep.subr.mxu0 0.0
    %3037 = vmatpush1.xpose.msra.mxu0 0.0
    %3038 = vmatprep.subr.mxu0 0.0
    %3039 = vmatpush1.xpose.msra.mxu0 0.0
    %3040 = vmatprep.subr.mxu0 0.0
    %3041 = vmatpush1.xpose.msra.mxu0 0.0
    %3042 = vmatprep.subr.mxu0 0.0
    %3043 = vmatpush1.xpose.msra.mxu0 0.0
    %3044 = vmatprep.subr.mxu0 0.0
    %3045 = vmatpush1.xpose.msra.mxu0 0.0
    %3046 = vmatprep.subr.mxu0 0.0
    %3047 = vmatpush1.xpose.msra.mxu0 0.0
    %3048 = vmatprep.subr.mxu0 0.0
    %3049 = vmatpush1.xpose.msra.mxu0 0.0
    %3050 = vmatprep.subr.mxu0 0.0
    %3051 = vmatpush1.xpose.msra.mxu0 0.0
    %3052 = vmatprep.subr.mxu0 0.0
    %3053 = vmatpush1.xpose.msra.mxu0 0.0
    %3054 = vmatprep.subr.mxu0 0.0
    %3055 = vmatpush1.xpose.msra.mxu0 0.0
    %3056 = vmatprep.subr.mxu0 0.0
    %3057 = vmatpush1.xpose.msra.mxu0 0.0
    %3058 = vmatprep.subr.mxu0 0.0
    %3059 = vmatpush1.xpose.msra.mxu0 0.0
    %3060 = vmatprep.subr.mxu0 0.0
    %3061 = vmatpush1.xpose.msra.mxu0 0.0
    %3062 = vmatprep.subr.mxu0 0.0
    %3063 = vmatpush1.xpose.msra.mxu0 0.0
    %3064 = vmatprep.mubr.f32.mxu0 0.0
    %3065 = vmatmul.mubr.f32.gmra.mrb[0].mxu0 %v2996
    %v3066 = vpop.f32.mrb[0].mxu0
    %v3067 = vadd.f32 0.0, %v3066
    %v3068 = vpop.f32.mrb[0].mxu0
    %3069 = vdwg.mxu0
    %v3070 = vsel %vm47, %v2989, 0.0
    %v3071 = vsel %vm47, %v3067, 0.0
    %v3072 = vsel %vm168, %v3070, 0.0
    %3073 = vadd.xlane.f32.xlu0 %v3072
    %v3074 = vpop.xlane.xlu0 %3073
    %v3075 = vsel %vm168, %v3071, 0.0
    %3076 = vadd.xlane.f32.xlu0 %v3075
    %v3077 = vpop.xlane.xlu0 %3076
    %v3078 = vadd.f32 %v3074, 1e-06
    %v3079 = vadd.f32 %v3077, 1e-06
    %3080 = vrot.lane.b32.xlu0 %v1930, 40
    %v3081 = vpop.permute.xlu0 %3080
    %v3084 = vsel %vm168, %v3070, 0
    %3086 = vmatprep.subr.mxu0 0.0
    %3087 = vmatpush1.msra.mxu0 %v3081
    %3088 = vmatprep.subr.mxu0 0.0
    %3089 = vmatpush1.msra.mxu0 0.0
    %3090 = vmatprep.subr.mxu0 0.0
    %3091 = vmatpush1.msra.mxu0 0.0
    %3092 = vmatprep.subr.mxu0 0.0
    %3093 = vmatpush1.msra.mxu0 0.0
    %3094 = vmatprep.subr.mxu0 0.0
    %3095 = vmatpush1.msra.mxu0 0.0
    %3096 = vmatprep.subr.mxu0 0.0
    %3097 = vmatpush1.msra.mxu0 0.0
    %3098 = vmatprep.subr.mxu0 0.0
    %3099 = vmatpush1.msra.mxu0 0.0
    %3100 = vmatprep.subr.mxu0 0.0
    %3101 = vmatpush1.msra.mxu0 0.0
    %3102 = vmatprep.subr.mxu0 0.0
    %3103 = vmatpush1.msra.mxu0 0.0
    %3104 = vmatprep.subr.mxu0 0.0
    %3105 = vmatpush1.msra.mxu0 0.0
    %3106 = vmatprep.subr.mxu0 0.0
    %3107 = vmatpush1.msra.mxu0 0.0
    %3108 = vmatprep.subr.mxu0 0.0
    %3109 = vmatpush1.msra.mxu0 0.0
    %3110 = vmatprep.subr.mxu0 0.0
    %3111 = vmatpush1.msra.mxu0 0.0
    %3112 = vmatprep.subr.mxu0 0.0
    %3113 = vmatpush1.msra.mxu0 0.0
    %3114 = vmatprep.subr.mxu0 0.0
    %3115 = vmatpush1.msra.mxu0 0.0
    %3116 = vmatprep.subr.mxu0 0.0
    %3117 = vmatpush1.msra.mxu0 0.0
    %3118 = vmatprep.subr.mxu0 0.0
    %3119 = vmatpush1.msra.mxu0 0.0
    %3120 = vmatprep.subr.mxu0 0.0
    %3121 = vmatpush1.msra.mxu0 0.0
    %3122 = vmatprep.subr.mxu0 0.0
    %3123 = vmatpush1.msra.mxu0 0.0
    %3124 = vmatprep.subr.mxu0 0.0
    %3125 = vmatpush1.msra.mxu0 0.0
    %3126 = vmatprep.subr.mxu0 0.0
    %3127 = vmatpush1.msra.mxu0 0.0
    %3128 = vmatprep.subr.mxu0 0.0
    %3129 = vmatpush1.msra.mxu0 0.0
    %3130 = vmatprep.subr.mxu0 0.0
    %3131 = vmatpush1.msra.mxu0 0.0
    %3132 = vmatprep.subr.mxu0 0.0
    %3133 = vmatpush1.msra.mxu0 0.0
    %3134 = vmatprep.subr.mxu0 0.0
    %3135 = vmatpush1.msra.mxu0 0.0
    %3136 = vmatprep.subr.mxu0 0.0
    %3137 = vmatpush1.msra.mxu0 0.0
    %3138 = vmatprep.subr.mxu0 0.0
    %3139 = vmatpush1.msra.mxu0 0.0
    %3140 = vmatprep.subr.mxu0 0.0
    %3141 = vmatpush1.msra.mxu0 0.0
    %3142 = vmatprep.subr.mxu0 0.0
    %3143 = vmatpush1.msra.mxu0 0.0
    %3144 = vmatprep.subr.mxu0 0.0
    %3145 = vmatpush1.msra.mxu0 0.0
    %3146 = vmatprep.subr.mxu0 0.0
    %3147 = vmatpush1.msra.mxu0 0.0
    %3148 = vmatprep.subr.mxu0 0.0
    %3149 = vmatpush1.msra.mxu0 0.0
    %3150 = vmatprep.mubr.f32.mxu0 0.0
    %3151 = vmatmul.mubr.f32.gmra.mrb[0].mxu0 %v3084
    %v3152 = vpop.f32.mrb[0].mxu0
    %v3153 = vadd.f32 0.0, %v3152
    %v3154 = vpop.f32.mrb[0].mxu0
    %3155 = vdwg.mxu0
    %3156 = vrot.lane.b32.xlu0 %v1935, 40
    %v3157 = vpop.permute.xlu0 %3156
    %v3160 = vsel %vm168, %v3071, 0
    %3162 = vmatprep.subr.mxu0 0.0
    %3163 = vmatpush1.msra.mxu0 %v3157
    %3164 = vmatprep.subr.mxu0 0.0
    %3165 = vmatpush1.msra.mxu0 0.0
    %3166 = vmatprep.subr.mxu0 0.0
    %3167 = vmatpush1.msra.mxu0 0.0
    %3168 = vmatprep.subr.mxu0 0.0
    %3169 = vmatpush1.msra.mxu0 0.0
    %3170 = vmatprep.subr.mxu0 0.0
    %3171 = vmatpush1.msra.mxu0 0.0
    %3172 = vmatprep.subr.mxu0 0.0
    %3173 = vmatpush1.msra.mxu0 0.0
    %3174 = vmatprep.subr.mxu0 0.0
    %3175 = vmatpush1.msra.mxu0 0.0
    %3176 = vmatprep.subr.mxu0 0.0
    %3177 = vmatpush1.msra.mxu0 0.0
    %3178 = vmatprep.subr.mxu0 0.0
    %3179 = vmatpush1.msra.mxu0 0.0
    %3180 = vmatprep.subr.mxu0 0.0
    %3181 = vmatpush1.msra.mxu0 0.0
    %3182 = vmatprep.subr.mxu0 0.0
    %3183 = vmatpush1.msra.mxu0 0.0
    %3184 = vmatprep.subr.mxu0 0.0
    %3185 = vmatpush1.msra.mxu0 0.0
    %3186 = vmatprep.subr.mxu0 0.0
    %3187 = vmatpush1.msra.mxu0 0.0
    %3188 = vmatprep.subr.mxu0 0.0
    %3189 = vmatpush1.msra.mxu0 0.0
    %3190 = vmatprep.subr.mxu0 0.0
    %3191 = vmatpush1.msra.mxu0 0.0
    %3192 = vmatprep.subr.mxu0 0.0
    %3193 = vmatpush1.msra.mxu0 0.0
    %3194 = vmatprep.subr.mxu0 0.0
    %3195 = vmatpush1.msra.mxu0 0.0
    %3196 = vmatprep.subr.mxu0 0.0
    %3197 = vmatpush1.msra.mxu0 0.0
    %3198 = vmatprep.subr.mxu0 0.0
    %3199 = vmatpush1.msra.mxu0 0.0
    %3200 = vmatprep.subr.mxu0 0.0
    %3201 = vmatpush1.msra.mxu0 0.0
    %3202 = vmatprep.subr.mxu0 0.0
    %3203 = vmatpush1.msra.mxu0 0.0
    %3204 = vmatprep.subr.mxu0 0.0
    %3205 = vmatpush1.msra.mxu0 0.0
    %3206 = vmatprep.subr.mxu0 0.0
    %3207 = vmatpush1.msra.mxu0 0.0
    %3208 = vmatprep.subr.mxu0 0.0
    %3209 = vmatpush1.msra.mxu0 0.0
    %3210 = vmatprep.subr.mxu0 0.0
    %3211 = vmatpush1.msra.mxu0 0.0
    %3212 = vmatprep.subr.mxu0 0.0
    %3213 = vmatpush1.msra.mxu0 0.0
    %3214 = vmatprep.subr.mxu0 0.0
    %3215 = vmatpush1.msra.mxu0 0.0
    %3216 = vmatprep.subr.mxu0 0.0
    %3217 = vmatpush1.msra.mxu0 0.0
    %3218 = vmatprep.subr.mxu0 0.0
    %3219 = vmatpush1.msra.mxu0 0.0
    %3220 = vmatprep.subr.mxu0 0.0
    %3221 = vmatpush1.msra.mxu0 0.0
    %3222 = vmatprep.subr.mxu0 0.0
    %3223 = vmatpush1.msra.mxu0 0.0
    %3224 = vmatprep.subr.mxu0 0.0
    %3225 = vmatpush1.msra.mxu0 0.0
    %3226 = vmatprep.mubr.f32.mxu0 0.0
    %3227 = vmatmul.mubr.f32.gmra.mrb[0].mxu0 %v3160
    %v3228 = vpop.f32.mrb[0].mxu0
    %v3229 = vadd.f32 0.0, %v3228
    %v3230 = vpop.f32.mrb[0].mxu0
    %3231 = vdwg.mxu0
    %v3232 = vrcp.pop %v3078
    %v3233 = vmul.f32 %v3153, %v3232
    %v3234 = vrcp.pop %v3079
    %v3235 = vmul.f32 %v3229, %v3234
    %3238 = vrot.lane.b32.xlu0 %v2589, 8
    %v3239 = vpop.permute.xlu0 %3238
    %3240 = vrot.lane.b32.xlu0 %v2591, 8
    %v3241 = vpop.permute.xlu0 %3240
    %3246 = vrot.lane.b32.xlu0 %v2911, 16
    %v3247 = vpop.permute.xlu0 %3246
    %3248 = vrot.lane.b32.xlu0 %v2913, 16
    %v3249 = vpop.permute.xlu0 %3248
    %3254 = vrot.lane.b32.xlu0 %v3233, 24
    %v3255 = vpop.permute.xlu0 %3254
    %3256 = vrot.lane.b32.xlu0 %v3235, 24
    %v3257 = vpop.permute.xlu0 %3256
    %v3260 = vsel %vm168, %v2267, %v3239
    %v3261 = vsel %vm168, %v2269, %v3241
    %v3262 = vsel %vm1480, %v3260, %v3247
    %v3263 = vsel %vm1480, %v3261, %v3249
    %v3264 = vsel %vm1483, %v3262, %v3255
    %v3265 = vsel %vm1483, %v3263, %v3257
    %v3267 = vsel %vm73, %v3264, 0
    %v3270 = vsel %vm73, %v3265, 0
    %3272 = vmatprep.subr.mxu0 0.0
    %3273 = vmatpush1.msra.mxu0 %v1833
    %3274 = vmatprep.subr.mxu0 0.0
    %3275 = vmatpush1.msra.mxu0 %v1834
    %3276 = vmatprep.subr.mxu0 0.0
    %3277 = vmatpush1.msra.mxu0 %v1835
    %3278 = vmatprep.subr.mxu0 0.0
    %3279 = vmatpush1.msra.mxu0 %v1836
    %3280 = vmatprep.subr.mxu0 0.0
    %3281 = vmatpush1.msra.mxu0 0.0
    %3282 = vmatprep.subr.mxu0 0.0
    %3283 = vmatpush1.msra.mxu0 0.0
    %3284 = vmatprep.subr.mxu0 0.0
    %3285 = vmatpush1.msra.mxu0 0.0
    %3286 = vmatprep.subr.mxu0 0.0
    %3287 = vmatpush1.msra.mxu0 0.0
    %3288 = vmatprep.subr.mxu0 0.0
    %3289 = vmatpush1.msra.mxu0 0.0
    %3290 = vmatprep.subr.mxu0 0.0
    %3291 = vmatpush1.msra.mxu0 0.0
    %3292 = vmatprep.subr.mxu0 0.0
    %3293 = vmatpush1.msra.mxu0 0.0
    %3294 = vmatprep.subr.mxu0 0.0
    %3295 = vmatpush1.msra.mxu0 0.0
    %3296 = vmatprep.subr.mxu0 0.0
    %3297 = vmatpush1.msra.mxu0 0.0
    %3298 = vmatprep.subr.mxu0 0.0
    %3299 = vmatpush1.msra.mxu0 0.0
    %3300 = vmatprep.subr.mxu0 0.0
    %3301 = vmatpush1.msra.mxu0 0.0
    %3302 = vmatprep.subr.mxu0 0.0
    %3303 = vmatpush1.msra.mxu0 0.0
    %3304 = vmatprep.subr.mxu0 0.0
    %3305 = vmatpush1.msra.mxu0 0.0
    %3306 = vmatprep.subr.mxu0 0.0
    %3307 = vmatpush1.msra.mxu0 0.0
    %3308 = vmatprep.subr.mxu0 0.0
    %3309 = vmatpush1.msra.mxu0 0.0
    %3310 = vmatprep.subr.mxu0 0.0
    %3311 = vmatpush1.msra.mxu0 0.0
    %3312 = vmatprep.subr.mxu0 0.0
    %3313 = vmatpush1.msra.mxu0 0.0
    %3314 = vmatprep.subr.mxu0 0.0
    %3315 = vmatpush1.msra.mxu0 0.0
    %3316 = vmatprep.subr.mxu0 0.0
    %3317 = vmatpush1.msra.mxu0 0.0
    %3318 = vmatprep.subr.mxu0 0.0
    %3319 = vmatpush1.msra.mxu0 0.0
    %3320 = vmatprep.subr.mxu0 0.0
    %3321 = vmatpush1.msra.mxu0 0.0
    %3322 = vmatprep.subr.mxu0 0.0
    %3323 = vmatpush1.msra.mxu0 0.0
    %3324 = vmatprep.subr.mxu0 0.0
    %3325 = vmatpush1.msra.mxu0 0.0
    %3326 = vmatprep.subr.mxu0 0.0
    %3327 = vmatpush1.msra.mxu0 0.0
    %3328 = vmatprep.subr.mxu0 0.0
    %3329 = vmatpush1.msra.mxu0 0.0
    %3330 = vmatprep.subr.mxu0 0.0
    %3331 = vmatpush1.msra.mxu0 0.0
    %3332 = vmatprep.subr.mxu0 0.0
    %3333 = vmatpush1.msra.mxu0 0.0
    %3334 = vmatprep.subr.mxu0 0.0
    %3335 = vmatpush1.msra.mxu0 0.0
    %3336 = vmatprep.mubr.f32.mxu0 0.0
    %3337 = vmatmul.mubr.f32.gmra.mrb[0].mxu0 %v3267
    %v3338 = vpop.f32.mrb[0].mxu0
    %v3339 = vadd.f32 0.0, %v3338
    %v3340 = vpop.f32.mrb[0].mxu0
    %3341 = vmatprep.mubr.f32.mxu0 0.0
    %3342 = vmatmul.mubr.f32.gmra.mrb[0].mxu0 %v3270
    %v3343 = vpop.f32.mrb[0].mxu0
    %v3344 = vadd.f32 0.0, %v3343
    %v3345 = vpop.f32.mrb[0].mxu0
    %3346 = vdwg.mxu0
    %v3347 = vadd.f32 %v1825, %v3339
    %v3348 = vadd.f32 %v1826, %v3344
    %v3349 = vlaneseq
    %v3350 = vshrl.u32 %v3349, 7
    %v3351 = vsub.s32 2, %v3350
    %v3352 = vrot.slane %v1852, %v3351
    %v3353 = vadd.f32 %v3347, %v3352
    %v3354 = vadd.f32 %v3348, %v3352
    %v3355 = vsel %vm73, %v3353, 0.0
    %3356 = vadd.xlane.f32.xlu0 %v3355
    %v3357 = vpop.xlane.xlu0 %3356
    %v3358 = vsel %vm73, %v3354, 0.0
    %3359 = vadd.xlane.f32.xlu0 %v3358
    %v3360 = vpop.xlane.xlu0 %3359
    %v3361 = vmul.f32 %v3357, %v1581
    %v3362 = vmul.f32 %v3360, %v1581
    %v3363 = vsub.f32 %v3353, %v3361
    %v3364 = vsub.f32 %v3354, %v3362
    %v3365 = vmul.f32 %v3363, %v3363
    %v3366 = vmul.f32 %v3364, %v3364
    %v3367 = vsel %vm73, %v3365, 0.0
    %3368 = vadd.xlane.f32.xlu0 %v3367
    %v3369 = vpop.xlane.xlu0 %3368
    %v3370 = vsel %vm73, %v3366, 0.0
    %3371 = vadd.xlane.f32.xlu0 %v3370
    %v3372 = vpop.xlane.xlu0 %3371
    %v3373 = vmul.f32 %v3369, %v1581
    %v3374 = vmul.f32 %v3372, %v1581
    %v3375 = vadd.f32 %v3373, 1e-05
    %v3376 = vadd.f32 %v3374, 1e-05
    %v3377 = vrsqrt.pop %v3375
    %v3378 = vrsqrt.pop %v3376
    %v3379 = vmul.f32 %v3363, %v3377
    %v3380 = vmul.f32 %v3364, %v3378
    %v3381 = vlaneseq
    %v3382 = vshrl.u32 %v3381, 7
    %v3383 = vsub.s32 3, %v3382
    %v3384 = vrot.slane %v1852, %v3383
    %v3385 = vmul.f32 %v3379, %v3384
    %v3386 = vmul.f32 %v3380, %v3384
    %v3387 = vlaneseq
    %v3388 = vshrl.u32 %v3387, 7
    %v3389 = vsub.s32 4, %v3388
    %v3390 = vrot.slane %v1852, %v3389
    %v3391 = vadd.f32 %v3385, %v3390
    %v3392 = vadd.f32 %v3386, %v3390
    %v3393 = vlaneseq
    %v3394 = vshrl.u32 %v3393, 7
    %v3395 = vsub.s32 1, %v3394
    %v3396 = vrot.slane %v1852, %v3395
    %v3398 = vsel %vm73, %v3391, 0
    %v3401 = vsel %vm73, %v3392, 0
    %3403 = vmatprep.subr.mxu0 0.0
    %3404 = vmatpush1.msra.mxu0 %v1838
    %3405 = vmatprep.subr.mxu0 0.0
    %3406 = vmatpush1.msra.mxu0 %v1839
    %3407 = vmatprep.subr.mxu0 0.0
    %3408 = vmatpush1.msra.mxu0 %v1840
    %3409 = vmatprep.subr.mxu0 0.0
    %3410 = vmatpush1.msra.mxu0 %v1841
    %3411 = vmatprep.subr.mxu0 0.0
    %3412 = vmatpush1.msra.mxu0 0.0
    %3413 = vmatprep.subr.mxu0 0.0
    %3414 = vmatpush1.msra.mxu0 0.0
    %3415 = vmatprep.subr.mxu0 0.0
    %3416 = vmatpush1.msra.mxu0 0.0
    %3417 = vmatprep.subr.mxu0 0.0
    %3418 = vmatpush1.msra.mxu0 0.0
    %3419 = vmatprep.subr.mxu0 0.0
    %3420 = vmatpush1.msra.mxu0 0.0
    %3421 = vmatprep.subr.mxu0 0.0
    %3422 = vmatpush1.msra.mxu0 0.0
    %3423 = vmatprep.subr.mxu0 0.0
    %3424 = vmatpush1.msra.mxu0 0.0
    %3425 = vmatprep.subr.mxu0 0.0
    %3426 = vmatpush1.msra.mxu0 0.0
    %3427 = vmatprep.subr.mxu0 0.0
    %3428 = vmatpush1.msra.mxu0 0.0
    %3429 = vmatprep.subr.mxu0 0.0
    %3430 = vmatpush1.msra.mxu0 0.0
    %3431 = vmatprep.subr.mxu0 0.0
    %3432 = vmatpush1.msra.mxu0 0.0
    %3433 = vmatprep.subr.mxu0 0.0
    %3434 = vmatpush1.msra.mxu0 0.0
    %3435 = vmatprep.subr.mxu0 0.0
    %3436 = vmatpush1.msra.mxu0 0.0
    %3437 = vmatprep.subr.mxu0 0.0
    %3438 = vmatpush1.msra.mxu0 0.0
    %3439 = vmatprep.subr.mxu0 0.0
    %3440 = vmatpush1.msra.mxu0 0.0
    %3441 = vmatprep.subr.mxu0 0.0
    %3442 = vmatpush1.msra.mxu0 0.0
    %3443 = vmatprep.subr.mxu0 0.0
    %3444 = vmatpush1.msra.mxu0 0.0
    %3445 = vmatprep.subr.mxu0 0.0
    %3446 = vmatpush1.msra.mxu0 0.0
    %3447 = vmatprep.subr.mxu0 0.0
    %3448 = vmatpush1.msra.mxu0 0.0
    %3449 = vmatprep.subr.mxu0 0.0
    %3450 = vmatpush1.msra.mxu0 0.0
    %3451 = vmatprep.subr.mxu0 0.0
    %3452 = vmatpush1.msra.mxu0 0.0
    %3453 = vmatprep.subr.mxu0 0.0
    %3454 = vmatpush1.msra.mxu0 0.0
    %3455 = vmatprep.subr.mxu0 0.0
    %3456 = vmatpush1.msra.mxu0 0.0
    %3457 = vmatprep.subr.mxu0 0.0
    %3458 = vmatpush1.msra.mxu0 0.0
    %3459 = vmatprep.subr.mxu0 0.0
    %3460 = vmatpush1.msra.mxu0 0.0
    %3461 = vmatprep.subr.mxu0 0.0
    %3462 = vmatpush1.msra.mxu0 0.0
    %3463 = vmatprep.subr.mxu0 0.0
    %3464 = vmatpush1.msra.mxu0 0.0
    %3465 = vmatprep.subr.mxu0 0.0
    %3466 = vmatpush1.msra.mxu0 0.0
    %3467 = vmatprep.mubr.f32.mxu0 0.0
    %3468 = vmatmul.mubr.f32.gmra.mrb[0].mxu0 %v3398
    %v3469 = vpop.f32.mrb[0].mxu0
    %v3470 = vadd.f32 %v3396, %v3469
    %v3471 = vpop.f32.mrb[0].mxu0
    %3472 = vmatprep.mubr.f32.mxu0 0.0
    %3473 = vmatmul.mubr.f32.gmra.mrb[0].mxu0 %v3401
    %v3474 = vpop.f32.mrb[0].mxu0
    %v3475 = vadd.f32 %v3396, %v3474
    %v3476 = vpop.f32.mrb[0].mxu0
    %3477 = vdwg.mxu0
    %v3478 = vmax.f32 %v3470, 0.0
    %v3479 = vmax.f32 %v3475, 0.0
    %v3480 = vlaneseq
    %v3481 = vshrl.u32 %v3480, 7
    %v3482 = vsub.s32 5, %v3481
    %v3483 = vrot.slane %v1852, %v3482
    %v3485 = vsel %vm1705, %v3478, 0
    %v3488 = vsel %vm1705, %v3479, 0
    %3490 = vmatprep.subr.mxu0 0.0
    %3491 = vmatpush1.msra.mxu0 %v1843
    %3492 = vmatprep.subr.mxu0 0.0
    %3493 = vmatpush1.msra.mxu0 %v1844
    %3494 = vmatprep.subr.mxu0 0.0
    %3495 = vmatpush1.msra.mxu0 %v1845
    %3496 = vmatprep.subr.mxu0 0.0
    %3497 = vmatpush1.msra.mxu0 %v1846
    %3498 = vmatprep.subr.mxu0 0.0
    %3499 = vmatpush1.msra.mxu0 %v1847
    %3500 = vmatprep.subr.mxu0 0.0
    %3501 = vmatpush1.msra.mxu0 %v1848
    %3502 = vmatprep.subr.mxu0 0.0
    %3503 = vmatpush1.msra.mxu0 %v1849
    %3504 = vmatprep.subr.mxu0 0.0
    %3505 = vmatpush1.msra.mxu0 %v1850
    %3506 = vmatprep.subr.mxu0 0.0
    %3507 = vmatpush1.msra.mxu0 0.0
    %3508 = vmatprep.subr.mxu0 0.0
    %3509 = vmatpush1.msra.mxu0 0.0
    %3510 = vmatprep.subr.mxu0 0.0
    %3511 = vmatpush1.msra.mxu0 0.0
    %3512 = vmatprep.subr.mxu0 0.0
    %3513 = vmatpush1.msra.mxu0 0.0
    %3514 = vmatprep.subr.mxu0 0.0
    %3515 = vmatpush1.msra.mxu0 0.0
    %3516 = vmatprep.subr.mxu0 0.0
    %3517 = vmatpush1.msra.mxu0 0.0
    %3518 = vmatprep.subr.mxu0 0.0
    %3519 = vmatpush1.msra.mxu0 0.0
    %3520 = vmatprep.subr.mxu0 0.0
    %3521 = vmatpush1.msra.mxu0 0.0
    %3522 = vmatprep.subr.mxu0 0.0
    %3523 = vmatpush1.msra.mxu0 0.0
    %3524 = vmatprep.subr.mxu0 0.0
    %3525 = vmatpush1.msra.mxu0 0.0
    %3526 = vmatprep.subr.mxu0 0.0
    %3527 = vmatpush1.msra.mxu0 0.0
    %3528 = vmatprep.subr.mxu0 0.0
    %3529 = vmatpush1.msra.mxu0 0.0
    %3530 = vmatprep.subr.mxu0 0.0
    %3531 = vmatpush1.msra.mxu0 0.0
    %3532 = vmatprep.subr.mxu0 0.0
    %3533 = vmatpush1.msra.mxu0 0.0
    %3534 = vmatprep.subr.mxu0 0.0
    %3535 = vmatpush1.msra.mxu0 0.0
    %3536 = vmatprep.subr.mxu0 0.0
    %3537 = vmatpush1.msra.mxu0 0.0
    %3538 = vmatprep.subr.mxu0 0.0
    %3539 = vmatpush1.msra.mxu0 0.0
    %3540 = vmatprep.subr.mxu0 0.0
    %3541 = vmatpush1.msra.mxu0 0.0
    %3542 = vmatprep.subr.mxu0 0.0
    %3543 = vmatpush1.msra.mxu0 0.0
    %3544 = vmatprep.subr.mxu0 0.0
    %3545 = vmatpush1.msra.mxu0 0.0
    %3546 = vmatprep.subr.mxu0 0.0
    %3547 = vmatpush1.msra.mxu0 0.0
    %3548 = vmatprep.subr.mxu0 0.0
    %3549 = vmatpush1.msra.mxu0 0.0
    %3550 = vmatprep.subr.mxu0 0.0
    %3551 = vmatpush1.msra.mxu0 0.0
    %3552 = vmatprep.subr.mxu0 0.0
    %3553 = vmatpush1.msra.mxu0 0.0
    %3554 = vmatprep.mubr.f32.mxu0 0.0
    %3555 = vmatmul.mubr.f32.gmra.mrb[0].mxu0 %v3485
    %v3556 = vpop.f32.mrb[0].mxu0
    %v3557 = vadd.f32 %v3483, %v3556
    %v3558 = vpop.f32.mrb[0].mxu0
    %3559 = vmatprep.mubr.f32.mxu0 0.0
    %3560 = vmatmul.mubr.f32.gmra.mrb[0].mxu0 %v3488
    %v3561 = vpop.f32.mrb[0].mxu0
    %v3562 = vadd.f32 %v3483, %v3561
    %v3563 = vpop.f32.mrb[0].mxu0
    %3564 = vdwg.mxu0
    %v3565 = vadd.f32 %v3391, %v3557
    %v3566 = vadd.f32 %v3392, %v3562
    %v3567 = vsel %vm73, %v3565, 0.0
    %3568 = vadd.xlane.f32.xlu0 %v3567
    %v3569 = vpop.xlane.xlu0 %3568
    %v3570 = vsel %vm73, %v3566, 0.0
    %3571 = vadd.xlane.f32.xlu0 %v3570
    %v3572 = vpop.xlane.xlu0 %3571
    %v3573 = vmul.f32 %v3569, %v1581
    %v3574 = vmul.f32 %v3572, %v1581
    %v3575 = vsub.f32 %v3565, %v3573
    %v3576 = vsub.f32 %v3566, %v3574
    %v3577 = vmul.f32 %v3575, %v3575
    %v3578 = vmul.f32 %v3576, %v3576
    %v3579 = vsel %vm73, %v3577, 0.0
    %3580 = vadd.xlane.f32.xlu0 %v3579
    %v3581 = vpop.xlane.xlu0 %3580
    %v3582 = vsel %vm73, %v3578, 0.0
    %3583 = vadd.xlane.f32.xlu0 %v3582
    %v3584 = vpop.xlane.xlu0 %3583
    %v3585 = vmul.f32 %v3581, %v1581
    %v3586 = vmul.f32 %v3584, %v1581
    %v3587 = vadd.f32 %v3585, 1e-05
    %v3588 = vadd.f32 %v3586, 1e-05
    %v3589 = vrsqrt.pop %v3587
    %v3590 = vrsqrt.pop %v3588
    %v3591 = vmul.f32 %v3575, %v3589
    %v3592 = vmul.f32 %v3576, %v3590
    %v3593 = vlaneseq
    %v3594 = vshrl.u32 %v3593, 7
    %v3595 = vsub.s32 6, %v3594
    %v3596 = vrot.slane %v1852, %v3595
    %v3597 = vmul.f32 %v3591, %v3596
    %v3598 = vmul.f32 %v3592, %v3596
    %v3599 = vlaneseq
    %v3600 = vshrl.u32 %v3599, 7
    %v3601 = vsub.s32 7, %v3600
    %v3602 = vrot.slane %v1852, %v3601
    %v3603 = vadd.f32 %v3597, %v3602
    %v3604 = vadd.f32 %v3598, %v3602
    %v3605 = vld [vmem:[%s6] sm:$0x1]
    %v3606 = vld [vmem:[%s6 + $0x1] sm:$0x1]
    %v3607 = vsel %vm73, %v3603, 0.0
    %3608 = vadd.xlane.f32.xlu0 %v3607
    %v3609 = vpop.xlane.xlu0 %3608
    %v3610 = vsel %vm73, %v3604, 0.0
    %3611 = vadd.xlane.f32.xlu0 %v3610
    %v3612 = vpop.xlane.xlu0 %3611
    %v3613 = vmul.f32 %v3609, %v1581
    %v3614 = vmul.f32 %v3612, %v1581
    %v3615 = vsub.f32 %v3603, %v3613
    %v3616 = vsub.f32 %v3604, %v3614
    %v3617 = vmul.f32 %v3615, %v3615
    %v3618 = vmul.f32 %v3616, %v3616
    %v3619 = vsel %vm73, %v3617, 0.0
    %3620 = vadd.xlane.f32.xlu0 %v3619
    %v3621 = vpop.xlane.xlu0 %3620
    %v3622 = vsel %vm73, %v3618, 0.0
    %3623 = vadd.xlane.f32.xlu0 %v3622
    %v3624 = vpop.xlane.xlu0 %3623
    %v3625 = vmul.f32 %v3621, %v1581
    %v3626 = vmul.f32 %v3624, %v1581
    %v3627 = vadd.f32 %v3625, 1e-05
    %v3628 = vadd.f32 %v3626, 1e-05
    %v3629 = vrsqrt.pop %v3627
    %v3630 = vrsqrt.pop %v3628
    %v3631 = vmul.f32 %v3615, %v3629
    %v3632 = vmul.f32 %v3616, %v3630
    %v3633 = vlaneseq
    %v3634 = vshrl.u32 %v3633, 7
    %v3635 = vsub.s32 0, %v3634
    %v3636 = vrot.slane %v3605, %v3635
    %v3637 = vmul.f32 %v3631, %v3636
    %v3638 = vmul.f32 %v3632, %v3636
    %v3639 = vlaneseq
    %v3640 = vshrl.u32 %v3639, 7
    %v3641 = vsub.s32 0, %v3640
    %v3642 = vrot.slane %v3606, %v3641
    %v3643 = vadd.f32 %v3637, %v3642
    %v3644 = vadd.f32 %v3638, %v3642
    %3645 = vst.msk [vmem:[#allocation5] sm:$0xff] %vm73, %v3643
    %3646 = vst.msk [vmem:[#allocation5 + $0x8] sm:$0xff] %vm73, %v3644
    // Predicated region
    $region34: #{tpu_custom_call.1} parent=1 // pred_check
      _
    $region35: #{tpu_custom_call.1} parent=1 // pred_check_branch
      %3648 = sbr.rel (0) target = $region37
    $region36: #{tpu_custom_call.1} parent=1 // pred_region
      %s3650 = ssub.s32 256, 256
      %3651 = vsyncadd [#allocation4], %s3650
      %s3652 = sshll.u32 [#allocation5], 4
      %s3653 = int_to_ptr.vmem [resolvable:$true] %s3652
      %3658 = dma.vmem_to_hbm [thread:$0]  %s3653, 256, %s7, [#allocation4], 128, 128, 8
    $region37: #{tpu_custom_call.1} parent=1 // pred_fallthru
      _
    // Predicated region
    $region38: #{tpu_custom_call.1} parent=1 // pred_check
      _
    $region39: #{tpu_custom_call.1} parent=1 // pred_check_branch
      %3660 = sbr.rel (0) target = $region41
    $region40: #{tpu_custom_call.1} parent=1 // pred_region
      %3661 = dma.done [#allocation4], 256
    $region41: #{tpu_custom_call.1} parent=1 // pred_fallthru
      _
    %3662 = vsyncpa [#allocation3], 1
    %3663 = vsyncpa [#allocation4], 1

</llo_original>
